<compile_context>
chip_gen: v6e
topology: v6e:2x2x1
jax: 0.10.0
libtpu: 0.0.40
codegen_flags: <defaults>
</compile_context>

<pallas_src>
import numpy as np
import jax
import jax.numpy as jnp
from jax.experimental import pallas as pl
from jax.experimental.pallas import tpu as pltpu


# ---------------------------------------------------------------------------
# Fused kernel: embedding + TBCNN conv + attention pooling (both sides) + classifier
# ---------------------------------------------------------------------------
def make_tbcnn_kernel(pb: int, n: int, d: int, vp: int):
    """pb = graph pairs per grid step, n = padded nodes per graph, d = feature dim,
    vp = padded vocab size (lanes of the one-hot)."""
    gn = pb * n

    def kernel(ids1_ref, adjw1_ref, ids2_ref, adjw2_ref,
               emb_ref, wgate_ref, bconv_ref, wcls_ref, bcls_ref, out_ref):
        # ---- Embedding + folded conv weights, both sides in one MXU call --------
        ids_b = jnp.concatenate([ids1_ref[0], ids2_ref[0]], axis=0)          # (2GN, 1) i32
        iota = jax.lax.broadcasted_iota(jnp.int32, (2 * gn, vp), 1)
        onehot = (ids_b == iota).astype(jnp.float32).astype(jnp.bfloat16)     # exact 0/1
        # feats lanes = [ h@W_left | h@W_right | h@W_top | h ]   (2GN, 4D = 128)
        feats = jnp.dot(onehot, emb_ref[...], preferred_element_type=jnp.float32)

        ones_col = jnp.ones((2 * gn, 1), jnp.bfloat16)

        # ---- Weighted child aggregation: one matmul per side --------------------
        def child_state(adjw_ref, row0):
            hl = feats[row0:row0 + gn, 0:d]
            hr = feats[row0:row0 + gn, d:2 * d]
            hlr = jnp.concatenate([hl, hr], axis=0).astype(jnp.bfloat16)      # (2GN, D)
            hlr = jnp.concatenate([hlr, ones_col], axis=-1)                   # (2GN, D+1)
            # adjw = [(1-alpha) block | alpha block]; extra column -> child count.
            return jnp.dot(adjw_ref[0], hlr, preferred_element_type=jnp.float32)

        ch = jnp.concatenate([child_state(adjw1_ref, 0),
                              child_state(adjw2_ref, gn)], axis=0)            # (2GN, D+1)

        cnt = ch[:, d:d + 1]                                                  # child count
        conv = jnp.maximum(ch[:, 0:d] + feats[:, 2 * d:3 * d] + bconv_ref[...], 0.0)
        hasc = (cnt > 0.5).astype(jnp.float32)                                # has children?
        h0 = feats[:, 3 * d:4 * d]
        h1 = hasc * conv + (1.0 - hasc) * h0                                  # leaves keep h0

        # ---- Global attention pooling (masked softmax per graph) ----------------
        mask = ids_b != 0                       # padding reserves type id 0  (2GN, 1)
        s = jnp.sum(h1 * wgate_ref[...], axis=-1, keepdims=True)              # gate scores
        s3 = jnp.where(mask, s, jnp.full_like(s, -1e30)).reshape(2 * pb, n, 1)
        m3 = mask.astype(jnp.float32).reshape(2 * pb, n, 1)
        mx = jnp.max(s3, axis=1, keepdims=True)
        e = jnp.exp(s3 - mx) * m3
        den = jnp.sum(e, axis=1, keepdims=True)
        p = e * pl.reciprocal(jnp.maximum(den, 1e-30), approx=True)           # EUP slot
        pooled = jnp.sum(p * h1.reshape(2 * pb, n, d), axis=1)                # (2*pb, D)

        # ---- Siamese classifier --------------------------------------------------
        dist = jnp.abs(pooled[:pb] - pooled[pb:])                             # (pb, D)
        out_ref[...] = (jnp.dot(dist, wcls_ref[...],
                                preferred_element_type=jnp.float32)
                        + bcls_ref[...])                                      # lane-dense

    return kernel


def tbcnn_forward(params, ids1, adjw1, ids2, adjw2, *, pb, n, d, vp, n_classes):
    """ids  : (S, GN, 1) int32  (type id; 0 == padding)
       adjw : (S, GN, 2*GN) bf16 block-diagonal [(1-alpha) | alpha] child weights."""
    S, gn, _ = ids1.shape
    assert gn == pb * n
    cpad = params["W_cls_pad"].shape[-1]

    def w_spec(shape):
        return pl.BlockSpec(shape, lambda i: tuple(0 for _ in shape))

    logits_pad = pl.pallas_call(
        make_tbcnn_kernel(pb, n, d, vp),
        out_shape=jax.ShapeDtypeStruct((S * pb, cpad), jnp.float32),
        grid=(S,),
        in_specs=[
            pl.BlockSpec((1, gn, 1),      lambda i: (i, 0, 0)),   # ids  side 1
            pl.BlockSpec((1, gn, 2 * gn), lambda i: (i, 0, 0)),   # adjw side 1 (bf16)
            pl.BlockSpec((1, gn, 1),      lambda i: (i, 0, 0)),   # ids  side 2
            pl.BlockSpec((1, gn, 2 * gn), lambda i: (i, 0, 0)),   # adjw side 2 (bf16)
            w_spec((vp, 4 * d)),                                  # folded embedding table
            w_spec((1, d)),                                       # w_gate
            w_spec((1, d)),                                       # b_conv
            w_spec((d, cpad)),                                    # W_cls (lane padded)
            w_spec((1, cpad)),                                    # b_cls (lane padded)
        ],
        out_specs=pl.BlockSpec((pb, cpad), lambda i: (i, 0)),
        compiler_params=pltpu.CompilerParams(dimension_semantics=("parallel",)),
    )(ids1, adjw1, ids2, adjw2,
      params["emb_cat"], params["w_gate"], params["b_conv"],
      params["W_cls_pad"], params["b_cls_pad"])
    return logits_pad[:, :n_classes]


# ---------------------------------------------------------------------------
# Host-side glue: tree structure -> block-diagonal weighted adjacency + type ids
# ---------------------------------------------------------------------------
def random_tree(rng, max_nodes):
    n_real = int(rng.randint(4, max_nodes + 1))
    children = {}
    for i in range(1, n_real):
        parent = int(rng.randint(0, i))
        children.setdefault(parent, []).append(i)
    return children, n_real


def build_side(trees, type_rng, n, pb, vocab):
    B = len(trees)
    assert B % pb == 0
    S = B // pb
    gn = pb * n
    adjw = np.zeros((S, gn, 2 * gn), np.float32)   # [ (1-alpha) block | alpha block ]
    ids = np.zeros((S, gn, 1), np.int32)           # 0 == padding (masked in pooling)
    for b, (children, n_real) in enumerate(trees):
        s, j = divmod(b, pb)
        r0 = j * n
        ids[s, r0:r0 + n_real, 0] = type_rng.randint(1, vocab, size=n_real)  # real ids >= 1
        for p_node, kids in children.items():
            C = len(kids)
            for i, c in enumerate(kids):
                alpha = 0.5 if C == 1 else i / (C - 1)
                adjw[s, r0 + p_node, r0 + c] = 1.0 - alpha        # W_left mixing weight
                adjw[s, r0 + p_node, gn + r0 + c] = alpha         # W_right mixing weight
    # Padded nodes never appear as children (columns stay zero) and carry id 0.
    return jnp.asarray(adjw, jnp.bfloat16), jnp.asarray(ids)


if __name__ == "__main__":
    D = 32                 # x_size == h_size (implied by the torch forward)
    N_CLASSES = 2
    VOCAB = 50
    VP = 64                # vocab padded for the in-kernel one-hot
    N = 16                 # padded nodes per graph
    PB = 8                 # graph pairs per grid step (GN = 128 node rows per side)
    B = 64                 # total pairs -> 8 grid steps (>=4 per TC on v7x, 8-deep pipeline)
    CPAD = 128             # classifier output padded to one full lane width
    S = B // PB

    key = jax.random.PRNGKey(0)
    k = jax.random.split(key, 8)
    lim = 1.0 / np.sqrt(D)
    emb = jax.random.normal(k[0], (VOCAB, D), jnp.float32)
    W_left = jax.random.uniform(k[1], (D, D), jnp.float32)     # torch.rand init
    W_right = jax.random.uniform(k[2], (D, D), jnp.float32)
    W_top = jax.random.uniform(k[3], (D, D), jnp.float32)
    w_gate = jax.random.uniform(k[4], (1, D), jnp.float32, minval=-lim, maxval=lim)
    w_cls = jax.random.uniform(k[6], (D, N_CLASSES), jnp.float32, minval=-lim, maxval=lim)
    b_cls = jax.random.uniform(k[7], (1, N_CLASSES), jnp.float32, minval=-lim, maxval=lim)

    # Fold the conv weights into the embedding table (host, once):
    # lanes = [ emb@W_left | emb@W_right | emb@W_top | emb ]  -> (VOCAB, 4D = 128)
    emb_cat = jnp.concatenate([emb @ W_left, emb @ W_right, emb @ W_top, emb], axis=-1)
    emb_cat = jnp.pad(emb_cat, ((0, VP - VOCAB), (0, 0))).astype(jnp.bfloat16)

    params = {
        "emb_cat": emb_cat,
        "w_gate": w_gate,
        # gate bias of the pooling Linear is constant across nodes -> cancels in softmax
        "b_conv": jnp.zeros((1, D), jnp.float32),
        "W_cls_pad": jnp.pad(w_cls, ((0, 0), (0, CPAD - N_CLASSES))),
        "b_cls_pad": jnp.pad(b_cls, ((0, 0), (0, CPAD - N_CLASSES))),
    }
    # TODO(synk): W_iou / U_iou / U_f / b_iou and dropout exist in __init__ but are unused in forward.

    tree_rng = np.random.RandomState(0)
    type_rng = np.random.RandomState(1)
    trees1 = [random_tree(tree_rng, N) for _ in range(B)]
    trees2 = [random_tree(tree_rng, N) for _ in range(B)]
    adjw1, ids1 = build_side(trees1, type_rng, N, PB, VOCAB)
    adjw2, ids2 = build_side(trees2, type_rng, N, PB, VOCAB)

    logits = tbcnn_forward(params, ids1, adjw1, ids2, adjw2,
                           pb=PB, n=N, d=D, vp=VP, n_classes=N_CLASSES)
    jax.block_until_ready(logits)
    assert logits.shape == (B, N_CLASSES)
    assert bool(jnp.all(jnp.isfinite(logits)))
    print("KERNEL_OK")
</pallas_src>

<mosaic_0001>
module attributes {stable_mosaic.version = 11 : i64} {
  func.func @kernel(%arg0: i32, %arg1: memref<1x128x1xi32, #tpu.memory_space<vmem>>, %arg2: memref<1x128x256xbf16, #tpu.memory_space<vmem>>, %arg3: memref<1x128x1xi32, #tpu.memory_space<vmem>>, %arg4: memref<1x128x256xbf16, #tpu.memory_space<vmem>>, %arg5: memref<64x128xbf16, #tpu.memory_space<vmem>>, %arg6: memref<1x32xf32, #tpu.memory_space<vmem>>, %arg7: memref<1x32xf32, #tpu.memory_space<vmem>>, %arg8: memref<32x128xf32, #tpu.memory_space<vmem>>, %arg9: memref<1x128xf32, #tpu.memory_space<vmem>>, %arg10: memref<8x128xf32, #tpu.memory_space<vmem>>) attributes {dimension_semantics = [#tpu.dimension_semantics<parallel>], iteration_bounds = array<i64: 8>, scalar_prefetch = 0 : i64, scratch_operands = 0 : i64, tpu.core_type = #tpu.core_type<tc>, window_params = [{transform_indices = @transform_0, window_bounds = array<i64: 1, 128, 1>}, {transform_indices = @transform_1, window_bounds = array<i64: 1, 128, 256>}, {transform_indices = @transform_2, window_bounds = array<i64: 1, 128, 1>}, {transform_indices = @transform_3, window_bounds = array<i64: 1, 128, 256>}, {pipeline_mode = #tpu.pipeline_mode<synchronous>, transform_indices = @transform_4, window_bounds = array<i64: 64, 128>}, {pipeline_mode = #tpu.pipeline_mode<synchronous>, transform_indices = @transform_5, window_bounds = array<i64: 1, 32>}, {pipeline_mode = #tpu.pipeline_mode<synchronous>, transform_indices = @transform_6, window_bounds = array<i64: 1, 32>}, {pipeline_mode = #tpu.pipeline_mode<synchronous>, transform_indices = @transform_7, window_bounds = array<i64: 32, 128>}, {pipeline_mode = #tpu.pipeline_mode<synchronous>, transform_indices = @transform_8, window_bounds = array<i64: 1, 128>}, {transform_indices = @transform_9, window_bounds = array<i64: 8, 128>}]} {
    %c0 = arith.constant 0 : index
    %c0_0 = arith.constant 0 : index
    %c0_1 = arith.constant 0 : index
    %0 = vector.load %arg1[%c0, %c0_0, %c0_1] : memref<1x128x1xi32, #tpu.memory_space<vmem>>, vector<1x128x1xi32>
    %1 = vector.shape_cast %0 : vector<1x128x1xi32> to vector<128x1xi32>
    %c0_2 = arith.constant 0 : index
    %c0_3 = arith.constant 0 : index
    %c0_4 = arith.constant 0 : index
    %2 = vector.load %arg3[%c0_2, %c0_3, %c0_4] : memref<1x128x1xi32, #tpu.memory_space<vmem>>, vector<1x128x1xi32>
    %3 = vector.shape_cast %2 : vector<1x128x1xi32> to vector<128x1xi32>
    %4 = tpu.concatenate %1, %3 in 0 : vector<128x1xi32>, vector<128x1xi32> -> vector<256x1xi32>
    %5 = tpu.iota {dimensions = array<i32: 1>} : vector<256x64xi32>
    %6 = vector.broadcast %4 : vector<256x1xi32> to vector<256x64xi32>
    %7 = arith.cmpi eq, %6, %5 : vector<256x64xi32>
    %8 = arith.extui %7 : vector<256x64xi1> to vector<256x64xi32>
    %9 = arith.sitofp %8 : vector<256x64xi32> to vector<256x64xf32>
    %10 = arith.truncf %9 : vector<256x64xf32> to vector<256x64xbf16>
    %c0_5 = arith.constant 0 : index
    %c0_6 = arith.constant 0 : index
    %11 = vector.load %arg5[%c0_5, %c0_6] : memref<64x128xbf16, #tpu.memory_space<vmem>>, vector<64x128xbf16>
    %cst = arith.constant dense<0.000000e+00> : vector<256x128xf32>
    %12 = tpu.matmul %10, %11, %cst {dimension_numbers = #tpu.dot_dimension_numbers<[1], [0], [0], [1], [0, 0, 1, 1], [], []>} : vector<256x64xbf16>, vector<64x128xbf16>, vector<256x128xf32> -> vector<256x128xf32>
    %cst_7 = arith.constant 1.000000e+00 : bf16
    %13 = vector.broadcast %cst_7 : bf16 to vector<256x1xbf16>
    %14 = vector.extract_strided_slice %12 {offsets = [0, 0], sizes = [128, 32], strides = [1, 1]} : vector<256x128xf32> to vector<128x32xf32>
    %15 = vector.extract_strided_slice %12 {offsets = [0, 32], sizes = [128, 32], strides = [1, 1]} : vector<256x128xf32> to vector<128x32xf32>
    %16 = tpu.concatenate %14, %15 in 0 : vector<128x32xf32>, vector<128x32xf32> -> vector<256x32xf32>
    %17 = arith.truncf %16 : vector<256x32xf32> to vector<256x32xbf16>
    %18 = tpu.concatenate %17, %13 in 1 : vector<256x32xbf16>, vector<256x1xbf16> -> vector<256x33xbf16>
    %c0_8 = arith.constant 0 : index
    %c0_9 = arith.constant 0 : index
    %c0_10 = arith.constant 0 : index
    %19 = vector.load %arg2[%c0_8, %c0_9, %c0_10] : memref<1x128x256xbf16, #tpu.memory_space<vmem>>, vector<1x128x256xbf16>
    %20 = vector.shape_cast %19 : vector<1x128x256xbf16> to vector<128x256xbf16>
    %cst_11 = arith.constant dense<0.000000e+00> : vector<128x33xf32>
    %21 = tpu.matmul %20, %18, %cst_11 {dimension_numbers = #tpu.dot_dimension_numbers<[1], [0], [0], [1], [0, 0, 1, 1], [], []>} : vector<128x256xbf16>, vector<256x33xbf16>, vector<128x33xf32> -> vector<128x33xf32>
    %22 = vector.extract_strided_slice %12 {offsets = [128, 0], sizes = [128, 32], strides = [1, 1]} : vector<256x128xf32> to vector<128x32xf32>
    %23 = vector.extract_strided_slice %12 {offsets = [128, 32], sizes = [128, 32], strides = [1, 1]} : vector<256x128xf32> to vector<128x32xf32>
    %24 = tpu.concatenate %22, %23 in 0 : vector<128x32xf32>, vector<128x32xf32> -> vector<256x32xf32>
    %25 = arith.truncf %24 : vector<256x32xf32> to vector<256x32xbf16>
    %26 = tpu.concatenate %25, %13 in 1 : vector<256x32xbf16>, vector<256x1xbf16> -> vector<256x33xbf16>
    %c0_12 = arith.constant 0 : index
    %c0_13 = arith.constant 0 : index
    %c0_14 = arith.constant 0 : index
    %27 = vector.load %arg4[%c0_12, %c0_13, %c0_14] : memref<1x128x256xbf16, #tpu.memory_space<vmem>>, vector<1x128x256xbf16>
    %28 = vector.shape_cast %27 : vector<1x128x256xbf16> to vector<128x256xbf16>
    %cst_15 = arith.constant dense<0.000000e+00> : vector<128x33xf32>
    %29 = tpu.matmul %28, %26, %cst_15 {dimension_numbers = #tpu.dot_dimension_numbers<[1], [0], [0], [1], [0, 0, 1, 1], [], []>} : vector<128x256xbf16>, vector<256x33xbf16>, vector<128x33xf32> -> vector<128x33xf32>
    %30 = tpu.concatenate %21, %29 in 0 : vector<128x33xf32>, vector<128x33xf32> -> vector<256x33xf32>
    %31 = vector.extract_strided_slice %30 {offsets = [0, 32], sizes = [256, 1], strides = [1, 1]} : vector<256x33xf32> to vector<256x1xf32>
    %32 = vector.extract_strided_slice %30 {offsets = [0, 0], sizes = [256, 32], strides = [1, 1]} : vector<256x33xf32> to vector<256x32xf32>
    %33 = vector.extract_strided_slice %12 {offsets = [0, 64], sizes = [256, 32], strides = [1, 1]} : vector<256x128xf32> to vector<256x32xf32>
    %34 = arith.addf %32, %33 : vector<256x32xf32>
    %c0_16 = arith.constant 0 : index
    %c0_17 = arith.constant 0 : index
    %35 = vector.load %arg7[%c0_16, %c0_17] : memref<1x32xf32, #tpu.memory_space<vmem>>, vector<1x32xf32>
    %36 = vector.broadcast %35 : vector<1x32xf32> to vector<256x32xf32>
    %37 = arith.addf %34, %36 : vector<256x32xf32>
    %cst_18 = arith.constant 0.000000e+00 : f32
    %38 = vector.broadcast %cst_18 : f32 to vector<256x32xf32>
    %39 = arith.maximumf %37, %38 : vector<256x32xf32>
    %cst_19 = arith.constant 5.000000e-01 : f32
    %40 = vector.broadcast %cst_19 : f32 to vector<256x1xf32>
    %41 = arith.cmpf ogt, %31, %40 : vector<256x1xf32>
    %42 = arith.extui %41 : vector<256x1xi1> to vector<256x1xi32>
    %43 = arith.sitofp %42 : vector<256x1xi32> to vector<256x1xf32>
    %44 = vector.extract_strided_slice %12 {offsets = [0, 96], sizes = [256, 32], strides = [1, 1]} : vector<256x128xf32> to vector<256x32xf32>
    %45 = vector.broadcast %43 : vector<256x1xf32> to vector<256x32xf32>
    %46 = arith.mulf %45, %39 : vector<256x32xf32>
    %cst_20 = arith.constant 1.000000e+00 : f32
    %47 = vector.broadcast %cst_20 : f32 to vector<256x1xf32>
    %48 = arith.subf %47, %43 : vector<256x1xf32>
    %49 = vector.broadcast %48 : vector<256x1xf32> to vector<256x32xf32>
    %50 = arith.mulf %49, %44 : vector<256x32xf32>
    %51 = arith.addf %46, %50 : vector<256x32xf32>
    %c0_i32 = arith.constant 0 : i32
    %52 = vector.broadcast %c0_i32 : i32 to vector<256x1xi32>
    %53 = arith.cmpi ne, %4, %52 : vector<256x1xi32>
    %c0_21 = arith.constant 0 : index
    %c0_22 = arith.constant 0 : index
    %54 = vector.load %arg6[%c0_21, %c0_22] : memref<1x32xf32, #tpu.memory_space<vmem>>, vector<1x32xf32>
    %55 = vector.broadcast %54 : vector<1x32xf32> to vector<256x32xf32>
    %56 = arith.mulf %51, %55 : vector<256x32xf32>
    %cst_23 = arith.constant dense<0.000000e+00> : vector<256xf32>
    %57 = vector.multi_reduction <add>, %56, %cst_23 [1] : vector<256x32xf32> to vector<256xf32>
    %58 = vector.shape_cast %57 : vector<256xf32> to vector<256x1xf32>
    %cst_24 = arith.constant -1.000000e+30 : f32
    %59 = vector.broadcast %cst_24 : f32 to vector<256x1xf32>
    %60 = arith.select %53, %58, %59 : vector<256x1xi1>, vector<256x1xf32>
    %61 = vector.shape_cast %60 : vector<256x1xf32> to vector<16x16x1xf32>
    %62 = arith.extui %53 : vector<256x1xi1> to vector<256x1xi32>
    %63 = arith.sitofp %62 : vector<256x1xi32> to vector<256x1xf32>
    %64 = vector.shape_cast %63 : vector<256x1xf32> to vector<16x16x1xf32>
    %cst_25 = arith.constant dense<0xFF800000> : vector<16x1xf32>
    %65 = vector.multi_reduction <maximumf>, %61, %cst_25 [1] : vector<16x16x1xf32> to vector<16x1xf32>
    %66 = vector.shape_cast %65 : vector<16x1xf32> to vector<16x1x1xf32>
    %67 = vector.broadcast %66 : vector<16x1x1xf32> to vector<16x16x1xf32>
    %68 = arith.subf %61, %67 : vector<16x16x1xf32>
    %69 = math.exp %68 : vector<16x16x1xf32>
    %70 = arith.mulf %69, %64 : vector<16x16x1xf32>
    %cst_26 = arith.constant dense<0.000000e+00> : vector<16x1xf32>
    %71 = vector.multi_reduction <add>, %70, %cst_26 [1] : vector<16x16x1xf32> to vector<16x1xf32>
    %72 = vector.shape_cast %71 : vector<16x1xf32> to vector<16x1x1xf32>
    %cst_27 = arith.constant 1.000000e-30 : f32
    %73 = vector.broadcast %cst_27 : f32 to vector<16x1x1xf32>
    %74 = arith.maximumf %72, %73 : vector<16x1x1xf32>
    %75 = tpu.reciprocal %74 {approx = true} : vector<16x1x1xf32> -> vector<16x1x1xf32>
    %76 = vector.broadcast %75 : vector<16x1x1xf32> to vector<16x16x1xf32>
    %77 = arith.mulf %70, %76 : vector<16x16x1xf32>
    %78 = vector.shape_cast %51 : vector<256x32xf32> to vector<16x16x32xf32>
    %79 = vector.broadcast %77 : vector<16x16x1xf32> to vector<16x16x32xf32>
    %80 = arith.mulf %79, %78 : vector<16x16x32xf32>
    %cst_28 = arith.constant dense<0.000000e+00> : vector<16x32xf32>
    %81 = vector.multi_reduction <add>, %80, %cst_28 [1] : vector<16x16x32xf32> to vector<16x32xf32>
    %82 = vector.extract_strided_slice %81 {offsets = [0, 0], sizes = [8, 32], strides = [1, 1]} : vector<16x32xf32> to vector<8x32xf32>
    %83 = vector.extract_strided_slice %81 {offsets = [8, 0], sizes = [8, 32], strides = [1, 1]} : vector<16x32xf32> to vector<8x32xf32>
    %84 = arith.subf %82, %83 : vector<8x32xf32>
    %85 = math.absf %84 : vector<8x32xf32>
    %c0_29 = arith.constant 0 : index
    %c0_30 = arith.constant 0 : index
    %86 = vector.load %arg8[%c0_29, %c0_30] : memref<32x128xf32, #tpu.memory_space<vmem>>, vector<32x128xf32>
    %cst_31 = arith.constant dense<0.000000e+00> : vector<8x128xf32>
    %87 = tpu.matmul %85, %86, %cst_31 {dimension_numbers = #tpu.dot_dimension_numbers<[1], [0], [0], [1], [0, 0, 1, 1], [], []>} : vector<8x32xf32>, vector<32x128xf32>, vector<8x128xf32> -> vector<8x128xf32>
    %c0_32 = arith.constant 0 : index
    %c0_33 = arith.constant 0 : index
    %88 = vector.load %arg9[%c0_32, %c0_33] : memref<1x128xf32, #tpu.memory_space<vmem>>, vector<1x128xf32>
    %89 = vector.broadcast %88 : vector<1x128xf32> to vector<8x128xf32>
    %90 = arith.addf %87, %89 : vector<8x128xf32>
    %c0_34 = arith.constant 0 : index
    %c0_35 = arith.constant 0 : index
    %91 = vector.load %arg10[%c0_34, %c0_35] : memref<8x128xf32, #tpu.memory_space<vmem>>, vector<8x128xf32>
    tpu.vector_store %arg10[%c0_34, %c0_35], %90 {strides = array<i32>} : memref<8x128xf32, #tpu.memory_space<vmem>>, vector<8x128xf32>,
    return
  }
  func.func @transform_0(%arg0: i32) -> (i32, i32, i32) {
    %c0_i32 = arith.constant 0 : i32
    %c0_i32_0 = arith.constant 0 : i32
    %c0_i32_1 = arith.constant 0 : i32
    return %arg0, %c0_i32, %c0_i32_0 : i32, i32, i32
  }
  func.func @transform_1(%arg0: i32) -> (i32, i32, i32) {
    %c0_i32 = arith.constant 0 : i32
    %c0_i32_0 = arith.constant 0 : i32
    %c0_i32_1 = arith.constant 0 : i32
    return %arg0, %c0_i32, %c0_i32_0 : i32, i32, i32
  }
  func.func @transform_2(%arg0: i32) -> (i32, i32, i32) {
    %c0_i32 = arith.constant 0 : i32
    %c0_i32_0 = arith.constant 0 : i32
    %c0_i32_1 = arith.constant 0 : i32
    return %arg0, %c0_i32, %c0_i32_0 : i32, i32, i32
  }
  func.func @transform_3(%arg0: i32) -> (i32, i32, i32) {
    %c0_i32 = arith.constant 0 : i32
    %c0_i32_0 = arith.constant 0 : i32
    %c0_i32_1 = arith.constant 0 : i32
    return %arg0, %c0_i32, %c0_i32_0 : i32, i32, i32
  }
  func.func @transform_4(%arg0: i32) -> (i32, i32) {
    %c0_i32 = arith.constant 0 : i32
    %c0_i32_0 = arith.constant 0 : i32
    %c0_i32_1 = arith.constant 0 : i32
    return %c0_i32, %c0_i32_0 : i32, i32
  }
  func.func @transform_5(%arg0: i32) -> (i32, i32) {
    %c0_i32 = arith.constant 0 : i32
    %c0_i32_0 = arith.constant 0 : i32
    %c0_i32_1 = arith.constant 0 : i32
    return %c0_i32, %c0_i32_0 : i32, i32
  }
  func.func @transform_6(%arg0: i32) -> (i32, i32) {
    %c0_i32 = arith.constant 0 : i32
    %c0_i32_0 = arith.constant 0 : i32
    %c0_i32_1 = arith.constant 0 : i32
    return %c0_i32, %c0_i32_0 : i32, i32
  }
  func.func @transform_7(%arg0: i32) -> (i32, i32) {
    %c0_i32 = arith.constant 0 : i32
    %c0_i32_0 = arith.constant 0 : i32
    %c0_i32_1 = arith.constant 0 : i32
    return %c0_i32, %c0_i32_0 : i32, i32
  }
  func.func @transform_8(%arg0: i32) -> (i32, i32) {
    %c0_i32 = arith.constant 0 : i32
    %c0_i32_0 = arith.constant 0 : i32
    %c0_i32_1 = arith.constant 0 : i32
    return %c0_i32, %c0_i32_0 : i32, i32
  }
  func.func @transform_9(%arg0: i32) -> (i32, i32) {
    %c0_i32 = arith.constant 0 : i32
    %c0_i32_0 = arith.constant 0 : i32
    return %arg0, %c0_i32 : i32, i32
  }
}

</mosaic_0001>

<llo_original>
// kernel: tpu_custom_call.1
$region0: #{tpu_custom_call.1}
  #allocation0 [shape = 'u32[]', space=smem, size = 0x4, offset = 0x4, fixed_abs, tag = 'smem constant byte address 0x4 - core index']
  #allocation1 [shape = 'u32[144,128]{1,0:T(1,128)}', space=vmem, size = 0x12000, scoped, tag = 'internal scratch']
  %s0 = inlined_call_operand.vmem [shape: s32[8,128,1], index: 0, kind: input, shape index: {}]
  %s1 = inlined_call_operand.vmem [shape: bf16[8,128,256], index: 1, kind: input, shape index: {}]
  %s2 = inlined_call_operand.vmem [shape: s32[8,128,1], index: 2, kind: input, shape index: {}]
  %s3 = inlined_call_operand.vmem [shape: bf16[8,128,256], index: 3, kind: input, shape index: {}]
  %s4 = inlined_call_operand.hbm [shape: bf16[64,128], index: 4, kind: input, shape index: {}]
  %s5 = inlined_call_operand.vmem [shape: f32[1,32], index: 5, kind: input, shape index: {}]
  %s6 = inlined_call_operand.vmem [shape: f32[1,32], index: 6, kind: input, shape index: {}]
  %s7 = inlined_call_operand.hbm [shape: f32[32,128], index: 7, kind: input, shape index: {}]
  %s8 = inlined_call_operand.vmem [shape: f32[1,128], index: 8, kind: input, shape index: {}]
  %s9 = inlined_call_operand.hbm [shape: f32[64,128], index: 9, kind: output, shape index: {}]
  %s10 = sld [smem:[#allocation0]]
  $region77: #{tpu_custom_call.1} parent=0
    _
  %s12 = ssub.s32 1, %s10
  %s13 = scalar_select 0, %s12, %s10
  $region1: #{tpu_custom_call.1} parent=0
    #allocation2 [shape = 'u8[16384]{0}', space=vmem, size = 0x4000, scoped, tag = 'input window, operand 4, single buffered']
    #allocation3 [shape = 's32[2]{0}', space=sflag, size = 0x8, scoped, tag = 'scoped memory for tpu_custom_call.1']
    #allocation4 [shape = 's32[2]{0}', space=sflag, size = 0x8, scoped, tag = 'scoped memory for tpu_custom_call.1']
    #allocation5 [shape = 'u8[16384]{0}', space=vmem, size = 0x4000, scoped, tag = 'input window, operand 7, single buffered']
    #allocation6 [shape = 's32[1]{0}', space=sflag, size = 0x4, scoped, tag = 'scoped memory for tpu_custom_call.1']
    #allocation7 [shape = 'u8[8192]{0}', space=vmem, size = 0x2000, scoped, tag = 'output window, operand 0']
    %14 = vsyncpa [#allocation3], 0
    %15 = vsyncpa [#allocation6], 0
    %16 = vsyncpa [#allocation4], 0
    %s17 = scalar_lea.sflag [#allocation4], 1
    %18 = vsyncpa %s17, 0
    loop: start=0, step=1, limit=10
    $region2: #{tpu_custom_call.1} parent=1 // loop_pre_header
      _
    $region3: #{tpu_custom_call.1} parent=1 // loop_header
      %s20 = sphi 0, %s24
      %p21 = scmp.ge.s32.totalorder %s20, 10
      %s30 = sphi 0, %s32
      %s33 = sphi 0, %s30
      %s34 = sphi 0, %s33
      %s50 = sphi 0, %s34
      %s56 = sphi 0, %s58
      %s59 = sphi 0, %s56
      %s60 = sphi 0, %s59
      %s76 = sphi 0, %s60
      %s82 = sphi 0, %s84
      %s85 = sphi 0, %s82
      %s86 = sphi 0, %s85
      %s102 = sphi 0, %s86
      %s108 = sphi 0, %s110
      %s111 = sphi 0, %s108
      %s112 = sphi 0, %s111
      %s128 = sphi 0, %s112
      %s132 = sphi 0, %s132
      %s134 = sphi 0, %s132
      %s135 = sphi 0, %s134
      %s149 = sphi 0, %s135
      %s153 = sphi 0, %s153
      %s155 = sphi 0, %s153
      %s156 = sphi 0, %s155
      %s170 = sphi 0, %s156
      %s174 = sphi 0, %s174
      %s176 = sphi 0, %s174
      %s177 = sphi 0, %s176
      %s191 = sphi 0, %s177
      %s195 = sphi 0, %s195
      %s197 = sphi 0, %s195
      %s198 = sphi 0, %s197
      %s212 = sphi 0, %s198
      %s216 = sphi 0, %s216
      %s218 = sphi 0, %s216
      %s219 = sphi 0, %s218
      %s233 = sphi 0, %s219
      %s239 = sphi 0, %s241
      %s242 = sphi 0, %s239
      %s243 = sphi 0, %s242
      %s259 = sphi 0, %s243
    $region4: #{tpu_custom_call.1} parent=1 // loop_header_branch
      %23 = sbr.rel (%p21) target = $region8
    $region5: #{tpu_custom_call.1} parent=1 // loop_body
      %s25 = ssub.s32 %s20, 1
      %s26 = ssub.s32 %s20, 2
      %s27 = sadd.s32 %s20, 1
      %s28 = ssub.s32 %s20, %s27
      %p29 = scmp.eq.s32.totalorder %s28, 0
      %s31 = sadd.s32 %s30, 1
      %s32 = scalar_select %p29, %s30, %s31
      %p35 = pneg %p29
      %p36 = scmp.eq.s32.totalorder %s20, 7
      %p37 = por %p35, %p36
      %p38 = scmp.ne.s32.totalorder %s30, %s33
      %p39 = scmp.eq.s32.totalorder %s20, 0
      %p40 = por %p38, %p39
      %p41 = scmp.ne.s32.totalorder %s30, %s33
      %p42 = scmp.eq.s32.totalorder %s25, 7
      %p43 = por %p41, %p42
      %p44 = scmp.ne.s32.totalorder %s33, %s34
      %p45 = scmp.eq.s32.totalorder %s25, 0
      %p46 = por %p44, %p45
      %p47 = scmp.ne.s32.totalorder %s33, %s34
      %p48 = scmp.eq.s32.totalorder %s26, 7
      %p49 = por %p47, %p48
      %p51 = scmp.ne.s32.totalorder %s34, %s50
      %p52 = scmp.eq.s32.totalorder %s26, 0
      %p53 = por %p51, %p52
      %s54 = ssub.s32 %s20, %s27
      %p55 = scmp.eq.s32.totalorder %s54, 0
      %s57 = sadd.s32 %s56, 1
      %s58 = scalar_select %p55, %s56, %s57
      %p61 = pneg %p55
      %p62 = scmp.eq.s32.totalorder %s20, 7
      %p63 = por %p61, %p62
      %p64 = scmp.ne.s32.totalorder %s56, %s59
      %p65 = scmp.eq.s32.totalorder %s20, 0
      %p66 = por %p64, %p65
      %p67 = scmp.ne.s32.totalorder %s56, %s59
      %p68 = scmp.eq.s32.totalorder %s25, 7
      %p69 = por %p67, %p68
      %p70 = scmp.ne.s32.totalorder %s59, %s60
      %p71 = scmp.eq.s32.totalorder %s25, 0
      %p72 = por %p70, %p71
      %p73 = scmp.ne.s32.totalorder %s59, %s60
      %p74 = scmp.eq.s32.totalorder %s26, 7
      %p75 = por %p73, %p74
      %p77 = scmp.ne.s32.totalorder %s60, %s76
      %p78 = scmp.eq.s32.totalorder %s26, 0
      %p79 = por %p77, %p78
      %s80 = ssub.s32 %s20, %s27
      %p81 = scmp.eq.s32.totalorder %s80, 0
      %s83 = sadd.s32 %s82, 1
      %s84 = scalar_select %p81, %s82, %s83
      %p87 = pneg %p81
      %p88 = scmp.eq.s32.totalorder %s20, 7
      %p89 = por %p87, %p88
      %p90 = scmp.ne.s32.totalorder %s82, %s85
      %p91 = scmp.eq.s32.totalorder %s20, 0
      %p92 = por %p90, %p91
      %p93 = scmp.ne.s32.totalorder %s82, %s85
      %p94 = scmp.eq.s32.totalorder %s25, 7
      %p95 = por %p93, %p94
      %p96 = scmp.ne.s32.totalorder %s85, %s86
      %p97 = scmp.eq.s32.totalorder %s25, 0
      %p98 = por %p96, %p97
      %p99 = scmp.ne.s32.totalorder %s85, %s86
      %p100 = scmp.eq.s32.totalorder %s26, 7
      %p101 = por %p99, %p100
      %p103 = scmp.ne.s32.totalorder %s86, %s102
      %p104 = scmp.eq.s32.totalorder %s26, 0
      %p105 = por %p103, %p104
      %s106 = ssub.s32 %s20, %s27
      %p107 = scmp.eq.s32.totalorder %s106, 0
      %s109 = sadd.s32 %s108, 1
      %s110 = scalar_select %p107, %s108, %s109
      %p113 = pneg %p107
      %p114 = scmp.eq.s32.totalorder %s20, 7
      %p115 = por %p113, %p114
      %p116 = scmp.ne.s32.totalorder %s108, %s111
      %p117 = scmp.eq.s32.totalorder %s20, 0
      %p118 = por %p116, %p117
      %p119 = scmp.ne.s32.totalorder %s108, %s111
      %p120 = scmp.eq.s32.totalorder %s25, 7
      %p121 = por %p119, %p120
      %p122 = scmp.ne.s32.totalorder %s111, %s112
      %p123 = scmp.eq.s32.totalorder %s25, 0
      %p124 = por %p122, %p123
      %p125 = scmp.ne.s32.totalorder %s111, %s112
      %p126 = scmp.eq.s32.totalorder %s26, 7
      %p127 = por %p125, %p126
      %p129 = scmp.ne.s32.totalorder %s112, %s128
      %p130 = scmp.eq.s32.totalorder %s26, 0
      %p131 = por %p129, %p130
      %s133 = sadd.s32 %s132, 1
      %p136 = scmp.eq.s32.totalorder %s20, 7
      %p137 = scmp.ne.s32.totalorder %s132, %s134
      %p138 = scmp.eq.s32.totalorder %s20, 0
      %p139 = por %p137, %p138
      %p140 = scmp.ne.s32.totalorder %s132, %s134
      %p141 = scmp.eq.s32.totalorder %s25, 7
      %p142 = por %p140, %p141
      %p143 = scmp.ne.s32.totalorder %s134, %s135
      %p144 = scmp.eq.s32.totalorder %s25, 0
      %p145 = por %p143, %p144
      %p146 = scmp.ne.s32.totalorder %s134, %s135
      %p147 = scmp.eq.s32.totalorder %s26, 7
      %p148 = por %p146, %p147
      %p150 = scmp.ne.s32.totalorder %s135, %s149
      %p151 = scmp.eq.s32.totalorder %s26, 0
      %p152 = por %p150, %p151
      %s154 = sadd.s32 %s153, 1
      %p157 = scmp.eq.s32.totalorder %s20, 7
      %p158 = scmp.ne.s32.totalorder %s153, %s155
      %p159 = scmp.eq.s32.totalorder %s20, 0
      %p160 = por %p158, %p159
      %p161 = scmp.ne.s32.totalorder %s153, %s155
      %p162 = scmp.eq.s32.totalorder %s25, 7
      %p163 = por %p161, %p162
      %p164 = scmp.ne.s32.totalorder %s155, %s156
      %p165 = scmp.eq.s32.totalorder %s25, 0
      %p166 = por %p164, %p165
      %p167 = scmp.ne.s32.totalorder %s155, %s156
      %p168 = scmp.eq.s32.totalorder %s26, 7
      %p169 = por %p167, %p168
      %p171 = scmp.ne.s32.totalorder %s156, %s170
      %p172 = scmp.eq.s32.totalorder %s26, 0
      %p173 = por %p171, %p172
      %s175 = sadd.s32 %s174, 1
      %p178 = scmp.eq.s32.totalorder %s20, 7
      %p179 = scmp.ne.s32.totalorder %s174, %s176
      %p180 = scmp.eq.s32.totalorder %s20, 0
      %p181 = por %p179, %p180
      %p182 = scmp.ne.s32.totalorder %s174, %s176
      %p183 = scmp.eq.s32.totalorder %s25, 7
      %p184 = por %p182, %p183
      %p185 = scmp.ne.s32.totalorder %s176, %s177
      %p186 = scmp.eq.s32.totalorder %s25, 0
      %p187 = por %p185, %p186
      %p188 = scmp.ne.s32.totalorder %s176, %s177
      %p189 = scmp.eq.s32.totalorder %s26, 7
      %p190 = por %p188, %p189
      %p192 = scmp.ne.s32.totalorder %s177, %s191
      %p193 = scmp.eq.s32.totalorder %s26, 0
      %p194 = por %p192, %p193
      %s196 = sadd.s32 %s195, 1
      %p199 = scmp.eq.s32.totalorder %s20, 7
      %p200 = scmp.ne.s32.totalorder %s195, %s197
      %p201 = scmp.eq.s32.totalorder %s20, 0
      %p202 = por %p200, %p201
      %p203 = scmp.ne.s32.totalorder %s195, %s197
      %p204 = scmp.eq.s32.totalorder %s25, 7
      %p205 = por %p203, %p204
      %p206 = scmp.ne.s32.totalorder %s197, %s198
      %p207 = scmp.eq.s32.totalorder %s25, 0
      %p208 = por %p206, %p207
      %p209 = scmp.ne.s32.totalorder %s197, %s198
      %p210 = scmp.eq.s32.totalorder %s26, 7
      %p211 = por %p209, %p210
      %p213 = scmp.ne.s32.totalorder %s198, %s212
      %p214 = scmp.eq.s32.totalorder %s26, 0
      %p215 = por %p213, %p214
      %s217 = sadd.s32 %s216, 1
      %p220 = scmp.eq.s32.totalorder %s20, 7
      %p221 = scmp.ne.s32.totalorder %s216, %s218
      %p222 = scmp.eq.s32.totalorder %s20, 0
      %p223 = por %p221, %p222
      %p224 = scmp.ne.s32.totalorder %s216, %s218
      %p225 = scmp.eq.s32.totalorder %s25, 7
      %p226 = por %p224, %p225
      %p227 = scmp.ne.s32.totalorder %s218, %s219
      %p228 = scmp.eq.s32.totalorder %s25, 0
      %p229 = por %p227, %p228
      %p230 = scmp.ne.s32.totalorder %s218, %s219
      %p231 = scmp.eq.s32.totalorder %s26, 7
      %p232 = por %p230, %p231
      %p234 = scmp.ne.s32.totalorder %s219, %s233
      %p235 = scmp.eq.s32.totalorder %s26, 0
      %p236 = por %p234, %p235
      %s237 = ssub.s32 %s20, %s27
      %p238 = scmp.eq.s32.totalorder %s237, 0
      %s240 = sadd.s32 %s239, 1
      %s241 = scalar_select %p238, %s239, %s240
      %p244 = pneg %p238
      %p245 = scmp.eq.s32.totalorder %s20, 7
      %p246 = por %p244, %p245
      %p247 = scmp.ne.s32.totalorder %s239, %s242
      %p248 = scmp.eq.s32.totalorder %s20, 0
      %p249 = por %p247, %p248
      %p250 = scmp.ne.s32.totalorder %s239, %s242
      %p251 = scmp.eq.s32.totalorder %s25, 7
      %p252 = por %p250, %p251
      %p253 = scmp.ne.s32.totalorder %s242, %s243
      %p254 = scmp.eq.s32.totalorder %s25, 0
      %p255 = por %p253, %p254
      %p256 = scmp.ne.s32.totalorder %s242, %s243
      %p257 = scmp.eq.s32.totalorder %s26, 7
      %p258 = por %p256, %p257
      %p260 = scmp.ne.s32.totalorder %s243, %s259
      %p261 = scmp.eq.s32.totalorder %s26, 0
      %p262 = por %p260, %p261
      %p263 = scmp.le.s32.totalorder 1, %s20
      %p264 = scmp.lt.s32.totalorder %s20, 9
      %p265 = pnand %p263, %p264
      %p266 = pneg %p265
      // Predicated region
      $region9: #{tpu_custom_call.1} parent=5 // pred_check
        _
      $region10: #{tpu_custom_call.1} parent=5 // pred_check_branch
        %268 = sbr.rel (%p265) target = $region12
      $region11: #{tpu_custom_call.1} parent=5 // pred_region
        %s269 = ssub.s32 %s20, 1
        // Predicated region
        $region13: #{tpu_custom_call.1} parent=11 // pred_check
          %p270 = pneg %p145
        $region14: #{tpu_custom_call.1} parent=11 // pred_check_branch
          %272 = sbr.rel (%p270) target = $region16
        $region15: #{tpu_custom_call.1} parent=11 // pred_region
          %s274 = ssub.s32 512, 512
          %275 = vsyncadd [#allocation3], %s274
          %s276 = sshll.u32 [#allocation2], 4
          %s277 = int_to_ptr.vmem [resolvable:$true] %s276
          %282 = dma.hbm_to_vmem [thread:$0]  %s4, 512, %s277, [#allocation3], 64, 64, 4
        $region16: #{tpu_custom_call.1} parent=11 // pred_fallthru
          _
        // Predicated region
        $region17: #{tpu_custom_call.1} parent=11 // pred_check
          %p283 = pneg %p166
        $region18: #{tpu_custom_call.1} parent=11 // pred_check_branch
          %285 = sbr.rel (%p283) target = $region20
        $region19: #{tpu_custom_call.1} parent=11 // pred_region
          _
        $region20: #{tpu_custom_call.1} parent=11 // pred_fallthru
          _
        // Predicated region
        $region21: #{tpu_custom_call.1} parent=11 // pred_check
          %p286 = pneg %p187
        $region22: #{tpu_custom_call.1} parent=11 // pred_check_branch
          %288 = sbr.rel (%p286) target = $region24
        $region23: #{tpu_custom_call.1} parent=11 // pred_region
          _
        $region24: #{tpu_custom_call.1} parent=11 // pred_fallthru
          _
        // Predicated region
        $region25: #{tpu_custom_call.1} parent=11 // pred_check
          %p289 = pneg %p208
        $region26: #{tpu_custom_call.1} parent=11 // pred_check_branch
          %291 = sbr.rel (%p289) target = $region28
        $region27: #{tpu_custom_call.1} parent=11 // pred_region
          %s293 = ssub.s32 512, 512
          %294 = vsyncadd [#allocation6], %s293
          %s295 = sshll.u32 [#allocation5], 4
          %s296 = int_to_ptr.vmem [resolvable:$true] %s295
          %301 = dma.hbm_to_vmem [thread:$0]  %s7, 512, %s296, [#allocation6], 128, 128, 8
        $region28: #{tpu_custom_call.1} parent=11 // pred_fallthru
          _
        // Predicated region
        $region29: #{tpu_custom_call.1} parent=11 // pred_check
          %p302 = pneg %p229
        $region30: #{tpu_custom_call.1} parent=11 // pred_check_branch
          %304 = sbr.rel (%p302) target = $region32
        $region31: #{tpu_custom_call.1} parent=11 // pred_region
          _
        $region32: #{tpu_custom_call.1} parent=11 // pred_fallthru
          _
      $region12: #{tpu_custom_call.1} parent=5 // pred_fallthru
        _
      %p305 = scmp.lt.s32.totalorder %s20, 8
      // Predicated region
      $region33: #{tpu_custom_call.1} parent=5 // pred_check
        %p306 = pneg %p305
      $region34: #{tpu_custom_call.1} parent=5 // pred_check_branch
        %308 = sbr.rel (%p306) target = $region36
      $region35: #{tpu_custom_call.1} parent=5 // pred_region
        // Predicated region
        $region37: #{tpu_custom_call.1} parent=35 // pred_check
          %p309 = pneg %p40
        $region38: #{tpu_custom_call.1} parent=35 // pred_check_branch
          %311 = sbr.rel (%p309) target = $region40
        $region39: #{tpu_custom_call.1} parent=35 // pred_region
          %p312 = scmp.lt.s32.totalorder %s20, 7
          %s313 = scalar_select %p312, %s20, 7
          %s314 = smul.addr %s313, 16
          %s315 = smul.addr %s314, 8
          %s316 = scalar_lea.vmem %s0, %s315
        $region40: #{tpu_custom_call.1} parent=35 // pred_fallthru
          _
        // Predicated region
        $region41: #{tpu_custom_call.1} parent=35 // pred_check
          %p317 = pneg %p66
        $region42: #{tpu_custom_call.1} parent=35 // pred_check_branch
          %319 = sbr.rel (%p317) target = $region44
        $region43: #{tpu_custom_call.1} parent=35 // pred_region
          %p320 = scmp.lt.s32.totalorder %s20, 7
          %s321 = scalar_select %p320, %s20, 7
          %s322 = smul.addr %s321, 32
          %s323 = smul.addr %s322, 4
          %s324 = scalar_lea.vmem %s1, %s323
        $region44: #{tpu_custom_call.1} parent=35 // pred_fallthru
          _
        // Predicated region
        $region45: #{tpu_custom_call.1} parent=35 // pred_check
          %p325 = pneg %p92
        $region46: #{tpu_custom_call.1} parent=35 // pred_check_branch
          %327 = sbr.rel (%p325) target = $region48
        $region47: #{tpu_custom_call.1} parent=35 // pred_region
          %p328 = scmp.lt.s32.totalorder %s20, 7
          %s329 = scalar_select %p328, %s20, 7
          %s330 = smul.addr %s329, 16
          %s331 = smul.addr %s330, 8
          %s332 = scalar_lea.vmem %s2, %s331
        $region48: #{tpu_custom_call.1} parent=35 // pred_fallthru
          _
        // Predicated region
        $region49: #{tpu_custom_call.1} parent=35 // pred_check
          %p333 = pneg %p118
        $region50: #{tpu_custom_call.1} parent=35 // pred_check_branch
          %335 = sbr.rel (%p333) target = $region52
        $region51: #{tpu_custom_call.1} parent=35 // pred_region
          %p336 = scmp.lt.s32.totalorder %s20, 7
          %s337 = scalar_select %p336, %s20, 7
          %s338 = smul.addr %s337, 32
          %s339 = smul.addr %s338, 4
          %s340 = scalar_lea.vmem %s3, %s339
        $region52: #{tpu_custom_call.1} parent=35 // pred_fallthru
          _
      $region36: #{tpu_custom_call.1} parent=5 // pred_fallthru
        _
      %p341 = scmp.le.s32.totalorder 1, %s20
      %p342 = scmp.lt.s32.totalorder %s20, 9
      %p343 = pnand %p341, %p342
      %p344 = pneg %p343
      // Predicated region
      $region53: #{tpu_custom_call.1} parent=5 // pred_check
        _
      $region54: #{tpu_custom_call.1} parent=5 // pred_check_branch
        %346 = sbr.rel (%p343) target = $region56
      $region55: #{tpu_custom_call.1} parent=5 // pred_region
        %s347 = ssub.s32 %s20, 1
        // Predicated region
        $region57: #{tpu_custom_call.1} parent=55 // pred_check
          %p348 = pneg %p145
        $region58: #{tpu_custom_call.1} parent=55 // pred_check_branch
          %350 = sbr.rel (%p348) target = $region60
        $region59: #{tpu_custom_call.1} parent=55 // pred_region
          %351 = dma.done [#allocation3], 512
        $region60: #{tpu_custom_call.1} parent=55 // pred_fallthru
          _
        // Predicated region
        $region61: #{tpu_custom_call.1} parent=55 // pred_check
          %p352 = pneg %p208
        $region62: #{tpu_custom_call.1} parent=55 // pred_check_branch
          %354 = sbr.rel (%p352) target = $region64
        $region63: #{tpu_custom_call.1} parent=55 // pred_region
          %355 = dma.done [#allocation6], 512
        $region64: #{tpu_custom_call.1} parent=55 // pred_fallthru
          _
        %p356 = scmp.lt.s32.totalorder %s25, 7
        %s357 = scalar_select %p356, %s25, 7
        %s358 = smul.addr %s357, 16
        %s359 = smul.addr %s358, 8
        %s360 = scalar_lea.vmem %s0, %s359
        %p361 = pneg %p46
        %p362 = pneg %p43
        %p363 = scmp.lt.s32.totalorder %s25, 7
        %s364 = scalar_select %p363, %s25, 7
        %s365 = smul.addr %s364, 32
        %s366 = smul.addr %s365, 4
        %s367 = scalar_lea.vmem %s1, %s366
        %p368 = pneg %p72
        %p369 = pneg %p69
        %p370 = scmp.lt.s32.totalorder %s25, 7
        %s371 = scalar_select %p370, %s25, 7
        %s372 = smul.addr %s371, 16
        %s373 = smul.addr %s372, 8
        %s374 = scalar_lea.vmem %s2, %s373
        %p375 = pneg %p98
        %p376 = pneg %p95
        %p377 = scmp.lt.s32.totalorder %s25, 7
        %s378 = scalar_select %p377, %s25, 7
        %s379 = smul.addr %s378, 32
        %s380 = smul.addr %s379, 4
        %s381 = scalar_lea.vmem %s3, %s380
        %p382 = pneg %p124
        %p383 = pneg %p121
        %p384 = pneg %p145
        %p385 = pneg %p142
        %p386 = pneg %p166
        %p387 = pneg %p163
        %p388 = pneg %p187
        %p389 = pneg %p184
        %p390 = pneg %p208
        %p391 = pneg %p205
        %p392 = pneg %p229
        %p393 = pneg %p226
        %p394 = pneg %p255
        %p395 = pneg %p252
        %s396 = sand.u32 %s242, 1
        %s397 = scalar_lea.sflag [#allocation4], %s396
        %s398 = sand.u32 %s242, 1
        %s399 = smul.addr %s398, 8
        %s400 = scalar_lea.vmem [#allocation7], %s399
        %p401 = scmp.lt.s32.totalorder %s25, 7
        %s402 = scalar_select %p401, %s25, 7
        %s403 = smul.addr %s402, 16
        %s404 = smul.addr %s403, 8
        %s405 = scalar_lea.vmem %s0, %s404
        %p406 = scmp.lt.s32.totalorder %s25, 7
        %s407 = scalar_select %p406, %s25, 7
        %s408 = smul.addr %s407, 32
        %s409 = smul.addr %s408, 4
        %s410 = scalar_lea.vmem %s1, %s409
        %p411 = scmp.lt.s32.totalorder %s25, 7
        %s412 = scalar_select %p411, %s25, 7
        %s413 = smul.addr %s412, 16
        %s414 = smul.addr %s413, 8
        %s415 = scalar_lea.vmem %s2, %s414
        %p416 = scmp.lt.s32.totalorder %s25, 7
        %s417 = scalar_select %p416, %s25, 7
        %s418 = smul.addr %s417, 32
        %s419 = smul.addr %s418, 4
        %s420 = scalar_lea.vmem %s3, %s419
        %v423 = vld [vmem:[%s405] sm:$0xff]
        %v424 = vld [vmem:[%s405 + $0x8] sm:$0xff]
        %v425 = vld [vmem:[%s405 + $0x10] sm:$0xff]
        %v426 = vld [vmem:[%s405 + $0x18] sm:$0xff]
        %v427 = vld [vmem:[%s405 + $0x20] sm:$0xff]
        %v428 = vld [vmem:[%s405 + $0x28] sm:$0xff]
        %v429 = vld [vmem:[%s405 + $0x30] sm:$0xff]
        %v430 = vld [vmem:[%s405 + $0x38] sm:$0xff]
        %v431 = vld [vmem:[%s405 + $0x40] sm:$0xff]
        %v432 = vld [vmem:[%s405 + $0x48] sm:$0xff]
        %v433 = vld [vmem:[%s405 + $0x50] sm:$0xff]
        %v434 = vld [vmem:[%s405 + $0x58] sm:$0xff]
        %v435 = vld [vmem:[%s405 + $0x60] sm:$0xff]
        %v436 = vld [vmem:[%s405 + $0x68] sm:$0xff]
        %v437 = vld [vmem:[%s405 + $0x70] sm:$0xff]
        %v438 = vld [vmem:[%s405 + $0x78] sm:$0xff]
        %v439 = vld [vmem:[%s415] sm:$0xff]
        %v440 = vld [vmem:[%s415 + $0x8] sm:$0xff]
        %v441 = vld [vmem:[%s415 + $0x10] sm:$0xff]
        %v442 = vld [vmem:[%s415 + $0x18] sm:$0xff]
        %v443 = vld [vmem:[%s415 + $0x20] sm:$0xff]
        %v444 = vld [vmem:[%s415 + $0x28] sm:$0xff]
        %v445 = vld [vmem:[%s415 + $0x30] sm:$0xff]
        %v446 = vld [vmem:[%s415 + $0x38] sm:$0xff]
        %v447 = vld [vmem:[%s415 + $0x40] sm:$0xff]
        %v448 = vld [vmem:[%s415 + $0x48] sm:$0xff]
        %v449 = vld [vmem:[%s415 + $0x50] sm:$0xff]
        %v450 = vld [vmem:[%s415 + $0x58] sm:$0xff]
        %v451 = vld [vmem:[%s415 + $0x60] sm:$0xff]
        %v452 = vld [vmem:[%s415 + $0x68] sm:$0xff]
        %v453 = vld [vmem:[%s415 + $0x70] sm:$0xff]
        %v454 = vld [vmem:[%s415 + $0x78] sm:$0xff]
        %v455 = vlaneseq
        %v456 = vand.u32 %v455, 127
        %457 = vset.pattern.permute.xlu0 0
        %458 = vperm.xlu0 %457, %v423
        %v459 = vpop.permute.xlu0 %458
        %460 = vset.pattern.permute.xlu0 0
        %461 = vperm.xlu0 %460, %v424
        %v462 = vpop.permute.xlu0 %461
        %463 = vset.pattern.permute.xlu0 0
        %464 = vperm.xlu0 %463, %v425
        %v465 = vpop.permute.xlu0 %464
        %466 = vset.pattern.permute.xlu0 0
        %467 = vperm.xlu0 %466, %v426
        %v468 = vpop.permute.xlu0 %467
        %469 = vset.pattern.permute.xlu0 0
        %470 = vperm.xlu0 %469, %v427
        %v471 = vpop.permute.xlu0 %470
        %472 = vset.pattern.permute.xlu0 0
        %473 = vperm.xlu0 %472, %v428
        %v474 = vpop.permute.xlu0 %473
        %475 = vset.pattern.permute.xlu0 0
        %476 = vperm.xlu0 %475, %v429
        %v477 = vpop.permute.xlu0 %476
        %478 = vset.pattern.permute.xlu0 0
        %479 = vperm.xlu0 %478, %v430
        %v480 = vpop.permute.xlu0 %479
        %481 = vset.pattern.permute.xlu0 0
        %482 = vperm.xlu0 %481, %v431
        %v483 = vpop.permute.xlu0 %482
        %484 = vset.pattern.permute.xlu0 0
        %485 = vperm.xlu0 %484, %v432
        %v486 = vpop.permute.xlu0 %485
        %487 = vset.pattern.permute.xlu0 0
        %488 = vperm.xlu0 %487, %v433
        %v489 = vpop.permute.xlu0 %488
        %490 = vset.pattern.permute.xlu0 0
        %491 = vperm.xlu0 %490, %v434
        %v492 = vpop.permute.xlu0 %491
        %493 = vset.pattern.permute.xlu0 0
        %494 = vperm.xlu0 %493, %v435
        %v495 = vpop.permute.xlu0 %494
        %496 = vset.pattern.permute.xlu0 0
        %497 = vperm.xlu0 %496, %v436
        %v498 = vpop.permute.xlu0 %497
        %499 = vset.pattern.permute.xlu0 0
        %500 = vperm.xlu0 %499, %v437
        %v501 = vpop.permute.xlu0 %500
        %502 = vset.pattern.permute.xlu0 0
        %503 = vperm.xlu0 %502, %v438
        %v504 = vpop.permute.xlu0 %503
        %505 = vset.pattern.permute.xlu0 0
        %506 = vperm.xlu0 %505, %v439
        %v507 = vpop.permute.xlu0 %506
        %508 = vset.pattern.permute.xlu0 0
        %509 = vperm.xlu0 %508, %v440
        %v510 = vpop.permute.xlu0 %509
        %511 = vset.pattern.permute.xlu0 0
        %512 = vperm.xlu0 %511, %v441
        %v513 = vpop.permute.xlu0 %512
        %514 = vset.pattern.permute.xlu0 0
        %515 = vperm.xlu0 %514, %v442
        %v516 = vpop.permute.xlu0 %515
        %517 = vset.pattern.permute.xlu0 0
        %518 = vperm.xlu0 %517, %v443
        %v519 = vpop.permute.xlu0 %518
        %520 = vset.pattern.permute.xlu0 0
        %521 = vperm.xlu0 %520, %v444
        %v522 = vpop.permute.xlu0 %521
        %523 = vset.pattern.permute.xlu0 0
        %524 = vperm.xlu0 %523, %v445
        %v525 = vpop.permute.xlu0 %524
        %526 = vset.pattern.permute.xlu0 0
        %527 = vperm.xlu0 %526, %v446
        %v528 = vpop.permute.xlu0 %527
        %529 = vset.pattern.permute.xlu0 0
        %530 = vperm.xlu0 %529, %v447
        %v531 = vpop.permute.xlu0 %530
        %532 = vset.pattern.permute.xlu0 0
        %533 = vperm.xlu0 %532, %v448
        %v534 = vpop.permute.xlu0 %533
        %535 = vset.pattern.permute.xlu0 0
        %536 = vperm.xlu0 %535, %v449
        %v537 = vpop.permute.xlu0 %536
        %538 = vset.pattern.permute.xlu0 0
        %539 = vperm.xlu0 %538, %v450
        %v540 = vpop.permute.xlu0 %539
        %541 = vset.pattern.permute.xlu0 0
        %542 = vperm.xlu0 %541, %v451
        %v543 = vpop.permute.xlu0 %542
        %544 = vset.pattern.permute.xlu0 0
        %545 = vperm.xlu0 %544, %v452
        %v546 = vpop.permute.xlu0 %545
        %547 = vset.pattern.permute.xlu0 0
        %548 = vperm.xlu0 %547, %v453
        %v549 = vpop.permute.xlu0 %548
        %550 = vset.pattern.permute.xlu0 0
        %551 = vperm.xlu0 %550, %v454
        %v552 = vpop.permute.xlu0 %551
        %vm553 = vcmp.eq.s32.totalorder %v459, %v456
        %vm554 = vcmp.eq.s32.totalorder %v462, %v456
        %vm555 = vcmp.eq.s32.totalorder %v465, %v456
        %vm556 = vcmp.eq.s32.totalorder %v468, %v456
        %vm557 = vcmp.eq.s32.totalorder %v471, %v456
        %vm558 = vcmp.eq.s32.totalorder %v474, %v456
        %vm559 = vcmp.eq.s32.totalorder %v477, %v456
        %vm560 = vcmp.eq.s32.totalorder %v480, %v456
        %vm561 = vcmp.eq.s32.totalorder %v483, %v456
        %vm562 = vcmp.eq.s32.totalorder %v486, %v456
        %vm563 = vcmp.eq.s32.totalorder %v489, %v456
        %vm564 = vcmp.eq.s32.totalorder %v492, %v456
        %vm565 = vcmp.eq.s32.totalorder %v495, %v456
        %vm566 = vcmp.eq.s32.totalorder %v498, %v456
        %vm567 = vcmp.eq.s32.totalorder %v501, %v456
        %vm568 = vcmp.eq.s32.totalorder %v504, %v456
        %vm569 = vcmp.eq.s32.totalorder %v507, %v456
        %vm570 = vcmp.eq.s32.totalorder %v510, %v456
        %vm571 = vcmp.eq.s32.totalorder %v513, %v456
        %vm572 = vcmp.eq.s32.totalorder %v516, %v456
        %vm573 = vcmp.eq.s32.totalorder %v519, %v456
        %vm574 = vcmp.eq.s32.totalorder %v522, %v456
        %vm575 = vcmp.eq.s32.totalorder %v525, %v456
        %vm576 = vcmp.eq.s32.totalorder %v528, %v456
        %vm577 = vcmp.eq.s32.totalorder %v531, %v456
        %vm578 = vcmp.eq.s32.totalorder %v534, %v456
        %vm579 = vcmp.eq.s32.totalorder %v537, %v456
        %vm580 = vcmp.eq.s32.totalorder %v540, %v456
        %vm581 = vcmp.eq.s32.totalorder %v543, %v456
        %vm582 = vcmp.eq.s32.totalorder %v546, %v456
        %vm583 = vcmp.eq.s32.totalorder %v549, %v456
        %vm584 = vcmp.eq.s32.totalorder %v552, %v456
        %v585 = vsel %vm553, 1, 0
        %v586 = vsel %vm554, 1, 0
        %v587 = vsel %vm555, 1, 0
        %v588 = vsel %vm556, 1, 0
        %v589 = vsel %vm557, 1, 0
        %v590 = vsel %vm558, 1, 0
        %v591 = vsel %vm559, 1, 0
        %v592 = vsel %vm560, 1, 0
        %v593 = vsel %vm561, 1, 0
        %v594 = vsel %vm562, 1, 0
        %v595 = vsel %vm563, 1, 0
        %v596 = vsel %vm564, 1, 0
        %v597 = vsel %vm565, 1, 0
        %v598 = vsel %vm566, 1, 0
        %v599 = vsel %vm567, 1, 0
        %v600 = vsel %vm568, 1, 0
        %v601 = vsel %vm569, 1, 0
        %v602 = vsel %vm570, 1, 0
        %v603 = vsel %vm571, 1, 0
        %v604 = vsel %vm572, 1, 0
        %v605 = vsel %vm573, 1, 0
        %v606 = vsel %vm574, 1, 0
        %v607 = vsel %vm575, 1, 0
        %v608 = vsel %vm576, 1, 0
        %v609 = vsel %vm577, 1, 0
        %v610 = vsel %vm578, 1, 0
        %v611 = vsel %vm579, 1, 0
        %v612 = vsel %vm580, 1, 0
        %v613 = vsel %vm581, 1, 0
        %v614 = vsel %vm582, 1, 0
        %v615 = vsel %vm583, 1, 0
        %v616 = vsel %vm584, 1, 0
        %v617 = vcvt.s32.f32 %v585
        %v618 = vcvt.s32.f32 %v586
        %v619 = vcvt.s32.f32 %v587
        %v620 = vcvt.s32.f32 %v588
        %v621 = vcvt.s32.f32 %v589
        %v622 = vcvt.s32.f32 %v590
        %v623 = vcvt.s32.f32 %v591
        %v624 = vcvt.s32.f32 %v592
        %v625 = vcvt.s32.f32 %v593
        %v626 = vcvt.s32.f32 %v594
        %v627 = vcvt.s32.f32 %v595
        %v628 = vcvt.s32.f32 %v596
        %v629 = vcvt.s32.f32 %v597
        %v630 = vcvt.s32.f32 %v598
        %v631 = vcvt.s32.f32 %v599
        %v632 = vcvt.s32.f32 %v600
        %v633 = vcvt.s32.f32 %v601
        %v634 = vcvt.s32.f32 %v602
        %v635 = vcvt.s32.f32 %v603
        %v636 = vcvt.s32.f32 %v604
        %v637 = vcvt.s32.f32 %v605
        %v638 = vcvt.s32.f32 %v606
        %v639 = vcvt.s32.f32 %v607
        %v640 = vcvt.s32.f32 %v608
        %v641 = vcvt.s32.f32 %v609
        %v642 = vcvt.s32.f32 %v610
        %v643 = vcvt.s32.f32 %v611
        %v644 = vcvt.s32.f32 %v612
        %v645 = vcvt.s32.f32 %v613
        %v646 = vcvt.s32.f32 %v614
        %v647 = vcvt.s32.f32 %v615
        %v648 = vcvt.s32.f32 %v616
        %v649 = vpack.c.bf16 %v618, %v617
        %v650 = vpack.c.bf16 %v620, %v619
        %v651 = vpack.c.bf16 %v622, %v621
        %v652 = vpack.c.bf16 %v624, %v623
        %v653 = vpack.c.bf16 %v626, %v625
        %v654 = vpack.c.bf16 %v628, %v627
        %v655 = vpack.c.bf16 %v630, %v629
        %v656 = vpack.c.bf16 %v632, %v631
        %v657 = vpack.c.bf16 %v634, %v633
        %v658 = vpack.c.bf16 %v636, %v635
        %v659 = vpack.c.bf16 %v638, %v637
        %v660 = vpack.c.bf16 %v640, %v639
        %v661 = vpack.c.bf16 %v642, %v641
        %v662 = vpack.c.bf16 %v644, %v643
        %v663 = vpack.c.bf16 %v646, %v645
        %v664 = vpack.c.bf16 %v648, %v647
        %v665 = vld [vmem:[#allocation2] sm:$0xf]
        %v666 = vld [vmem:[#allocation2 + $0x4] sm:$0xf]
        %v667 = vld [vmem:[#allocation2 + $0x8] sm:$0xf]
        %v668 = vld [vmem:[#allocation2 + $0xc] sm:$0xf]
        %v669 = vld [vmem:[#allocation2 + $0x10] sm:$0xf]
        %v670 = vld [vmem:[#allocation2 + $0x14] sm:$0xf]
        %v671 = vld [vmem:[#allocation2 + $0x18] sm:$0xf]
        %v672 = vld [vmem:[#allocation2 + $0x1c] sm:$0xf]
        %v681 = vunpack.c.l.b16 %v665
        %v682 = vunpack.c.l.b16 %v666
        %v683 = vunpack.c.l.b16 %v667
        %v684 = vunpack.c.l.b16 %v668
        %v685 = vunpack.c.l.b16 %v669
        %v686 = vunpack.c.l.b16 %v670
        %v687 = vunpack.c.l.b16 %v671
        %v688 = vunpack.c.l.b16 %v672
        %v689 = vpack.c.b16 %v682, %v681
        %v690 = vpack.c.b16 %v684, %v683
        %v691 = vpack.c.b16 %v686, %v685
        %v692 = vpack.c.b16 %v688, %v687
        %vm697 = vcmask 523264
        %v699 = vsel %vm697, %v649, 0
        %v702 = vsel %vm697, %v650, 0
        %v705 = vsel %vm697, %v651, 0
        %v708 = vsel %vm697, %v652, 0
        %v711 = vsel %vm697, %v653, 0
        %v714 = vsel %vm697, %v654, 0
        %v717 = vsel %vm697, %v655, 0
        %v720 = vsel %vm697, %v656, 0
        %v723 = vsel %vm697, %v657, 0
        %v726 = vsel %vm697, %v658, 0
        %v729 = vsel %vm697, %v659, 0
        %v732 = vsel %vm697, %v660, 0
        %v735 = vsel %vm697, %v661, 0
        %v738 = vsel %vm697, %v662, 0
        %v741 = vsel %vm697, %v663, 0
        %v744 = vsel %vm697, %v664, 0
        %746 = vmatprep.subr.bf16.mxu0 0
        %747 = vmatpush1.bf16.msra.mxu0 0
        %748 = vmatprep.subr.bf16.mxu0 0
        %749 = vmatpush1.bf16.msra.mxu0 0
        %750 = vmatprep.subr.bf16.mxu0 0
        %751 = vmatpush1.bf16.msra.mxu0 0
        %752 = vmatprep.subr.bf16.mxu0 0
        %753 = vmatpush1.bf16.msra.mxu0 0
        %754 = vmatprep.subr.bf16.mxu0 0
        %755 = vmatpush1.bf16.msra.mxu0 %v692
        %756 = vmatprep.subr.bf16.mxu0 0
        %757 = vmatpush1.bf16.msra.mxu0 %v691
        %758 = vmatprep.subr.bf16.mxu0 0
        %759 = vmatpush1.bf16.msra.mxu0 %v690
        %760 = vmatprep.subr.bf16.mxu0 0
        %761 = vmatpush1.bf16.msra.mxu0 %v689
        %762 = vmatprep.subr.bf16.mxu0 0
        %763 = vmatpush2.bf16.msra.mxu0 0
        %764 = vmatprep.subr.bf16.mxu0 0
        %765 = vmatpush2.bf16.msra.mxu0 0
        %766 = vmatprep.subr.bf16.mxu0 0
        %767 = vmatpush2.bf16.msra.mxu0 0
        %768 = vmatprep.subr.bf16.mxu0 0
        %769 = vmatpush2.bf16.msra.mxu0 0
        %770 = vmatprep.subr.bf16.mxu0 0
        %771 = vmatpush2.bf16.msra.mxu0 0
        %772 = vmatprep.subr.bf16.mxu0 0
        %773 = vmatpush2.bf16.msra.mxu0 0
        %774 = vmatprep.subr.bf16.mxu0 0
        %775 = vmatpush2.bf16.msra.mxu0 0
        %776 = vmatprep.subr.bf16.mxu0 0
        %777 = vmatpush2.bf16.msra.mxu0 0
        %778 = vmatprep.mubr.bf16.mxu0 0
        %779 = vmatmul.mubr.bf16.gmra.mxu0 %v699
        %v780 = vpop.f32.mrf.mxu0
        %v781 = vadd.f32 0.0, %v780
        %v782 = vpop.f32.mrf.mxu0
        %v783 = vpop.f32.mrf.mxu0
        %v784 = vadd.f32 0.0, %v783
        %v785 = vpop.f32.mrf.mxu0
        %786 = vmatprep.mubr.bf16.mxu0 0
        %787 = vmatmul.mubr.bf16.gmra.mxu0 %v702
        %v788 = vpop.f32.mrf.mxu0
        %v789 = vadd.f32 0.0, %v788
        %v790 = vpop.f32.mrf.mxu0
        %v791 = vpop.f32.mrf.mxu0
        %v792 = vadd.f32 0.0, %v791
        %v793 = vpop.f32.mrf.mxu0
        %794 = vmatprep.mubr.bf16.mxu0 0
        %795 = vmatmul.mubr.bf16.gmra.mxu0 %v705
        %v796 = vpop.f32.mrf.mxu0
        %v797 = vadd.f32 0.0, %v796
        %v798 = vpop.f32.mrf.mxu0
        %v799 = vpop.f32.mrf.mxu0
        %v800 = vadd.f32 0.0, %v799
        %v801 = vpop.f32.mrf.mxu0
        %802 = vmatprep.mubr.bf16.mxu0 0
        %803 = vmatmul.mubr.bf16.gmra.mxu0 %v708
        %v804 = vpop.f32.mrf.mxu0
        %v805 = vadd.f32 0.0, %v804
        %v806 = vpop.f32.mrf.mxu0
        %v807 = vpop.f32.mrf.mxu0
        %v808 = vadd.f32 0.0, %v807
        %v809 = vpop.f32.mrf.mxu0
        %810 = vmatprep.mubr.bf16.mxu0 0
        %811 = vmatmul.mubr.bf16.gmra.mxu0 %v711
        %v812 = vpop.f32.mrf.mxu0
        %v813 = vadd.f32 0.0, %v812
        %v814 = vpop.f32.mrf.mxu0
        %v815 = vpop.f32.mrf.mxu0
        %v816 = vadd.f32 0.0, %v815
        %v817 = vpop.f32.mrf.mxu0
        %818 = vmatprep.mubr.bf16.mxu0 0
        %819 = vmatmul.mubr.bf16.gmra.mxu0 %v714
        %v820 = vpop.f32.mrf.mxu0
        %v821 = vadd.f32 0.0, %v820
        %v822 = vpop.f32.mrf.mxu0
        %v823 = vpop.f32.mrf.mxu0
        %v824 = vadd.f32 0.0, %v823
        %v825 = vpop.f32.mrf.mxu0
        %826 = vmatprep.mubr.bf16.mxu0 0
        %827 = vmatmul.mubr.bf16.gmra.mxu0 %v717
        %v828 = vpop.f32.mrf.mxu0
        %v829 = vadd.f32 0.0, %v828
        %v830 = vpop.f32.mrf.mxu0
        %v831 = vpop.f32.mrf.mxu0
        %v832 = vadd.f32 0.0, %v831
        %v833 = vpop.f32.mrf.mxu0
        %834 = vmatprep.mubr.bf16.mxu0 0
        %835 = vmatmul.mubr.bf16.gmra.mxu0 %v720
        %v836 = vpop.f32.mrf.mxu0
        %v837 = vadd.f32 0.0, %v836
        %v838 = vpop.f32.mrf.mxu0
        %v839 = vpop.f32.mrf.mxu0
        %v840 = vadd.f32 0.0, %v839
        %v841 = vpop.f32.mrf.mxu0
        %842 = vmatprep.mubr.bf16.mxu0 0
        %843 = vmatmul.mubr.bf16.gmra.mxu0 %v723
        %v844 = vpop.f32.mrf.mxu0
        %v845 = vadd.f32 0.0, %v844
        %v846 = vpop.f32.mrf.mxu0
        %v847 = vpop.f32.mrf.mxu0
        %v848 = vadd.f32 0.0, %v847
        %v849 = vpop.f32.mrf.mxu0
        %850 = vmatprep.mubr.bf16.mxu0 0
        %851 = vmatmul.mubr.bf16.gmra.mxu0 %v726
        %v852 = vpop.f32.mrf.mxu0
        %v853 = vadd.f32 0.0, %v852
        %v854 = vpop.f32.mrf.mxu0
        %v855 = vpop.f32.mrf.mxu0
        %v856 = vadd.f32 0.0, %v855
        %v857 = vpop.f32.mrf.mxu0
        %858 = vmatprep.mubr.bf16.mxu0 0
        %859 = vmatmul.mubr.bf16.gmra.mxu0 %v729
        %v860 = vpop.f32.mrf.mxu0
        %v861 = vadd.f32 0.0, %v860
        %v862 = vpop.f32.mrf.mxu0
        %v863 = vpop.f32.mrf.mxu0
        %v864 = vadd.f32 0.0, %v863
        %v865 = vpop.f32.mrf.mxu0
        %866 = vmatprep.mubr.bf16.mxu0 0
        %867 = vmatmul.mubr.bf16.gmra.mxu0 %v732
        %v868 = vpop.f32.mrf.mxu0
        %v869 = vadd.f32 0.0, %v868
        %v870 = vpop.f32.mrf.mxu0
        %v871 = vpop.f32.mrf.mxu0
        %v872 = vadd.f32 0.0, %v871
        %v873 = vpop.f32.mrf.mxu0
        %874 = vmatprep.mubr.bf16.mxu0 0
        %875 = vmatmul.mubr.bf16.gmra.mxu0 %v735
        %v876 = vpop.f32.mrf.mxu0
        %v877 = vadd.f32 0.0, %v876
        %v878 = vpop.f32.mrf.mxu0
        %v879 = vpop.f32.mrf.mxu0
        %v880 = vadd.f32 0.0, %v879
        %v881 = vpop.f32.mrf.mxu0
        %882 = vmatprep.mubr.bf16.mxu0 0
        %883 = vmatmul.mubr.bf16.gmra.mxu0 %v738
        %v884 = vpop.f32.mrf.mxu0
        %v885 = vadd.f32 0.0, %v884
        %v886 = vpop.f32.mrf.mxu0
        %v887 = vpop.f32.mrf.mxu0
        %v888 = vadd.f32 0.0, %v887
        %v889 = vpop.f32.mrf.mxu0
        %890 = vmatprep.mubr.bf16.mxu0 0
        %891 = vmatmul.mubr.bf16.gmra.mxu0 %v741
        %v892 = vpop.f32.mrf.mxu0
        %v893 = vadd.f32 0.0, %v892
        %v894 = vpop.f32.mrf.mxu0
        %v895 = vpop.f32.mrf.mxu0
        %v896 = vadd.f32 0.0, %v895
        %v897 = vpop.f32.mrf.mxu0
        %898 = vmatprep.mubr.bf16.mxu0 0
        %899 = vmatmul.mubr.bf16.gmra.mxu0 %v744
        %v900 = vpop.f32.mrf.mxu0
        %v901 = vadd.f32 0.0, %v900
        %v902 = vpop.f32.mrf.mxu0
        %v903 = vpop.f32.mrf.mxu0
        %v904 = vadd.f32 0.0, %v903
        %v905 = vpop.f32.mrf.mxu0
        %906 = vdwg.mxu0
        %923 = vrot.lane.b32.xlu0 %v781, 96
        %v924 = vpop.permute.xlu0 %923
        %925 = vrot.lane.b32.xlu0 %v784, 96
        %v926 = vpop.permute.xlu0 %925
        %927 = vrot.lane.b32.xlu0 %v789, 96
        %v928 = vpop.permute.xlu0 %927
        %929 = vrot.lane.b32.xlu0 %v792, 96
        %v930 = vpop.permute.xlu0 %929
        %931 = vrot.lane.b32.xlu0 %v797, 96
        %v932 = vpop.permute.xlu0 %931
        %933 = vrot.lane.b32.xlu0 %v800, 96
        %v934 = vpop.permute.xlu0 %933
        %935 = vrot.lane.b32.xlu0 %v805, 96
        %v936 = vpop.permute.xlu0 %935
        %937 = vrot.lane.b32.xlu0 %v808, 96
        %v938 = vpop.permute.xlu0 %937
        %939 = vrot.lane.b32.xlu0 %v813, 96
        %v940 = vpop.permute.xlu0 %939
        %941 = vrot.lane.b32.xlu0 %v816, 96
        %v942 = vpop.permute.xlu0 %941
        %943 = vrot.lane.b32.xlu0 %v821, 96
        %v944 = vpop.permute.xlu0 %943
        %945 = vrot.lane.b32.xlu0 %v824, 96
        %v946 = vpop.permute.xlu0 %945
        %947 = vrot.lane.b32.xlu0 %v829, 96
        %v948 = vpop.permute.xlu0 %947
        %949 = vrot.lane.b32.xlu0 %v832, 96
        %v950 = vpop.permute.xlu0 %949
        %951 = vrot.lane.b32.xlu0 %v837, 96
        %v952 = vpop.permute.xlu0 %951
        %953 = vrot.lane.b32.xlu0 %v840, 96
        %v954 = vpop.permute.xlu0 %953
        %v971 = vpack.c.bf16 %v784, %v781
        %v972 = vpack.c.bf16 %v792, %v789
        %v973 = vpack.c.bf16 %v800, %v797
        %v974 = vpack.c.bf16 %v808, %v805
        %v975 = vpack.c.bf16 %v816, %v813
        %v976 = vpack.c.bf16 %v824, %v821
        %v977 = vpack.c.bf16 %v832, %v829
        %v978 = vpack.c.bf16 %v840, %v837
        %v979 = vpack.c.bf16 %v926, %v924
        %v980 = vpack.c.bf16 %v930, %v928
        %v981 = vpack.c.bf16 %v934, %v932
        %v982 = vpack.c.bf16 %v938, %v936
        %v983 = vpack.c.bf16 %v942, %v940
        %v984 = vpack.c.bf16 %v946, %v944
        %v985 = vpack.c.bf16 %v950, %v948
        %v986 = vpack.c.bf16 %v954, %v952
        %vm987 = vcmask 261120
        %v990 = vsel %vm987, %v971, 1065369472
        %v993 = vsel %vm987, %v972, 1065369472
        %v996 = vsel %vm987, %v973, 1065369472
        %v999 = vsel %vm987, %v974, 1065369472
        %v1002 = vsel %vm987, %v975, 1065369472
        %v1005 = vsel %vm987, %v976, 1065369472
        %v1008 = vsel %vm987, %v977, 1065369472
        %v1011 = vsel %vm987, %v978, 1065369472
        %v1014 = vsel %vm987, %v979, 1065369472
        %v1017 = vsel %vm987, %v980, 1065369472
        %v1020 = vsel %vm987, %v981, 1065369472
        %v1023 = vsel %vm987, %v982, 1065369472
        %v1026 = vsel %vm987, %v983, 1065369472
        %v1029 = vsel %vm987, %v984, 1065369472
        %v1032 = vsel %vm987, %v985, 1065369472
        %v1035 = vsel %vm987, %v986, 1065369472
        %v1037 = vld [vmem:[%s410] sm:$0xff]
        %v1038 = vld [vmem:[%s410 + $0x8] sm:$0xff]
        %v1039 = vld [vmem:[%s410 + $0x10] sm:$0xff]
        %v1040 = vld [vmem:[%s410 + $0x18] sm:$0xff]
        %v1041 = vld [vmem:[%s410 + $0x20] sm:$0xff]
        %v1042 = vld [vmem:[%s410 + $0x28] sm:$0xff]
        %v1043 = vld [vmem:[%s410 + $0x30] sm:$0xff]
        %v1044 = vld [vmem:[%s410 + $0x38] sm:$0xff]
        %v1045 = vld [vmem:[%s410 + $0x40] sm:$0xff]
        %v1046 = vld [vmem:[%s410 + $0x48] sm:$0xff]
        %v1047 = vld [vmem:[%s410 + $0x50] sm:$0xff]
        %v1048 = vld [vmem:[%s410 + $0x58] sm:$0xff]
        %v1049 = vld [vmem:[%s410 + $0x60] sm:$0xff]
        %v1050 = vld [vmem:[%s410 + $0x68] sm:$0xff]
        %v1051 = vld [vmem:[%s410 + $0x70] sm:$0xff]
        %v1052 = vld [vmem:[%s410 + $0x78] sm:$0xff]
        %v1069 = vunpack.c.l.b16 %v1037
        %v1070 = vunpack.c.h.b16 %v1037
        %v1071 = vunpack.c.l.b16 %v1038
        %v1072 = vunpack.c.h.b16 %v1038
        %v1073 = vunpack.c.l.b16 %v1039
        %v1074 = vunpack.c.h.b16 %v1039
        %v1075 = vunpack.c.l.b16 %v1040
        %v1076 = vunpack.c.h.b16 %v1040
        %v1077 = vunpack.c.l.b16 %v1041
        %v1078 = vunpack.c.h.b16 %v1041
        %v1079 = vunpack.c.l.b16 %v1042
        %v1080 = vunpack.c.h.b16 %v1042
        %v1081 = vunpack.c.l.b16 %v1043
        %v1082 = vunpack.c.h.b16 %v1043
        %v1083 = vunpack.c.l.b16 %v1044
        %v1084 = vunpack.c.h.b16 %v1044
        %v1085 = vunpack.c.l.b16 %v1045
        %v1086 = vunpack.c.h.b16 %v1045
        %v1087 = vunpack.c.l.b16 %v1046
        %v1088 = vunpack.c.h.b16 %v1046
        %v1089 = vunpack.c.l.b16 %v1047
        %v1090 = vunpack.c.h.b16 %v1047
        %v1091 = vunpack.c.l.b16 %v1048
        %v1092 = vunpack.c.h.b16 %v1048
        %v1093 = vunpack.c.l.b16 %v1049
        %v1094 = vunpack.c.h.b16 %v1049
        %v1095 = vunpack.c.l.b16 %v1050
        %v1096 = vunpack.c.h.b16 %v1050
        %v1097 = vunpack.c.l.b16 %v1051
        %v1098 = vunpack.c.h.b16 %v1051
        %v1099 = vunpack.c.l.b16 %v1052
        %v1100 = vunpack.c.h.b16 %v1052
        %v1101 = vpack.c.b16 %v1071, %v1069
        %v1102 = vpack.c.b16 %v1072, %v1070
        %v1103 = vpack.c.b16 %v1075, %v1073
        %v1104 = vpack.c.b16 %v1076, %v1074
        %v1105 = vpack.c.b16 %v1079, %v1077
        %v1106 = vpack.c.b16 %v1080, %v1078
        %v1107 = vpack.c.b16 %v1083, %v1081
        %v1108 = vpack.c.b16 %v1084, %v1082
        %v1109 = vpack.c.b16 %v1087, %v1085
        %v1110 = vpack.c.b16 %v1088, %v1086
        %v1111 = vpack.c.b16 %v1091, %v1089
        %v1112 = vpack.c.b16 %v1092, %v1090
        %v1113 = vpack.c.b16 %v1095, %v1093
        %v1114 = vpack.c.b16 %v1096, %v1094
        %v1115 = vpack.c.b16 %v1099, %v1097
        %v1116 = vpack.c.b16 %v1100, %v1098
        %1133 = vmatprep.subr.bf16.mxu0 0
        %1134 = vmatpush1.bf16.msra.mxu0 %v1011
        %1135 = vmatprep.subr.bf16.mxu0 0
        %1136 = vmatpush1.bf16.msra.mxu0 %v1008
        %1137 = vmatprep.subr.bf16.mxu0 0
        %1138 = vmatpush1.bf16.msra.mxu0 %v1005
        %1139 = vmatprep.subr.bf16.mxu0 0
        %1140 = vmatpush1.bf16.msra.mxu0 %v1002
        %1141 = vmatprep.subr.bf16.mxu0 0
        %1142 = vmatpush1.bf16.msra.mxu0 %v999
        %1143 = vmatprep.subr.bf16.mxu0 0
        %1144 = vmatpush1.bf16.msra.mxu0 %v996
        %1145 = vmatprep.subr.bf16.mxu0 0
        %1146 = vmatpush1.bf16.msra.mxu0 %v993
        %1147 = vmatprep.subr.bf16.mxu0 0
        %1148 = vmatpush1.bf16.msra.mxu0 %v990
        %1149 = vmatprep.subr.bf16.mxu0 0
        %1150 = vmatpush2.bf16.msra.mxu0 %v1035
        %1151 = vmatprep.subr.bf16.mxu0 0
        %1152 = vmatpush2.bf16.msra.mxu0 %v1032
        %1153 = vmatprep.subr.bf16.mxu0 0
        %1154 = vmatpush2.bf16.msra.mxu0 %v1029
        %1155 = vmatprep.subr.bf16.mxu0 0
        %1156 = vmatpush2.bf16.msra.mxu0 %v1026
        %1157 = vmatprep.subr.bf16.mxu0 0
        %1158 = vmatpush2.bf16.msra.mxu0 %v1023
        %1159 = vmatprep.subr.bf16.mxu0 0
        %1160 = vmatpush2.bf16.msra.mxu0 %v1020
        %1161 = vmatprep.subr.bf16.mxu0 0
        %1162 = vmatpush2.bf16.msra.mxu0 %v1017
        %1163 = vmatprep.subr.bf16.mxu0 0
        %1164 = vmatpush2.bf16.msra.mxu0 %v1014
        %1165 = vmatprep.mubr.bf16.mxu0 %v1102
        %1166 = vmatmul.mubr.bf16.gmra.mxu0 %v1101
        %v1167 = vpop.f32.mrf.mxu0
        %v1168 = vadd.f32 0.0, %v1167
        %v1169 = vpop.f32.mrf.mxu0
        %v1170 = vpop.f32.mrf.mxu0
        %v1171 = vadd.f32 0.0, %v1170
        %v1172 = vpop.f32.mrf.mxu0
        %1173 = vmatprep.mubr.bf16.mxu0 %v1104
        %1174 = vmatmul.mubr.bf16.gmra.mxu0 %v1103
        %v1175 = vpop.f32.mrf.mxu0
        %v1176 = vadd.f32 0.0, %v1175
        %v1177 = vpop.f32.mrf.mxu0
        %v1178 = vpop.f32.mrf.mxu0
        %v1179 = vadd.f32 0.0, %v1178
        %v1180 = vpop.f32.mrf.mxu0
        %1181 = vmatprep.mubr.bf16.mxu0 %v1106
        %1182 = vmatmul.mubr.bf16.gmra.mxu0 %v1105
        %v1183 = vpop.f32.mrf.mxu0
        %v1184 = vadd.f32 0.0, %v1183
        %v1185 = vpop.f32.mrf.mxu0
        %v1186 = vpop.f32.mrf.mxu0
        %v1187 = vadd.f32 0.0, %v1186
        %v1188 = vpop.f32.mrf.mxu0
        %1189 = vmatprep.mubr.bf16.mxu0 %v1108
        %1190 = vmatmul.mubr.bf16.gmra.mxu0 %v1107
        %v1191 = vpop.f32.mrf.mxu0
        %v1192 = vadd.f32 0.0, %v1191
        %v1193 = vpop.f32.mrf.mxu0
        %v1194 = vpop.f32.mrf.mxu0
        %v1195 = vadd.f32 0.0, %v1194
        %v1196 = vpop.f32.mrf.mxu0
        %1197 = vmatprep.mubr.bf16.mxu0 %v1110
        %1198 = vmatmul.mubr.bf16.gmra.mxu0 %v1109
        %v1199 = vpop.f32.mrf.mxu0
        %v1200 = vadd.f32 0.0, %v1199
        %v1201 = vpop.f32.mrf.mxu0
        %v1202 = vpop.f32.mrf.mxu0
        %v1203 = vadd.f32 0.0, %v1202
        %v1204 = vpop.f32.mrf.mxu0
        %1205 = vmatprep.mubr.bf16.mxu0 %v1112
        %1206 = vmatmul.mubr.bf16.gmra.mxu0 %v1111
        %v1207 = vpop.f32.mrf.mxu0
        %v1208 = vadd.f32 0.0, %v1207
        %v1209 = vpop.f32.mrf.mxu0
        %v1210 = vpop.f32.mrf.mxu0
        %v1211 = vadd.f32 0.0, %v1210
        %v1212 = vpop.f32.mrf.mxu0
        %1213 = vmatprep.mubr.bf16.mxu0 %v1114
        %1214 = vmatmul.mubr.bf16.gmra.mxu0 %v1113
        %v1215 = vpop.f32.mrf.mxu0
        %v1216 = vadd.f32 0.0, %v1215
        %v1217 = vpop.f32.mrf.mxu0
        %v1218 = vpop.f32.mrf.mxu0
        %v1219 = vadd.f32 0.0, %v1218
        %v1220 = vpop.f32.mrf.mxu0
        %1221 = vmatprep.mubr.bf16.mxu0 %v1116
        %1222 = vmatmul.mubr.bf16.gmra.mxu0 %v1115
        %v1223 = vpop.f32.mrf.mxu0
        %v1224 = vadd.f32 0.0, %v1223
        %v1225 = vpop.f32.mrf.mxu0
        %v1226 = vpop.f32.mrf.mxu0
        %v1227 = vadd.f32 0.0, %v1226
        %v1228 = vpop.f32.mrf.mxu0
        %1229 = vdwg.mxu0
        %1246 = vrot.lane.b32.xlu0 %v845, 96
        %v1247 = vpop.permute.xlu0 %1246
        %1248 = vrot.lane.b32.xlu0 %v848, 96
        %v1249 = vpop.permute.xlu0 %1248
        %1250 = vrot.lane.b32.xlu0 %v853, 96
        %v1251 = vpop.permute.xlu0 %1250
        %1252 = vrot.lane.b32.xlu0 %v856, 96
        %v1253 = vpop.permute.xlu0 %1252
        %1254 = vrot.lane.b32.xlu0 %v861, 96
        %v1255 = vpop.permute.xlu0 %1254
        %1256 = vrot.lane.b32.xlu0 %v864, 96
        %v1257 = vpop.permute.xlu0 %1256
        %1258 = vrot.lane.b32.xlu0 %v869, 96
        %v1259 = vpop.permute.xlu0 %1258
        %1260 = vrot.lane.b32.xlu0 %v872, 96
        %v1261 = vpop.permute.xlu0 %1260
        %1262 = vrot.lane.b32.xlu0 %v877, 96
        %v1263 = vpop.permute.xlu0 %1262
        %1264 = vrot.lane.b32.xlu0 %v880, 96
        %v1265 = vpop.permute.xlu0 %1264
        %1266 = vrot.lane.b32.xlu0 %v885, 96
        %v1267 = vpop.permute.xlu0 %1266
        %1268 = vrot.lane.b32.xlu0 %v888, 96
        %v1269 = vpop.permute.xlu0 %1268
        %1270 = vrot.lane.b32.xlu0 %v893, 96
        %v1271 = vpop.permute.xlu0 %1270
        %1272 = vrot.lane.b32.xlu0 %v896, 96
        %v1273 = vpop.permute.xlu0 %1272
        %1274 = vrot.lane.b32.xlu0 %v901, 96
        %v1275 = vpop.permute.xlu0 %1274
        %1276 = vrot.lane.b32.xlu0 %v904, 96
        %v1277 = vpop.permute.xlu0 %1276
        %v1294 = vpack.c.bf16 %v848, %v845
        %v1295 = vpack.c.bf16 %v856, %v853
        %v1296 = vpack.c.bf16 %v864, %v861
        %v1297 = vpack.c.bf16 %v872, %v869
        %v1298 = vpack.c.bf16 %v880, %v877
        %v1299 = vpack.c.bf16 %v888, %v885
        %v1300 = vpack.c.bf16 %v896, %v893
        %v1301 = vpack.c.bf16 %v904, %v901
        %v1302 = vpack.c.bf16 %v1249, %v1247
        %v1303 = vpack.c.bf16 %v1253, %v1251
        %v1304 = vpack.c.bf16 %v1257, %v1255
        %v1305 = vpack.c.bf16 %v1261, %v1259
        %v1306 = vpack.c.bf16 %v1265, %v1263
        %v1307 = vpack.c.bf16 %v1269, %v1267
        %v1308 = vpack.c.bf16 %v1273, %v1271
        %v1309 = vpack.c.bf16 %v1277, %v1275
        %v1311 = vsel %vm987, %v1294, 1065369472
        %v1314 = vsel %vm987, %v1295, 1065369472
        %v1317 = vsel %vm987, %v1296, 1065369472
        %v1320 = vsel %vm987, %v1297, 1065369472
        %v1323 = vsel %vm987, %v1298, 1065369472
        %v1326 = vsel %vm987, %v1299, 1065369472
        %v1329 = vsel %vm987, %v1300, 1065369472
        %v1332 = vsel %vm987, %v1301, 1065369472
        %v1335 = vsel %vm987, %v1302, 1065369472
        %v1338 = vsel %vm987, %v1303, 1065369472
        %v1341 = vsel %vm987, %v1304, 1065369472
        %v1344 = vsel %vm987, %v1305, 1065369472
        %v1347 = vsel %vm987, %v1306, 1065369472
        %v1350 = vsel %vm987, %v1307, 1065369472
        %v1353 = vsel %vm987, %v1308, 1065369472
        %v1356 = vsel %vm987, %v1309, 1065369472
        %v1358 = vld [vmem:[%s420] sm:$0xff]
        %v1359 = vld [vmem:[%s420 + $0x8] sm:$0xff]
        %v1360 = vld [vmem:[%s420 + $0x10] sm:$0xff]
        %v1361 = vld [vmem:[%s420 + $0x18] sm:$0xff]
        %v1362 = vld [vmem:[%s420 + $0x20] sm:$0xff]
        %v1363 = vld [vmem:[%s420 + $0x28] sm:$0xff]
        %v1364 = vld [vmem:[%s420 + $0x30] sm:$0xff]
        %v1365 = vld [vmem:[%s420 + $0x38] sm:$0xff]
        %v1366 = vld [vmem:[%s420 + $0x40] sm:$0xff]
        %v1367 = vld [vmem:[%s420 + $0x48] sm:$0xff]
        %v1368 = vld [vmem:[%s420 + $0x50] sm:$0xff]
        %v1369 = vld [vmem:[%s420 + $0x58] sm:$0xff]
        %v1370 = vld [vmem:[%s420 + $0x60] sm:$0xff]
        %v1371 = vld [vmem:[%s420 + $0x68] sm:$0xff]
        %v1372 = vld [vmem:[%s420 + $0x70] sm:$0xff]
        %v1373 = vld [vmem:[%s420 + $0x78] sm:$0xff]
        %v1390 = vunpack.c.l.b16 %v1358
        %v1391 = vunpack.c.h.b16 %v1358
        %v1392 = vunpack.c.l.b16 %v1359
        %v1393 = vunpack.c.h.b16 %v1359
        %v1394 = vunpack.c.l.b16 %v1360
        %v1395 = vunpack.c.h.b16 %v1360
        %v1396 = vunpack.c.l.b16 %v1361
        %v1397 = vunpack.c.h.b16 %v1361
        %v1398 = vunpack.c.l.b16 %v1362
        %v1399 = vunpack.c.h.b16 %v1362
        %v1400 = vunpack.c.l.b16 %v1363
        %v1401 = vunpack.c.h.b16 %v1363
        %v1402 = vunpack.c.l.b16 %v1364
        %v1403 = vunpack.c.h.b16 %v1364
        %v1404 = vunpack.c.l.b16 %v1365
        %v1405 = vunpack.c.h.b16 %v1365
        %v1406 = vunpack.c.l.b16 %v1366
        %v1407 = vunpack.c.h.b16 %v1366
        %v1408 = vunpack.c.l.b16 %v1367
        %v1409 = vunpack.c.h.b16 %v1367
        %v1410 = vunpack.c.l.b16 %v1368
        %v1411 = vunpack.c.h.b16 %v1368
        %v1412 = vunpack.c.l.b16 %v1369
        %v1413 = vunpack.c.h.b16 %v1369
        %v1414 = vunpack.c.l.b16 %v1370
        %v1415 = vunpack.c.h.b16 %v1370
        %v1416 = vunpack.c.l.b16 %v1371
        %v1417 = vunpack.c.h.b16 %v1371
        %v1418 = vunpack.c.l.b16 %v1372
        %v1419 = vunpack.c.h.b16 %v1372
        %v1420 = vunpack.c.l.b16 %v1373
        %v1421 = vunpack.c.h.b16 %v1373
        %v1422 = vpack.c.b16 %v1392, %v1390
        %v1423 = vpack.c.b16 %v1393, %v1391
        %v1424 = vpack.c.b16 %v1396, %v1394
        %v1425 = vpack.c.b16 %v1397, %v1395
        %v1426 = vpack.c.b16 %v1400, %v1398
        %v1427 = vpack.c.b16 %v1401, %v1399
        %v1428 = vpack.c.b16 %v1404, %v1402
        %v1429 = vpack.c.b16 %v1405, %v1403
        %v1430 = vpack.c.b16 %v1408, %v1406
        %v1431 = vpack.c.b16 %v1409, %v1407
        %v1432 = vpack.c.b16 %v1412, %v1410
        %v1433 = vpack.c.b16 %v1413, %v1411
        %v1434 = vpack.c.b16 %v1416, %v1414
        %v1435 = vpack.c.b16 %v1417, %v1415
        %v1436 = vpack.c.b16 %v1420, %v1418
        %v1437 = vpack.c.b16 %v1421, %v1419
        %1454 = vmatprep.subr.bf16.mxu0 0
        %1455 = vmatpush1.bf16.msra.mxu0 %v1332
        %1456 = vmatprep.subr.bf16.mxu0 0
        %1457 = vmatpush1.bf16.msra.mxu0 %v1329
        %1458 = vmatprep.subr.bf16.mxu0 0
        %1459 = vmatpush1.bf16.msra.mxu0 %v1326
        %1460 = vmatprep.subr.bf16.mxu0 0
        %1461 = vmatpush1.bf16.msra.mxu0 %v1323
        %1462 = vmatprep.subr.bf16.mxu0 0
        %1463 = vmatpush1.bf16.msra.mxu0 %v1320
        %1464 = vmatprep.subr.bf16.mxu0 0
        %1465 = vmatpush1.bf16.msra.mxu0 %v1317
        %1466 = vmatprep.subr.bf16.mxu0 0
        %1467 = vmatpush1.bf16.msra.mxu0 %v1314
        %1468 = vmatprep.subr.bf16.mxu0 0
        %1469 = vmatpush1.bf16.msra.mxu0 %v1311
        %1470 = vmatprep.subr.bf16.mxu0 0
        %1471 = vmatpush2.bf16.msra.mxu0 %v1356
        %1472 = vmatprep.subr.bf16.mxu0 0
        %1473 = vmatpush2.bf16.msra.mxu0 %v1353
        %1474 = vmatprep.subr.bf16.mxu0 0
        %1475 = vmatpush2.bf16.msra.mxu0 %v1350
        %1476 = vmatprep.subr.bf16.mxu0 0
        %1477 = vmatpush2.bf16.msra.mxu0 %v1347
        %1478 = vmatprep.subr.bf16.mxu0 0
        %1479 = vmatpush2.bf16.msra.mxu0 %v1344
        %1480 = vmatprep.subr.bf16.mxu0 0
        %1481 = vmatpush2.bf16.msra.mxu0 %v1341
        %1482 = vmatprep.subr.bf16.mxu0 0
        %1483 = vmatpush2.bf16.msra.mxu0 %v1338
        %1484 = vmatprep.subr.bf16.mxu0 0
        %1485 = vmatpush2.bf16.msra.mxu0 %v1335
        %1486 = vmatprep.mubr.bf16.mxu0 %v1423
        %1487 = vmatmul.mubr.bf16.gmra.mxu0 %v1422
        %v1488 = vpop.f32.mrf.mxu0
        %v1489 = vadd.f32 0.0, %v1488
        %v1490 = vpop.f32.mrf.mxu0
        %v1491 = vpop.f32.mrf.mxu0
        %v1492 = vadd.f32 0.0, %v1491
        %v1493 = vpop.f32.mrf.mxu0
        %1494 = vmatprep.mubr.bf16.mxu0 %v1425
        %1495 = vmatmul.mubr.bf16.gmra.mxu0 %v1424
        %v1496 = vpop.f32.mrf.mxu0
        %v1497 = vadd.f32 0.0, %v1496
        %v1498 = vpop.f32.mrf.mxu0
        %v1499 = vpop.f32.mrf.mxu0
        %v1500 = vadd.f32 0.0, %v1499
        %v1501 = vpop.f32.mrf.mxu0
        %1502 = vmatprep.mubr.bf16.mxu0 %v1427
        %1503 = vmatmul.mubr.bf16.gmra.mxu0 %v1426
        %v1504 = vpop.f32.mrf.mxu0
        %v1505 = vadd.f32 0.0, %v1504
        %v1506 = vpop.f32.mrf.mxu0
        %v1507 = vpop.f32.mrf.mxu0
        %v1508 = vadd.f32 0.0, %v1507
        %v1509 = vpop.f32.mrf.mxu0
        %1510 = vmatprep.mubr.bf16.mxu0 %v1429
        %1511 = vmatmul.mubr.bf16.gmra.mxu0 %v1428
        %v1512 = vpop.f32.mrf.mxu0
        %v1513 = vadd.f32 0.0, %v1512
        %v1514 = vpop.f32.mrf.mxu0
        %v1515 = vpop.f32.mrf.mxu0
        %v1516 = vadd.f32 0.0, %v1515
        %v1517 = vpop.f32.mrf.mxu0
        %1518 = vmatprep.mubr.bf16.mxu0 %v1431
        %1519 = vmatmul.mubr.bf16.gmra.mxu0 %v1430
        %v1520 = vpop.f32.mrf.mxu0
        %v1521 = vadd.f32 0.0, %v1520
        %v1522 = vpop.f32.mrf.mxu0
        %v1523 = vpop.f32.mrf.mxu0
        %v1524 = vadd.f32 0.0, %v1523
        %v1525 = vpop.f32.mrf.mxu0
        %1526 = vmatprep.mubr.bf16.mxu0 %v1433
        %1527 = vmatmul.mubr.bf16.gmra.mxu0 %v1432
        %v1528 = vpop.f32.mrf.mxu0
        %v1529 = vadd.f32 0.0, %v1528
        %v1530 = vpop.f32.mrf.mxu0
        %v1531 = vpop.f32.mrf.mxu0
        %v1532 = vadd.f32 0.0, %v1531
        %v1533 = vpop.f32.mrf.mxu0
        %1534 = vmatprep.mubr.bf16.mxu0 %v1435
        %1535 = vmatmul.mubr.bf16.gmra.mxu0 %v1434
        %v1536 = vpop.f32.mrf.mxu0
        %v1537 = vadd.f32 0.0, %v1536
        %v1538 = vpop.f32.mrf.mxu0
        %v1539 = vpop.f32.mrf.mxu0
        %v1540 = vadd.f32 0.0, %v1539
        %v1541 = vpop.f32.mrf.mxu0
        %1542 = vmatprep.mubr.bf16.mxu0 %v1437
        %1543 = vmatmul.mubr.bf16.gmra.mxu0 %v1436
        %v1544 = vpop.f32.mrf.mxu0
        %v1545 = vadd.f32 0.0, %v1544
        %v1546 = vpop.f32.mrf.mxu0
        %v1547 = vpop.f32.mrf.mxu0
        %v1548 = vadd.f32 0.0, %v1547
        %v1549 = vpop.f32.mrf.mxu0
        %1550 = vdwg.mxu0
        %1551 = vrot.lane.b32.xlu0 %v781, 64
        %v1552 = vpop.permute.xlu0 %1551
        %1553 = vrot.lane.b32.xlu0 %v784, 64
        %v1554 = vpop.permute.xlu0 %1553
        %1555 = vrot.lane.b32.xlu0 %v789, 64
        %v1556 = vpop.permute.xlu0 %1555
        %1557 = vrot.lane.b32.xlu0 %v792, 64
        %v1558 = vpop.permute.xlu0 %1557
        %1559 = vrot.lane.b32.xlu0 %v797, 64
        %v1560 = vpop.permute.xlu0 %1559
        %1561 = vrot.lane.b32.xlu0 %v800, 64
        %v1562 = vpop.permute.xlu0 %1561
        %1563 = vrot.lane.b32.xlu0 %v805, 64
        %v1564 = vpop.permute.xlu0 %1563
        %1565 = vrot.lane.b32.xlu0 %v808, 64
        %v1566 = vpop.permute.xlu0 %1565
        %1567 = vrot.lane.b32.xlu0 %v813, 64
        %v1568 = vpop.permute.xlu0 %1567
        %1569 = vrot.lane.b32.xlu0 %v816, 64
        %v1570 = vpop.permute.xlu0 %1569
        %1571 = vrot.lane.b32.xlu0 %v821, 64
        %v1572 = vpop.permute.xlu0 %1571
        %1573 = vrot.lane.b32.xlu0 %v824, 64
        %v1574 = vpop.permute.xlu0 %1573
        %1575 = vrot.lane.b32.xlu0 %v829, 64
        %v1576 = vpop.permute.xlu0 %1575
        %1577 = vrot.lane.b32.xlu0 %v832, 64
        %v1578 = vpop.permute.xlu0 %1577
        %1579 = vrot.lane.b32.xlu0 %v837, 64
        %v1580 = vpop.permute.xlu0 %1579
        %1581 = vrot.lane.b32.xlu0 %v840, 64
        %v1582 = vpop.permute.xlu0 %1581
        %1583 = vrot.lane.b32.xlu0 %v845, 64
        %v1584 = vpop.permute.xlu0 %1583
        %1585 = vrot.lane.b32.xlu0 %v848, 64
        %v1586 = vpop.permute.xlu0 %1585
        %1587 = vrot.lane.b32.xlu0 %v853, 64
        %v1588 = vpop.permute.xlu0 %1587
        %1589 = vrot.lane.b32.xlu0 %v856, 64
        %v1590 = vpop.permute.xlu0 %1589
        %1591 = vrot.lane.b32.xlu0 %v861, 64
        %v1592 = vpop.permute.xlu0 %1591
        %1593 = vrot.lane.b32.xlu0 %v864, 64
        %v1594 = vpop.permute.xlu0 %1593
        %1595 = vrot.lane.b32.xlu0 %v869, 64
        %v1596 = vpop.permute.xlu0 %1595
        %1597 = vrot.lane.b32.xlu0 %v872, 64
        %v1598 = vpop.permute.xlu0 %1597
        %1599 = vrot.lane.b32.xlu0 %v877, 64
        %v1600 = vpop.permute.xlu0 %1599
        %1601 = vrot.lane.b32.xlu0 %v880, 64
        %v1602 = vpop.permute.xlu0 %1601
        %1603 = vrot.lane.b32.xlu0 %v885, 64
        %v1604 = vpop.permute.xlu0 %1603
        %1605 = vrot.lane.b32.xlu0 %v888, 64
        %v1606 = vpop.permute.xlu0 %1605
        %1607 = vrot.lane.b32.xlu0 %v893, 64
        %v1608 = vpop.permute.xlu0 %1607
        %1609 = vrot.lane.b32.xlu0 %v896, 64
        %v1610 = vpop.permute.xlu0 %1609
        %1611 = vrot.lane.b32.xlu0 %v901, 64
        %v1612 = vpop.permute.xlu0 %1611
        %1613 = vrot.lane.b32.xlu0 %v904, 64
        %v1614 = vpop.permute.xlu0 %1613
        %v1647 = vadd.f32 %v1168, %v1552
        %v1648 = vadd.f32 %v1171, %v1554
        %v1649 = vadd.f32 %v1176, %v1556
        %v1650 = vadd.f32 %v1179, %v1558
        %v1651 = vadd.f32 %v1184, %v1560
        %v1652 = vadd.f32 %v1187, %v1562
        %v1653 = vadd.f32 %v1192, %v1564
        %v1654 = vadd.f32 %v1195, %v1566
        %v1655 = vadd.f32 %v1200, %v1568
        %v1656 = vadd.f32 %v1203, %v1570
        %v1657 = vadd.f32 %v1208, %v1572
        %v1658 = vadd.f32 %v1211, %v1574
        %v1659 = vadd.f32 %v1216, %v1576
        %v1660 = vadd.f32 %v1219, %v1578
        %v1661 = vadd.f32 %v1224, %v1580
        %v1662 = vadd.f32 %v1227, %v1582
        %v1663 = vadd.f32 %v1489, %v1584
        %v1664 = vadd.f32 %v1492, %v1586
        %v1665 = vadd.f32 %v1497, %v1588
        %v1666 = vadd.f32 %v1500, %v1590
        %v1667 = vadd.f32 %v1505, %v1592
        %v1668 = vadd.f32 %v1508, %v1594
        %v1669 = vadd.f32 %v1513, %v1596
        %v1670 = vadd.f32 %v1516, %v1598
        %v1671 = vadd.f32 %v1521, %v1600
        %v1672 = vadd.f32 %v1524, %v1602
        %v1673 = vadd.f32 %v1529, %v1604
        %v1674 = vadd.f32 %v1532, %v1606
        %v1675 = vadd.f32 %v1537, %v1608
        %v1676 = vadd.f32 %v1540, %v1610
        %v1677 = vadd.f32 %v1545, %v1612
        %v1678 = vadd.f32 %v1548, %v1614
        %v1679 = vld [vmem:[%s6] sm:$0x1]
        %v1681 = vlaneseq
        %v1682 = vshrl.u32 %v1681, 7
        %v1683 = vsub.s32 0, %v1682
        %v1684 = vrot.slane %v1679, %v1683
        %v1686 = vadd.f32 %v1647, %v1684
        %v1687 = vadd.f32 %v1648, %v1684
        %v1688 = vadd.f32 %v1649, %v1684
        %v1689 = vadd.f32 %v1650, %v1684
        %v1690 = vadd.f32 %v1651, %v1684
        %v1691 = vadd.f32 %v1652, %v1684
        %v1692 = vadd.f32 %v1653, %v1684
        %v1693 = vadd.f32 %v1654, %v1684
        %v1694 = vadd.f32 %v1655, %v1684
        %v1695 = vadd.f32 %v1656, %v1684
        %v1696 = vadd.f32 %v1657, %v1684
        %v1697 = vadd.f32 %v1658, %v1684
        %v1698 = vadd.f32 %v1659, %v1684
        %v1699 = vadd.f32 %v1660, %v1684
        %v1700 = vadd.f32 %v1661, %v1684
        %v1701 = vadd.f32 %v1662, %v1684
        %v1702 = vadd.f32 %v1663, %v1684
        %v1703 = vadd.f32 %v1664, %v1684
        %v1704 = vadd.f32 %v1665, %v1684
        %v1705 = vadd.f32 %v1666, %v1684
        %v1706 = vadd.f32 %v1667, %v1684
        %v1707 = vadd.f32 %v1668, %v1684
        %v1708 = vadd.f32 %v1669, %v1684
        %v1709 = vadd.f32 %v1670, %v1684
        %v1710 = vadd.f32 %v1671, %v1684
        %v1711 = vadd.f32 %v1672, %v1684
        %v1712 = vadd.f32 %v1673, %v1684
        %v1713 = vadd.f32 %v1674, %v1684
        %v1714 = vadd.f32 %v1675, %v1684
        %v1715 = vadd.f32 %v1676, %v1684
        %v1716 = vadd.f32 %v1677, %v1684
        %v1717 = vadd.f32 %v1678, %v1684
        %v1718 = vmax.f32 %v1686, 0.0
        %v1719 = vmax.f32 %v1687, 0.0
        %v1720 = vmax.f32 %v1688, 0.0
        %v1721 = vmax.f32 %v1689, 0.0
        %v1722 = vmax.f32 %v1690, 0.0
        %v1723 = vmax.f32 %v1691, 0.0
        %v1724 = vmax.f32 %v1692, 0.0
        %v1725 = vmax.f32 %v1693, 0.0
        %v1726 = vmax.f32 %v1694, 0.0
        %v1727 = vmax.f32 %v1695, 0.0
        %v1728 = vmax.f32 %v1696, 0.0
        %v1729 = vmax.f32 %v1697, 0.0
        %v1730 = vmax.f32 %v1698, 0.0
        %v1731 = vmax.f32 %v1699, 0.0
        %v1732 = vmax.f32 %v1700, 0.0
        %v1733 = vmax.f32 %v1701, 0.0
        %v1734 = vmax.f32 %v1702, 0.0
        %v1735 = vmax.f32 %v1703, 0.0
        %v1736 = vmax.f32 %v1704, 0.0
        %v1737 = vmax.f32 %v1705, 0.0
        %v1738 = vmax.f32 %v1706, 0.0
        %v1739 = vmax.f32 %v1707, 0.0
        %v1740 = vmax.f32 %v1708, 0.0
        %v1741 = vmax.f32 %v1709, 0.0
        %v1742 = vmax.f32 %v1710, 0.0
        %v1743 = vmax.f32 %v1711, 0.0
        %v1744 = vmax.f32 %v1712, 0.0
        %v1745 = vmax.f32 %v1713, 0.0
        %v1746 = vmax.f32 %v1714, 0.0
        %v1747 = vmax.f32 %v1715, 0.0
        %v1748 = vmax.f32 %v1716, 0.0
        %v1749 = vmax.f32 %v1717, 0.0
        %vm1750 = vcmp.gt.f32.partialorder %v1168, 0.5
        %vm1751 = vcmp.gt.f32.partialorder %v1171, 0.5
        %vm1752 = vcmp.gt.f32.partialorder %v1176, 0.5
        %vm1753 = vcmp.gt.f32.partialorder %v1179, 0.5
        %vm1754 = vcmp.gt.f32.partialorder %v1184, 0.5
        %vm1755 = vcmp.gt.f32.partialorder %v1187, 0.5
        %vm1756 = vcmp.gt.f32.partialorder %v1192, 0.5
        %vm1757 = vcmp.gt.f32.partialorder %v1195, 0.5
        %vm1758 = vcmp.gt.f32.partialorder %v1200, 0.5
        %vm1759 = vcmp.gt.f32.partialorder %v1203, 0.5
        %vm1760 = vcmp.gt.f32.partialorder %v1208, 0.5
        %vm1761 = vcmp.gt.f32.partialorder %v1211, 0.5
        %vm1762 = vcmp.gt.f32.partialorder %v1216, 0.5
        %vm1763 = vcmp.gt.f32.partialorder %v1219, 0.5
        %vm1764 = vcmp.gt.f32.partialorder %v1224, 0.5
        %vm1765 = vcmp.gt.f32.partialorder %v1227, 0.5
        %vm1766 = vcmp.gt.f32.partialorder %v1489, 0.5
        %vm1767 = vcmp.gt.f32.partialorder %v1492, 0.5
        %vm1768 = vcmp.gt.f32.partialorder %v1497, 0.5
        %vm1769 = vcmp.gt.f32.partialorder %v1500, 0.5
        %vm1770 = vcmp.gt.f32.partialorder %v1505, 0.5
        %vm1771 = vcmp.gt.f32.partialorder %v1508, 0.5
        %vm1772 = vcmp.gt.f32.partialorder %v1513, 0.5
        %vm1773 = vcmp.gt.f32.partialorder %v1516, 0.5
        %vm1774 = vcmp.gt.f32.partialorder %v1521, 0.5
        %vm1775 = vcmp.gt.f32.partialorder %v1524, 0.5
        %vm1776 = vcmp.gt.f32.partialorder %v1529, 0.5
        %vm1777 = vcmp.gt.f32.partialorder %v1532, 0.5
        %vm1778 = vcmp.gt.f32.partialorder %v1537, 0.5
        %vm1779 = vcmp.gt.f32.partialorder %v1540, 0.5
        %vm1780 = vcmp.gt.f32.partialorder %v1545, 0.5
        %vm1781 = vcmp.gt.f32.partialorder %v1548, 0.5
        %v1782 = vsel %vm1750, 1, 0
        %v1783 = vsel %vm1751, 1, 0
        %v1784 = vsel %vm1752, 1, 0
        %v1785 = vsel %vm1753, 1, 0
        %v1786 = vsel %vm1754, 1, 0
        %v1787 = vsel %vm1755, 1, 0
        %v1788 = vsel %vm1756, 1, 0
        %v1789 = vsel %vm1757, 1, 0
        %v1790 = vsel %vm1758, 1, 0
        %v1791 = vsel %vm1759, 1, 0
        %v1792 = vsel %vm1760, 1, 0
        %v1793 = vsel %vm1761, 1, 0
        %v1794 = vsel %vm1762, 1, 0
        %v1795 = vsel %vm1763, 1, 0
        %v1796 = vsel %vm1764, 1, 0
        %v1797 = vsel %vm1765, 1, 0
        %v1798 = vsel %vm1766, 1, 0
        %v1799 = vsel %vm1767, 1, 0
        %v1800 = vsel %vm1768, 1, 0
        %v1801 = vsel %vm1769, 1, 0
        %v1802 = vsel %vm1770, 1, 0
        %v1803 = vsel %vm1771, 1, 0
        %v1804 = vsel %vm1772, 1, 0
        %v1805 = vsel %vm1773, 1, 0
        %v1806 = vsel %vm1774, 1, 0
        %v1807 = vsel %vm1775, 1, 0
        %v1808 = vsel %vm1776, 1, 0
        %v1809 = vsel %vm1777, 1, 0
        %v1810 = vsel %vm1778, 1, 0
        %v1811 = vsel %vm1779, 1, 0
        %v1812 = vsel %vm1780, 1, 0
        %v1813 = vsel %vm1781, 1, 0
        %v1814 = vcvt.s32.f32 %v1782
        %v1815 = vcvt.s32.f32 %v1783
        %v1816 = vcvt.s32.f32 %v1784
        %v1817 = vcvt.s32.f32 %v1785
        %v1818 = vcvt.s32.f32 %v1786
        %v1819 = vcvt.s32.f32 %v1787
        %v1820 = vcvt.s32.f32 %v1788
        %v1821 = vcvt.s32.f32 %v1789
        %v1822 = vcvt.s32.f32 %v1790
        %v1823 = vcvt.s32.f32 %v1791
        %v1824 = vcvt.s32.f32 %v1792
        %v1825 = vcvt.s32.f32 %v1793
        %v1826 = vcvt.s32.f32 %v1794
        %v1827 = vcvt.s32.f32 %v1795
        %v1828 = vcvt.s32.f32 %v1796
        %v1829 = vcvt.s32.f32 %v1797
        %v1830 = vcvt.s32.f32 %v1798
        %v1831 = vcvt.s32.f32 %v1799
        %v1832 = vcvt.s32.f32 %v1800
        %v1833 = vcvt.s32.f32 %v1801
        %v1834 = vcvt.s32.f32 %v1802
        %v1835 = vcvt.s32.f32 %v1803
        %v1836 = vcvt.s32.f32 %v1804
        %v1837 = vcvt.s32.f32 %v1805
        %v1838 = vcvt.s32.f32 %v1806
        %v1839 = vcvt.s32.f32 %v1807
        %v1840 = vcvt.s32.f32 %v1808
        %v1841 = vcvt.s32.f32 %v1809
        %v1842 = vcvt.s32.f32 %v1810
        %v1843 = vcvt.s32.f32 %v1811
        %v1844 = vcvt.s32.f32 %v1812
        %v1845 = vcvt.s32.f32 %v1813
        %1847 = vset.pattern.permute.xlu0 32
        %1848 = vperm.xlu0 %1847, %v1814
        %v1849 = vpop.permute.xlu0 %1848
        %1852 = vset.pattern.permute.xlu0 32
        %1853 = vperm.xlu0 %1852, %v1815
        %v1854 = vpop.permute.xlu0 %1853
        %1857 = vset.pattern.permute.xlu0 32
        %1858 = vperm.xlu0 %1857, %v1816
        %v1859 = vpop.permute.xlu0 %1858
        %1862 = vset.pattern.permute.xlu0 32
        %1863 = vperm.xlu0 %1862, %v1817
        %v1864 = vpop.permute.xlu0 %1863
        %1867 = vset.pattern.permute.xlu0 32
        %1868 = vperm.xlu0 %1867, %v1818
        %v1869 = vpop.permute.xlu0 %1868
        %1872 = vset.pattern.permute.xlu0 32
        %1873 = vperm.xlu0 %1872, %v1819
        %v1874 = vpop.permute.xlu0 %1873
        %1877 = vset.pattern.permute.xlu0 32
        %1878 = vperm.xlu0 %1877, %v1820
        %v1879 = vpop.permute.xlu0 %1878
        %1882 = vset.pattern.permute.xlu0 32
        %1883 = vperm.xlu0 %1882, %v1821
        %v1884 = vpop.permute.xlu0 %1883
        %1887 = vset.pattern.permute.xlu0 32
        %1888 = vperm.xlu0 %1887, %v1822
        %v1889 = vpop.permute.xlu0 %1888
        %1892 = vset.pattern.permute.xlu0 32
        %1893 = vperm.xlu0 %1892, %v1823
        %v1894 = vpop.permute.xlu0 %1893
        %1897 = vset.pattern.permute.xlu0 32
        %1898 = vperm.xlu0 %1897, %v1824
        %v1899 = vpop.permute.xlu0 %1898
        %1902 = vset.pattern.permute.xlu0 32
        %1903 = vperm.xlu0 %1902, %v1825
        %v1904 = vpop.permute.xlu0 %1903
        %1907 = vset.pattern.permute.xlu0 32
        %1908 = vperm.xlu0 %1907, %v1826
        %v1909 = vpop.permute.xlu0 %1908
        %1912 = vset.pattern.permute.xlu0 32
        %1913 = vperm.xlu0 %1912, %v1827
        %v1914 = vpop.permute.xlu0 %1913
        %1917 = vset.pattern.permute.xlu0 32
        %1918 = vperm.xlu0 %1917, %v1828
        %v1919 = vpop.permute.xlu0 %1918
        %1922 = vset.pattern.permute.xlu0 32
        %1923 = vperm.xlu0 %1922, %v1829
        %v1924 = vpop.permute.xlu0 %1923
        %1927 = vset.pattern.permute.xlu0 32
        %1928 = vperm.xlu0 %1927, %v1830
        %v1929 = vpop.permute.xlu0 %1928
        %1932 = vset.pattern.permute.xlu0 32
        %1933 = vperm.xlu0 %1932, %v1831
        %v1934 = vpop.permute.xlu0 %1933
        %1937 = vset.pattern.permute.xlu0 32
        %1938 = vperm.xlu0 %1937, %v1832
        %v1939 = vpop.permute.xlu0 %1938
        %1942 = vset.pattern.permute.xlu0 32
        %1943 = vperm.xlu0 %1942, %v1833
        %v1944 = vpop.permute.xlu0 %1943
        %1947 = vset.pattern.permute.xlu0 32
        %1948 = vperm.xlu0 %1947, %v1834
        %v1949 = vpop.permute.xlu0 %1948
        %1952 = vset.pattern.permute.xlu0 32
        %1953 = vperm.xlu0 %1952, %v1835
        %v1954 = vpop.permute.xlu0 %1953
        %1957 = vset.pattern.permute.xlu0 32
        %1958 = vperm.xlu0 %1957, %v1836
        %v1959 = vpop.permute.xlu0 %1958
        %1962 = vset.pattern.permute.xlu0 32
        %1963 = vperm.xlu0 %1962, %v1837
        %v1964 = vpop.permute.xlu0 %1963
        %1967 = vset.pattern.permute.xlu0 32
        %1968 = vperm.xlu0 %1967, %v1838
        %v1969 = vpop.permute.xlu0 %1968
        %1972 = vset.pattern.permute.xlu0 32
        %1973 = vperm.xlu0 %1972, %v1839
        %v1974 = vpop.permute.xlu0 %1973
        %1977 = vset.pattern.permute.xlu0 32
        %1978 = vperm.xlu0 %1977, %v1840
        %v1979 = vpop.permute.xlu0 %1978
        %1982 = vset.pattern.permute.xlu0 32
        %1983 = vperm.xlu0 %1982, %v1841
        %v1984 = vpop.permute.xlu0 %1983
        %1987 = vset.pattern.permute.xlu0 32
        %1988 = vperm.xlu0 %1987, %v1842
        %v1989 = vpop.permute.xlu0 %1988
        %1992 = vset.pattern.permute.xlu0 32
        %1993 = vperm.xlu0 %1992, %v1843
        %v1994 = vpop.permute.xlu0 %1993
        %1997 = vset.pattern.permute.xlu0 32
        %1998 = vperm.xlu0 %1997, %v1844
        %v1999 = vpop.permute.xlu0 %1998
        %2002 = vset.pattern.permute.xlu0 32
        %2003 = vperm.xlu0 %2002, %v1845
        %v2004 = vpop.permute.xlu0 %2003
        %v2006 = vmul.f32 %v1849, %v1718
        %v2007 = vmul.f32 %v1854, %v1719
        %v2008 = vmul.f32 %v1859, %v1720
        %v2009 = vmul.f32 %v1864, %v1721
        %v2010 = vmul.f32 %v1869, %v1722
        %v2011 = vmul.f32 %v1874, %v1723
        %v2012 = vmul.f32 %v1879, %v1724
        %v2013 = vmul.f32 %v1884, %v1725
        %v2014 = vmul.f32 %v1889, %v1726
        %v2015 = vmul.f32 %v1894, %v1727
        %v2016 = vmul.f32 %v1899, %v1728
        %v2017 = vmul.f32 %v1904, %v1729
        %v2018 = vmul.f32 %v1909, %v1730
        %v2019 = vmul.f32 %v1914, %v1731
        %v2020 = vmul.f32 %v1919, %v1732
        %v2021 = vmul.f32 %v1924, %v1733
        %v2022 = vmul.f32 %v1929, %v1734
        %v2023 = vmul.f32 %v1934, %v1735
        %v2024 = vmul.f32 %v1939, %v1736
        %v2025 = vmul.f32 %v1944, %v1737
        %v2026 = vmul.f32 %v1949, %v1738
        %v2027 = vmul.f32 %v1954, %v1739
        %v2028 = vmul.f32 %v1959, %v1740
        %v2029 = vmul.f32 %v1964, %v1741
        %v2030 = vmul.f32 %v1969, %v1742
        %v2031 = vmul.f32 %v1974, %v1743
        %v2032 = vmul.f32 %v1979, %v1744
        %v2033 = vmul.f32 %v1984, %v1745
        %v2034 = vmul.f32 %v1989, %v1746
        %v2035 = vmul.f32 %v1994, %v1747
        %v2036 = vmul.f32 %v1999, %v1748
        %v2037 = vmul.f32 %v2004, %v1749
        %v2038 = vsub.f32 1.0, %v1814
        %v2039 = vsub.f32 1.0, %v1815
        %v2040 = vsub.f32 1.0, %v1816
        %v2041 = vsub.f32 1.0, %v1817
        %v2042 = vsub.f32 1.0, %v1818
        %v2043 = vsub.f32 1.0, %v1819
        %v2044 = vsub.f32 1.0, %v1820
        %v2045 = vsub.f32 1.0, %v1821
        %v2046 = vsub.f32 1.0, %v1822
        %v2047 = vsub.f32 1.0, %v1823
        %v2048 = vsub.f32 1.0, %v1824
        %v2049 = vsub.f32 1.0, %v1825
        %v2050 = vsub.f32 1.0, %v1826
        %v2051 = vsub.f32 1.0, %v1827
        %v2052 = vsub.f32 1.0, %v1828
        %v2053 = vsub.f32 1.0, %v1829
        %v2054 = vsub.f32 1.0, %v1830
        %v2055 = vsub.f32 1.0, %v1831
        %v2056 = vsub.f32 1.0, %v1832
        %v2057 = vsub.f32 1.0, %v1833
        %v2058 = vsub.f32 1.0, %v1834
        %v2059 = vsub.f32 1.0, %v1835
        %v2060 = vsub.f32 1.0, %v1836
        %v2061 = vsub.f32 1.0, %v1837
        %v2062 = vsub.f32 1.0, %v1838
        %v2063 = vsub.f32 1.0, %v1839
        %v2064 = vsub.f32 1.0, %v1840
        %v2065 = vsub.f32 1.0, %v1841
        %v2066 = vsub.f32 1.0, %v1842
        %v2067 = vsub.f32 1.0, %v1843
        %v2068 = vsub.f32 1.0, %v1844
        %v2069 = vsub.f32 1.0, %v1845
        %2071 = vset.pattern.permute.xlu0 32
        %2072 = vperm.xlu0 %2071, %v2038
        %v2073 = vpop.permute.xlu0 %2072
        %2076 = vset.pattern.permute.xlu0 32
        %2077 = vperm.xlu0 %2076, %v2039
        %v2078 = vpop.permute.xlu0 %2077
        %2081 = vset.pattern.permute.xlu0 32
        %2082 = vperm.xlu0 %2081, %v2040
        %v2083 = vpop.permute.xlu0 %2082
        %2086 = vset.pattern.permute.xlu0 32
        %2087 = vperm.xlu0 %2086, %v2041
        %v2088 = vpop.permute.xlu0 %2087
        %2091 = vset.pattern.permute.xlu0 32
        %2092 = vperm.xlu0 %2091, %v2042
        %v2093 = vpop.permute.xlu0 %2092
        %2096 = vset.pattern.permute.xlu0 32
        %2097 = vperm.xlu0 %2096, %v2043
        %v2098 = vpop.permute.xlu0 %2097
        %2101 = vset.pattern.permute.xlu0 32
        %2102 = vperm.xlu0 %2101, %v2044
        %v2103 = vpop.permute.xlu0 %2102
        %2106 = vset.pattern.permute.xlu0 32
        %2107 = vperm.xlu0 %2106, %v2045
        %v2108 = vpop.permute.xlu0 %2107
        %2111 = vset.pattern.permute.xlu0 32
        %2112 = vperm.xlu0 %2111, %v2046
        %v2113 = vpop.permute.xlu0 %2112
        %2116 = vset.pattern.permute.xlu0 32
        %2117 = vperm.xlu0 %2116, %v2047
        %v2118 = vpop.permute.xlu0 %2117
        %2121 = vset.pattern.permute.xlu0 32
        %2122 = vperm.xlu0 %2121, %v2048
        %v2123 = vpop.permute.xlu0 %2122
        %2126 = vset.pattern.permute.xlu0 32
        %2127 = vperm.xlu0 %2126, %v2049
        %v2128 = vpop.permute.xlu0 %2127
        %2131 = vset.pattern.permute.xlu0 32
        %2132 = vperm.xlu0 %2131, %v2050
        %v2133 = vpop.permute.xlu0 %2132
        %2136 = vset.pattern.permute.xlu0 32
        %2137 = vperm.xlu0 %2136, %v2051
        %v2138 = vpop.permute.xlu0 %2137
        %2141 = vset.pattern.permute.xlu0 32
        %2142 = vperm.xlu0 %2141, %v2052
        %v2143 = vpop.permute.xlu0 %2142
        %2146 = vset.pattern.permute.xlu0 32
        %2147 = vperm.xlu0 %2146, %v2053
        %v2148 = vpop.permute.xlu0 %2147
        %2151 = vset.pattern.permute.xlu0 32
        %2152 = vperm.xlu0 %2151, %v2054
        %v2153 = vpop.permute.xlu0 %2152
        %2156 = vset.pattern.permute.xlu0 32
        %2157 = vperm.xlu0 %2156, %v2055
        %v2158 = vpop.permute.xlu0 %2157
        %2161 = vset.pattern.permute.xlu0 32
        %2162 = vperm.xlu0 %2161, %v2056
        %v2163 = vpop.permute.xlu0 %2162
        %2166 = vset.pattern.permute.xlu0 32
        %2167 = vperm.xlu0 %2166, %v2057
        %v2168 = vpop.permute.xlu0 %2167
        %2171 = vset.pattern.permute.xlu0 32
        %2172 = vperm.xlu0 %2171, %v2058
        %v2173 = vpop.permute.xlu0 %2172
        %2176 = vset.pattern.permute.xlu0 32
        %2177 = vperm.xlu0 %2176, %v2059
        %v2178 = vpop.permute.xlu0 %2177
        %2181 = vset.pattern.permute.xlu0 32
        %2182 = vperm.xlu0 %2181, %v2060
        %v2183 = vpop.permute.xlu0 %2182
        %2186 = vset.pattern.permute.xlu0 32
        %2187 = vperm.xlu0 %2186, %v2061
        %v2188 = vpop.permute.xlu0 %2187
        %2191 = vset.pattern.permute.xlu0 32
        %2192 = vperm.xlu0 %2191, %v2062
        %v2193 = vpop.permute.xlu0 %2192
        %2196 = vset.pattern.permute.xlu0 32
        %2197 = vperm.xlu0 %2196, %v2063
        %v2198 = vpop.permute.xlu0 %2197
        %2201 = vset.pattern.permute.xlu0 32
        %2202 = vperm.xlu0 %2201, %v2064
        %v2203 = vpop.permute.xlu0 %2202
        %2206 = vset.pattern.permute.xlu0 32
        %2207 = vperm.xlu0 %2206, %v2065
        %v2208 = vpop.permute.xlu0 %2207
        %2211 = vset.pattern.permute.xlu0 32
        %2212 = vperm.xlu0 %2211, %v2066
        %v2213 = vpop.permute.xlu0 %2212
        %2216 = vset.pattern.permute.xlu0 32
        %2217 = vperm.xlu0 %2216, %v2067
        %v2218 = vpop.permute.xlu0 %2217
        %2221 = vset.pattern.permute.xlu0 32
        %2222 = vperm.xlu0 %2221, %v2068
        %v2223 = vpop.permute.xlu0 %2222
        %2226 = vset.pattern.permute.xlu0 32
        %2227 = vperm.xlu0 %2226, %v2069
        %v2228 = vpop.permute.xlu0 %2227
        %v2230 = vmul.f32 %v2073, %v781
        %v2231 = vmul.f32 %v2078, %v784
        %v2232 = vmul.f32 %v2083, %v789
        %v2233 = vmul.f32 %v2088, %v792
        %v2234 = vmul.f32 %v2093, %v797
        %v2235 = vmul.f32 %v2098, %v800
        %v2236 = vmul.f32 %v2103, %v805
        %v2237 = vmul.f32 %v2108, %v808
        %v2238 = vmul.f32 %v2113, %v813
        %v2239 = vmul.f32 %v2118, %v816
        %v2240 = vmul.f32 %v2123, %v821
        %v2241 = vmul.f32 %v2128, %v824
        %v2242 = vmul.f32 %v2133, %v829
        %v2243 = vmul.f32 %v2138, %v832
        %v2244 = vmul.f32 %v2143, %v837
        %v2245 = vmul.f32 %v2148, %v840
        %v2246 = vmul.f32 %v2153, %v845
        %v2247 = vmul.f32 %v2158, %v848
        %v2248 = vmul.f32 %v2163, %v853
        %v2249 = vmul.f32 %v2168, %v856
        %v2250 = vmul.f32 %v2173, %v861
        %v2251 = vmul.f32 %v2178, %v864
        %v2252 = vmul.f32 %v2183, %v869
        %v2253 = vmul.f32 %v2188, %v872
        %v2254 = vmul.f32 %v2193, %v877
        %v2255 = vmul.f32 %v2198, %v880
        %v2256 = vmul.f32 %v2203, %v885
        %v2257 = vmul.f32 %v2208, %v888
        %v2258 = vmul.f32 %v2213, %v893
        %v2259 = vmul.f32 %v2218, %v896
        %v2260 = vmul.f32 %v2223, %v901
        %v2261 = vmul.f32 %v2228, %v904
        %2294 = vrot.lane.b32.xlu0 %v2230, 32
        %v2295 = vpop.permute.xlu0 %2294
        %2296 = vrot.lane.b32.xlu0 %v2231, 32
        %v2297 = vpop.permute.xlu0 %2296
        %2298 = vrot.lane.b32.xlu0 %v2232, 32
        %v2299 = vpop.permute.xlu0 %2298
        %2300 = vrot.lane.b32.xlu0 %v2233, 32
        %v2301 = vpop.permute.xlu0 %2300
        %2302 = vrot.lane.b32.xlu0 %v2234, 32
        %v2303 = vpop.permute.xlu0 %2302
        %2304 = vrot.lane.b32.xlu0 %v2235, 32
        %v2305 = vpop.permute.xlu0 %2304
        %2306 = vrot.lane.b32.xlu0 %v2236, 32
        %v2307 = vpop.permute.xlu0 %2306
        %2308 = vrot.lane.b32.xlu0 %v2237, 32
        %v2309 = vpop.permute.xlu0 %2308
        %2310 = vrot.lane.b32.xlu0 %v2238, 32
        %v2311 = vpop.permute.xlu0 %2310
        %2312 = vrot.lane.b32.xlu0 %v2239, 32
        %v2313 = vpop.permute.xlu0 %2312
        %2314 = vrot.lane.b32.xlu0 %v2240, 32
        %v2315 = vpop.permute.xlu0 %2314
        %2316 = vrot.lane.b32.xlu0 %v2241, 32
        %v2317 = vpop.permute.xlu0 %2316
        %2318 = vrot.lane.b32.xlu0 %v2242, 32
        %v2319 = vpop.permute.xlu0 %2318
        %2320 = vrot.lane.b32.xlu0 %v2243, 32
        %v2321 = vpop.permute.xlu0 %2320
        %2322 = vrot.lane.b32.xlu0 %v2244, 32
        %v2323 = vpop.permute.xlu0 %2322
        %2324 = vrot.lane.b32.xlu0 %v2245, 32
        %v2325 = vpop.permute.xlu0 %2324
        %2326 = vrot.lane.b32.xlu0 %v2246, 32
        %v2327 = vpop.permute.xlu0 %2326
        %2328 = vrot.lane.b32.xlu0 %v2247, 32
        %v2329 = vpop.permute.xlu0 %2328
        %2330 = vrot.lane.b32.xlu0 %v2248, 32
        %v2331 = vpop.permute.xlu0 %2330
        %2332 = vrot.lane.b32.xlu0 %v2249, 32
        %v2333 = vpop.permute.xlu0 %2332
        %2334 = vrot.lane.b32.xlu0 %v2250, 32
        %v2335 = vpop.permute.xlu0 %2334
        %2336 = vrot.lane.b32.xlu0 %v2251, 32
        %v2337 = vpop.permute.xlu0 %2336
        %2338 = vrot.lane.b32.xlu0 %v2252, 32
        %v2339 = vpop.permute.xlu0 %2338
        %2340 = vrot.lane.b32.xlu0 %v2253, 32
        %v2341 = vpop.permute.xlu0 %2340
        %2342 = vrot.lane.b32.xlu0 %v2254, 32
        %v2343 = vpop.permute.xlu0 %2342
        %2344 = vrot.lane.b32.xlu0 %v2255, 32
        %v2345 = vpop.permute.xlu0 %2344
        %2346 = vrot.lane.b32.xlu0 %v2256, 32
        %v2347 = vpop.permute.xlu0 %2346
        %2348 = vrot.lane.b32.xlu0 %v2257, 32
        %v2349 = vpop.permute.xlu0 %2348
        %2350 = vrot.lane.b32.xlu0 %v2258, 32
        %v2351 = vpop.permute.xlu0 %2350
        %2352 = vrot.lane.b32.xlu0 %v2259, 32
        %v2353 = vpop.permute.xlu0 %2352
        %2354 = vrot.lane.b32.xlu0 %v2260, 32
        %v2355 = vpop.permute.xlu0 %2354
        %2356 = vrot.lane.b32.xlu0 %v2261, 32
        %v2357 = vpop.permute.xlu0 %2356
        %v2390 = vadd.f32 %v2006, %v2295
        %v2391 = vadd.f32 %v2007, %v2297
        %v2392 = vadd.f32 %v2008, %v2299
        %v2393 = vadd.f32 %v2009, %v2301
        %v2394 = vadd.f32 %v2010, %v2303
        %v2395 = vadd.f32 %v2011, %v2305
        %v2396 = vadd.f32 %v2012, %v2307
        %v2397 = vadd.f32 %v2013, %v2309
        %v2398 = vadd.f32 %v2014, %v2311
        %v2399 = vadd.f32 %v2015, %v2313
        %v2400 = vadd.f32 %v2016, %v2315
        %v2401 = vadd.f32 %v2017, %v2317
        %v2402 = vadd.f32 %v2018, %v2319
        %v2403 = vadd.f32 %v2019, %v2321
        %v2404 = vadd.f32 %v2020, %v2323
        %v2405 = vadd.f32 %v2021, %v2325
        %v2406 = vadd.f32 %v2022, %v2327
        %v2407 = vadd.f32 %v2023, %v2329
        %v2408 = vadd.f32 %v2024, %v2331
        %v2409 = vadd.f32 %v2025, %v2333
        %v2410 = vadd.f32 %v2026, %v2335
        %v2411 = vadd.f32 %v2027, %v2337
        %v2412 = vadd.f32 %v2028, %v2339
        %v2413 = vadd.f32 %v2029, %v2341
        %v2414 = vadd.f32 %v2030, %v2343
        %v2415 = vadd.f32 %v2031, %v2345
        %v2416 = vadd.f32 %v2032, %v2347
        %v2417 = vadd.f32 %v2033, %v2349
        %v2418 = vadd.f32 %v2034, %v2351
        %v2419 = vadd.f32 %v2035, %v2353
        %v2420 = vadd.f32 %v2036, %v2355
        %v2421 = vadd.f32 %v2037, %v2357
        %vm2422 = vcmp.ne.s32.totalorder %v423, 0
        %vm2423 = vcmp.ne.s32.totalorder %v424, 0
        %vm2424 = vcmp.ne.s32.totalorder %v425, 0
        %vm2425 = vcmp.ne.s32.totalorder %v426, 0
        %vm2426 = vcmp.ne.s32.totalorder %v427, 0
        %vm2427 = vcmp.ne.s32.totalorder %v428, 0
        %vm2428 = vcmp.ne.s32.totalorder %v429, 0
        %vm2429 = vcmp.ne.s32.totalorder %v430, 0
        %vm2430 = vcmp.ne.s32.totalorder %v431, 0
        %vm2431 = vcmp.ne.s32.totalorder %v432, 0
        %vm2432 = vcmp.ne.s32.totalorder %v433, 0
        %vm2433 = vcmp.ne.s32.totalorder %v434, 0
        %vm2434 = vcmp.ne.s32.totalorder %v435, 0
        %vm2435 = vcmp.ne.s32.totalorder %v436, 0
        %vm2436 = vcmp.ne.s32.totalorder %v437, 0
        %vm2437 = vcmp.ne.s32.totalorder %v438, 0
        %vm2438 = vcmp.ne.s32.totalorder %v439, 0
        %vm2439 = vcmp.ne.s32.totalorder %v440, 0
        %vm2440 = vcmp.ne.s32.totalorder %v441, 0
        %vm2441 = vcmp.ne.s32.totalorder %v442, 0
        %vm2442 = vcmp.ne.s32.totalorder %v443, 0
        %vm2443 = vcmp.ne.s32.totalorder %v444, 0
        %vm2444 = vcmp.ne.s32.totalorder %v445, 0
        %vm2445 = vcmp.ne.s32.totalorder %v446, 0
        %vm2446 = vcmp.ne.s32.totalorder %v447, 0
        %vm2447 = vcmp.ne.s32.totalorder %v448, 0
        %vm2448 = vcmp.ne.s32.totalorder %v449, 0
        %vm2449 = vcmp.ne.s32.totalorder %v450, 0
        %vm2450 = vcmp.ne.s32.totalorder %v451, 0
        %vm2451 = vcmp.ne.s32.totalorder %v452, 0
        %vm2452 = vcmp.ne.s32.totalorder %v453, 0
        %vm2453 = vcmp.ne.s32.totalorder %v454, 0
        %v2454 = vld [vmem:[%s5] sm:$0x1]
        %v2456 = vlaneseq
        %v2457 = vshrl.u32 %v2456, 7
        %v2458 = vsub.s32 0, %v2457
        %v2459 = vrot.slane %v2454, %v2458
        %v2461 = vmul.f32 %v2390, %v2459
        %v2462 = vmul.f32 %v2391, %v2459
        %v2463 = vmul.f32 %v2392, %v2459
        %v2464 = vmul.f32 %v2393, %v2459
        %v2465 = vmul.f32 %v2394, %v2459
        %v2466 = vmul.f32 %v2395, %v2459
        %v2467 = vmul.f32 %v2396, %v2459
        %v2468 = vmul.f32 %v2397, %v2459
        %v2469 = vmul.f32 %v2398, %v2459
        %v2470 = vmul.f32 %v2399, %v2459
        %v2471 = vmul.f32 %v2400, %v2459
        %v2472 = vmul.f32 %v2401, %v2459
        %v2473 = vmul.f32 %v2402, %v2459
        %v2474 = vmul.f32 %v2403, %v2459
        %v2475 = vmul.f32 %v2404, %v2459
        %v2476 = vmul.f32 %v2405, %v2459
        %v2477 = vmul.f32 %v2406, %v2459
        %v2478 = vmul.f32 %v2407, %v2459
        %v2479 = vmul.f32 %v2408, %v2459
        %v2480 = vmul.f32 %v2409, %v2459
        %v2481 = vmul.f32 %v2410, %v2459
        %v2482 = vmul.f32 %v2411, %v2459
        %v2483 = vmul.f32 %v2412, %v2459
        %v2484 = vmul.f32 %v2413, %v2459
        %v2485 = vmul.f32 %v2414, %v2459
        %v2486 = vmul.f32 %v2415, %v2459
        %v2487 = vmul.f32 %v2416, %v2459
        %v2488 = vmul.f32 %v2417, %v2459
        %v2489 = vmul.f32 %v2418, %v2459
        %v2490 = vmul.f32 %v2419, %v2459
        %v2491 = vmul.f32 %v2420, %v2459
        %v2492 = vmul.f32 %v2421, %v2459
        %v2493 = vsel %vm987, %v2461, 0.0
        %2494 = vadd.xlane.f32.xlu0 %v2493
        %v2495 = vpop.xlane.xlu0 %2494
        %v2496 = vsel %vm987, %v2462, 0.0
        %2497 = vadd.xlane.f32.xlu0 %v2496
        %v2498 = vpop.xlane.xlu0 %2497
        %v2499 = vsel %vm987, %v2463, 0.0
        %2500 = vadd.xlane.f32.xlu0 %v2499
        %v2501 = vpop.xlane.xlu0 %2500
        %v2502 = vsel %vm987, %v2464, 0.0
        %2503 = vadd.xlane.f32.xlu0 %v2502
        %v2504 = vpop.xlane.xlu0 %2503
        %v2505 = vsel %vm987, %v2465, 0.0
        %2506 = vadd.xlane.f32.xlu0 %v2505
        %v2507 = vpop.xlane.xlu0 %2506
        %v2508 = vsel %vm987, %v2466, 0.0
        %2509 = vadd.xlane.f32.xlu0 %v2508
        %v2510 = vpop.xlane.xlu0 %2509
        %v2511 = vsel %vm987, %v2467, 0.0
        %2512 = vadd.xlane.f32.xlu0 %v2511
        %v2513 = vpop.xlane.xlu0 %2512
        %v2514 = vsel %vm987, %v2468, 0.0
        %2515 = vadd.xlane.f32.xlu0 %v2514
        %v2516 = vpop.xlane.xlu0 %2515
        %v2517 = vsel %vm987, %v2469, 0.0
        %2518 = vadd.xlane.f32.xlu0 %v2517
        %v2519 = vpop.xlane.xlu0 %2518
        %v2520 = vsel %vm987, %v2470, 0.0
        %2521 = vadd.xlane.f32.xlu0 %v2520
        %v2522 = vpop.xlane.xlu0 %2521
        %v2523 = vsel %vm987, %v2471, 0.0
        %2524 = vadd.xlane.f32.xlu0 %v2523
        %v2525 = vpop.xlane.xlu0 %2524
        %v2526 = vsel %vm987, %v2472, 0.0
        %2527 = vadd.xlane.f32.xlu0 %v2526
        %v2528 = vpop.xlane.xlu0 %2527
        %v2529 = vsel %vm987, %v2473, 0.0
        %2530 = vadd.xlane.f32.xlu0 %v2529
        %v2531 = vpop.xlane.xlu0 %2530
        %v2532 = vsel %vm987, %v2474, 0.0
        %2533 = vadd.xlane.f32.xlu0 %v2532
        %v2534 = vpop.xlane.xlu0 %2533
        %v2535 = vsel %vm987, %v2475, 0.0
        %2536 = vadd.xlane.f32.xlu0 %v2535
        %v2537 = vpop.xlane.xlu0 %2536
        %v2538 = vsel %vm987, %v2476, 0.0
        %2539 = vadd.xlane.f32.xlu0 %v2538
        %v2540 = vpop.xlane.xlu0 %2539
        %v2541 = vsel %vm987, %v2477, 0.0
        %2542 = vadd.xlane.f32.xlu0 %v2541
        %v2543 = vpop.xlane.xlu0 %2542
        %v2544 = vsel %vm987, %v2478, 0.0
        %2545 = vadd.xlane.f32.xlu0 %v2544
        %v2546 = vpop.xlane.xlu0 %2545
        %v2547 = vsel %vm987, %v2479, 0.0
        %2548 = vadd.xlane.f32.xlu0 %v2547
        %v2549 = vpop.xlane.xlu0 %2548
        %v2550 = vsel %vm987, %v2480, 0.0
        %2551 = vadd.xlane.f32.xlu0 %v2550
        %v2552 = vpop.xlane.xlu0 %2551
        %v2553 = vsel %vm987, %v2481, 0.0
        %2554 = vadd.xlane.f32.xlu0 %v2553
        %v2555 = vpop.xlane.xlu0 %2554
        %v2556 = vsel %vm987, %v2482, 0.0
        %2557 = vadd.xlane.f32.xlu0 %v2556
        %v2558 = vpop.xlane.xlu0 %2557
        %v2559 = vsel %vm987, %v2483, 0.0
        %2560 = vadd.xlane.f32.xlu0 %v2559
        %v2561 = vpop.xlane.xlu0 %2560
        %v2562 = vsel %vm987, %v2484, 0.0
        %2563 = vadd.xlane.f32.xlu0 %v2562
        %v2564 = vpop.xlane.xlu0 %2563
        %v2565 = vsel %vm987, %v2485, 0.0
        %2566 = vadd.xlane.f32.xlu0 %v2565
        %v2567 = vpop.xlane.xlu0 %2566
        %v2568 = vsel %vm987, %v2486, 0.0
        %2569 = vadd.xlane.f32.xlu0 %v2568
        %v2570 = vpop.xlane.xlu0 %2569
        %v2571 = vsel %vm987, %v2487, 0.0
        %2572 = vadd.xlane.f32.xlu0 %v2571
        %v2573 = vpop.xlane.xlu0 %2572
        %v2574 = vsel %vm987, %v2488, 0.0
        %2575 = vadd.xlane.f32.xlu0 %v2574
        %v2576 = vpop.xlane.xlu0 %2575
        %v2577 = vsel %vm987, %v2489, 0.0
        %2578 = vadd.xlane.f32.xlu0 %v2577
        %v2579 = vpop.xlane.xlu0 %2578
        %v2580 = vsel %vm987, %v2490, 0.0
        %2581 = vadd.xlane.f32.xlu0 %v2580
        %v2582 = vpop.xlane.xlu0 %2581
        %v2583 = vsel %vm987, %v2491, 0.0
        %2584 = vadd.xlane.f32.xlu0 %v2583
        %v2585 = vpop.xlane.xlu0 %2584
        %v2586 = vsel %vm987, %v2492, 0.0
        %2587 = vadd.xlane.f32.xlu0 %v2586
        %v2588 = vpop.xlane.xlu0 %2587
        %v2589 = vsel %vm2422, %v2495, -1e+30
        %v2590 = vsel %vm2423, %v2498, -1e+30
        %v2591 = vsel %vm2424, %v2501, -1e+30
        %v2592 = vsel %vm2425, %v2504, -1e+30
        %v2593 = vsel %vm2426, %v2507, -1e+30
        %v2594 = vsel %vm2427, %v2510, -1e+30
        %v2595 = vsel %vm2428, %v2513, -1e+30
        %v2596 = vsel %vm2429, %v2516, -1e+30
        %v2597 = vsel %vm2430, %v2519, -1e+30
        %v2598 = vsel %vm2431, %v2522, -1e+30
        %v2599 = vsel %vm2432, %v2525, -1e+30
        %v2600 = vsel %vm2433, %v2528, -1e+30
        %v2601 = vsel %vm2434, %v2531, -1e+30
        %v2602 = vsel %vm2435, %v2534, -1e+30
        %v2603 = vsel %vm2436, %v2537, -1e+30
        %v2604 = vsel %vm2437, %v2540, -1e+30
        %v2605 = vsel %vm2438, %v2543, -1e+30
        %v2606 = vsel %vm2439, %v2546, -1e+30
        %v2607 = vsel %vm2440, %v2549, -1e+30
        %v2608 = vsel %vm2441, %v2552, -1e+30
        %v2609 = vsel %vm2442, %v2555, -1e+30
        %v2610 = vsel %vm2443, %v2558, -1e+30
        %v2611 = vsel %vm2444, %v2561, -1e+30
        %v2612 = vsel %vm2445, %v2564, -1e+30
        %v2613 = vsel %vm2446, %v2567, -1e+30
        %v2614 = vsel %vm2447, %v2570, -1e+30
        %v2615 = vsel %vm2448, %v2573, -1e+30
        %v2616 = vsel %vm2449, %v2576, -1e+30
        %v2617 = vsel %vm2450, %v2579, -1e+30
        %v2618 = vsel %vm2451, %v2582, -1e+30
        %v2619 = vsel %vm2452, %v2585, -1e+30
        %v2620 = vsel %vm2453, %v2588, -1e+30
        %v2621 = vsel %vm2422, 1, 0
        %v2622 = vsel %vm2423, 1, 0
        %v2623 = vsel %vm2424, 1, 0
        %v2624 = vsel %vm2425, 1, 0
        %v2625 = vsel %vm2426, 1, 0
        %v2626 = vsel %vm2427, 1, 0
        %v2627 = vsel %vm2428, 1, 0
        %v2628 = vsel %vm2429, 1, 0
        %v2629 = vsel %vm2430, 1, 0
        %v2630 = vsel %vm2431, 1, 0
        %v2631 = vsel %vm2432, 1, 0
        %v2632 = vsel %vm2433, 1, 0
        %v2633 = vsel %vm2434, 1, 0
        %v2634 = vsel %vm2435, 1, 0
        %v2635 = vsel %vm2436, 1, 0
        %v2636 = vsel %vm2437, 1, 0
        %v2637 = vsel %vm2438, 1, 0
        %v2638 = vsel %vm2439, 1, 0
        %v2639 = vsel %vm2440, 1, 0
        %v2640 = vsel %vm2441, 1, 0
        %v2641 = vsel %vm2442, 1, 0
        %v2642 = vsel %vm2443, 1, 0
        %v2643 = vsel %vm2444, 1, 0
        %v2644 = vsel %vm2445, 1, 0
        %v2645 = vsel %vm2446, 1, 0
        %v2646 = vsel %vm2447, 1, 0
        %v2647 = vsel %vm2448, 1, 0
        %v2648 = vsel %vm2449, 1, 0
        %v2649 = vsel %vm2450, 1, 0
        %v2650 = vsel %vm2451, 1, 0
        %v2651 = vsel %vm2452, 1, 0
        %v2652 = vsel %vm2453, 1, 0
        %v2653 = vcvt.s32.f32 %v2621
        %v2654 = vcvt.s32.f32 %v2622
        %v2655 = vcvt.s32.f32 %v2623
        %v2656 = vcvt.s32.f32 %v2624
        %v2657 = vcvt.s32.f32 %v2625
        %v2658 = vcvt.s32.f32 %v2626
        %v2659 = vcvt.s32.f32 %v2627
        %v2660 = vcvt.s32.f32 %v2628
        %v2661 = vcvt.s32.f32 %v2629
        %v2662 = vcvt.s32.f32 %v2630
        %v2663 = vcvt.s32.f32 %v2631
        %v2664 = vcvt.s32.f32 %v2632
        %v2665 = vcvt.s32.f32 %v2633
        %v2666 = vcvt.s32.f32 %v2634
        %v2667 = vcvt.s32.f32 %v2635
        %v2668 = vcvt.s32.f32 %v2636
        %v2669 = vcvt.s32.f32 %v2637
        %v2670 = vcvt.s32.f32 %v2638
        %v2671 = vcvt.s32.f32 %v2639
        %v2672 = vcvt.s32.f32 %v2640
        %v2673 = vcvt.s32.f32 %v2641
        %v2674 = vcvt.s32.f32 %v2642
        %v2675 = vcvt.s32.f32 %v2643
        %v2676 = vcvt.s32.f32 %v2644
        %v2677 = vcvt.s32.f32 %v2645
        %v2678 = vcvt.s32.f32 %v2646
        %v2679 = vcvt.s32.f32 %v2647
        %v2680 = vcvt.s32.f32 %v2648
        %v2681 = vcvt.s32.f32 %v2649
        %v2682 = vcvt.s32.f32 %v2650
        %v2683 = vcvt.s32.f32 %v2651
        %v2684 = vcvt.s32.f32 %v2652
        %vm2685 = vcmask 7168
        %v2686 = vsel %vm2685, %v2589, -inf
        %v2687 = vsel %vm2685, %v2590, -inf
        %v2688 = vmax.f32 %v2686, %v2687
        %v2689 = vrot.slane %v2688, 4
        %v2690 = vmax.f32 %v2688, %v2689
        %v2691 = vrot.slane %v2690, 2
        %v2692 = vmax.f32 %v2690, %v2691
        %v2693 = vrot.slane %v2692, 1
        %v2694 = vmax.f32 %v2692, %v2693
        %v2695 = vsel %vm2685, %v2591, -inf
        %v2696 = vsel %vm2685, %v2592, -inf
        %v2697 = vmax.f32 %v2695, %v2696
        %v2698 = vrot.slane %v2697, 4
        %v2699 = vmax.f32 %v2697, %v2698
        %v2700 = vrot.slane %v2699, 2
        %v2701 = vmax.f32 %v2699, %v2700
        %v2702 = vrot.slane %v2701, 1
        %v2703 = vmax.f32 %v2701, %v2702
        %v2704 = vsel %vm2685, %v2593, -inf
        %v2705 = vsel %vm2685, %v2594, -inf
        %v2706 = vmax.f32 %v2704, %v2705
        %v2707 = vrot.slane %v2706, 4
        %v2708 = vmax.f32 %v2706, %v2707
        %v2709 = vrot.slane %v2708, 2
        %v2710 = vmax.f32 %v2708, %v2709
        %v2711 = vrot.slane %v2710, 1
        %v2712 = vmax.f32 %v2710, %v2711
        %v2713 = vsel %vm2685, %v2595, -inf
        %v2714 = vsel %vm2685, %v2596, -inf
        %v2715 = vmax.f32 %v2713, %v2714
        %v2716 = vrot.slane %v2715, 4
        %v2717 = vmax.f32 %v2715, %v2716
        %v2718 = vrot.slane %v2717, 2
        %v2719 = vmax.f32 %v2717, %v2718
        %v2720 = vrot.slane %v2719, 1
        %v2721 = vmax.f32 %v2719, %v2720
        %v2722 = vsel %vm2685, %v2597, -inf
        %v2723 = vsel %vm2685, %v2598, -inf
        %v2724 = vmax.f32 %v2722, %v2723
        %v2725 = vrot.slane %v2724, 4
        %v2726 = vmax.f32 %v2724, %v2725
        %v2727 = vrot.slane %v2726, 2
        %v2728 = vmax.f32 %v2726, %v2727
        %v2729 = vrot.slane %v2728, 1
        %v2730 = vmax.f32 %v2728, %v2729
        %v2731 = vsel %vm2685, %v2599, -inf
        %v2732 = vsel %vm2685, %v2600, -inf
        %v2733 = vmax.f32 %v2731, %v2732
        %v2734 = vrot.slane %v2733, 4
        %v2735 = vmax.f32 %v2733, %v2734
        %v2736 = vrot.slane %v2735, 2
        %v2737 = vmax.f32 %v2735, %v2736
        %v2738 = vrot.slane %v2737, 1
        %v2739 = vmax.f32 %v2737, %v2738
        %v2740 = vsel %vm2685, %v2601, -inf
        %v2741 = vsel %vm2685, %v2602, -inf
        %v2742 = vmax.f32 %v2740, %v2741
        %v2743 = vrot.slane %v2742, 4
        %v2744 = vmax.f32 %v2742, %v2743
        %v2745 = vrot.slane %v2744, 2
        %v2746 = vmax.f32 %v2744, %v2745
        %v2747 = vrot.slane %v2746, 1
        %v2748 = vmax.f32 %v2746, %v2747
        %v2749 = vsel %vm2685, %v2603, -inf
        %v2750 = vsel %vm2685, %v2604, -inf
        %v2751 = vmax.f32 %v2749, %v2750
        %v2752 = vrot.slane %v2751, 4
        %v2753 = vmax.f32 %v2751, %v2752
        %v2754 = vrot.slane %v2753, 2
        %v2755 = vmax.f32 %v2753, %v2754
        %v2756 = vrot.slane %v2755, 1
        %v2757 = vmax.f32 %v2755, %v2756
        %v2758 = vsel %vm2685, %v2605, -inf
        %v2759 = vsel %vm2685, %v2606, -inf
        %v2760 = vmax.f32 %v2758, %v2759
        %v2761 = vrot.slane %v2760, 4
        %v2762 = vmax.f32 %v2760, %v2761
        %v2763 = vrot.slane %v2762, 2
        %v2764 = vmax.f32 %v2762, %v2763
        %v2765 = vrot.slane %v2764, 1
        %v2766 = vmax.f32 %v2764, %v2765
        %v2767 = vsel %vm2685, %v2607, -inf
        %v2768 = vsel %vm2685, %v2608, -inf
        %v2769 = vmax.f32 %v2767, %v2768
        %v2770 = vrot.slane %v2769, 4
        %v2771 = vmax.f32 %v2769, %v2770
        %v2772 = vrot.slane %v2771, 2
        %v2773 = vmax.f32 %v2771, %v2772
        %v2774 = vrot.slane %v2773, 1
        %v2775 = vmax.f32 %v2773, %v2774
        %v2776 = vsel %vm2685, %v2609, -inf
        %v2777 = vsel %vm2685, %v2610, -inf
        %v2778 = vmax.f32 %v2776, %v2777
        %v2779 = vrot.slane %v2778, 4
        %v2780 = vmax.f32 %v2778, %v2779
        %v2781 = vrot.slane %v2780, 2
        %v2782 = vmax.f32 %v2780, %v2781
        %v2783 = vrot.slane %v2782, 1
        %v2784 = vmax.f32 %v2782, %v2783
        %v2785 = vsel %vm2685, %v2611, -inf
        %v2786 = vsel %vm2685, %v2612, -inf
        %v2787 = vmax.f32 %v2785, %v2786
        %v2788 = vrot.slane %v2787, 4
        %v2789 = vmax.f32 %v2787, %v2788
        %v2790 = vrot.slane %v2789, 2
        %v2791 = vmax.f32 %v2789, %v2790
        %v2792 = vrot.slane %v2791, 1
        %v2793 = vmax.f32 %v2791, %v2792
        %v2794 = vsel %vm2685, %v2613, -inf
        %v2795 = vsel %vm2685, %v2614, -inf
        %v2796 = vmax.f32 %v2794, %v2795
        %v2797 = vrot.slane %v2796, 4
        %v2798 = vmax.f32 %v2796, %v2797
        %v2799 = vrot.slane %v2798, 2
        %v2800 = vmax.f32 %v2798, %v2799
        %v2801 = vrot.slane %v2800, 1
        %v2802 = vmax.f32 %v2800, %v2801
        %v2803 = vsel %vm2685, %v2615, -inf
        %v2804 = vsel %vm2685, %v2616, -inf
        %v2805 = vmax.f32 %v2803, %v2804
        %v2806 = vrot.slane %v2805, 4
        %v2807 = vmax.f32 %v2805, %v2806
        %v2808 = vrot.slane %v2807, 2
        %v2809 = vmax.f32 %v2807, %v2808
        %v2810 = vrot.slane %v2809, 1
        %v2811 = vmax.f32 %v2809, %v2810
        %v2812 = vsel %vm2685, %v2617, -inf
        %v2813 = vsel %vm2685, %v2618, -inf
        %v2814 = vmax.f32 %v2812, %v2813
        %v2815 = vrot.slane %v2814, 4
        %v2816 = vmax.f32 %v2814, %v2815
        %v2817 = vrot.slane %v2816, 2
        %v2818 = vmax.f32 %v2816, %v2817
        %v2819 = vrot.slane %v2818, 1
        %v2820 = vmax.f32 %v2818, %v2819
        %v2821 = vsel %vm2685, %v2619, -inf
        %v2822 = vsel %vm2685, %v2620, -inf
        %v2823 = vmax.f32 %v2821, %v2822
        %v2824 = vrot.slane %v2823, 4
        %v2825 = vmax.f32 %v2823, %v2824
        %v2826 = vrot.slane %v2825, 2
        %v2827 = vmax.f32 %v2825, %v2826
        %v2828 = vrot.slane %v2827, 1
        %v2829 = vmax.f32 %v2827, %v2828
        %v2830 = vsub.f32 %v2589, %v2694
        %v2831 = vsub.f32 %v2590, %v2694
        %v2832 = vsub.f32 %v2591, %v2703
        %v2833 = vsub.f32 %v2592, %v2703
        %v2834 = vsub.f32 %v2593, %v2712
        %v2835 = vsub.f32 %v2594, %v2712
        %v2836 = vsub.f32 %v2595, %v2721
        %v2837 = vsub.f32 %v2596, %v2721
        %v2838 = vsub.f32 %v2597, %v2730
        %v2839 = vsub.f32 %v2598, %v2730
        %v2840 = vsub.f32 %v2599, %v2739
        %v2841 = vsub.f32 %v2600, %v2739
        %v2842 = vsub.f32 %v2601, %v2748
        %v2843 = vsub.f32 %v2602, %v2748
        %v2844 = vsub.f32 %v2603, %v2757
        %v2845 = vsub.f32 %v2604, %v2757
        %v2846 = vsub.f32 %v2605, %v2766
        %v2847 = vsub.f32 %v2606, %v2766
        %v2848 = vsub.f32 %v2607, %v2775
        %v2849 = vsub.f32 %v2608, %v2775
        %v2850 = vsub.f32 %v2609, %v2784
        %v2851 = vsub.f32 %v2610, %v2784
        %v2852 = vsub.f32 %v2611, %v2793
        %v2853 = vsub.f32 %v2612, %v2793
        %v2854 = vsub.f32 %v2613, %v2802
        %v2855 = vsub.f32 %v2614, %v2802
        %v2856 = vsub.f32 %v2615, %v2811
        %v2857 = vsub.f32 %v2616, %v2811
        %v2858 = vsub.f32 %v2617, %v2820
        %v2859 = vsub.f32 %v2618, %v2820
        %v2860 = vsub.f32 %v2619, %v2829
        %v2861 = vsub.f32 %v2620, %v2829
        %v2862 = vmul.f32 %v2830, 1.442695
        %v2863 = vpow.pop %v2862
        %v2864 = vmul.f32 %v2831, 1.442695
        %v2865 = vpow.pop %v2864
        %v2866 = vmul.f32 %v2832, 1.442695
        %v2867 = vpow.pop %v2866
        %v2868 = vmul.f32 %v2833, 1.442695
        %v2869 = vpow.pop %v2868
        %v2870 = vmul.f32 %v2834, 1.442695
        %v2871 = vpow.pop %v2870
        %v2872 = vmul.f32 %v2835, 1.442695
        %v2873 = vpow.pop %v2872
        %v2874 = vmul.f32 %v2836, 1.442695
        %v2875 = vpow.pop %v2874
        %v2876 = vmul.f32 %v2837, 1.442695
        %v2877 = vpow.pop %v2876
        %v2878 = vmul.f32 %v2838, 1.442695
        %v2879 = vpow.pop %v2878
        %v2880 = vmul.f32 %v2839, 1.442695
        %v2881 = vpow.pop %v2880
        %v2882 = vmul.f32 %v2840, 1.442695
        %v2883 = vpow.pop %v2882
        %v2884 = vmul.f32 %v2841, 1.442695
        %v2885 = vpow.pop %v2884
        %v2886 = vmul.f32 %v2842, 1.442695
        %v2887 = vpow.pop %v2886
        %v2888 = vmul.f32 %v2843, 1.442695
        %v2889 = vpow.pop %v2888
        %v2890 = vmul.f32 %v2844, 1.442695
        %v2891 = vpow.pop %v2890
        %v2892 = vmul.f32 %v2845, 1.442695
        %v2893 = vpow.pop %v2892
        %v2894 = vmul.f32 %v2846, 1.442695
        %v2895 = vpow.pop %v2894
        %v2896 = vmul.f32 %v2847, 1.442695
        %v2897 = vpow.pop %v2896
        %v2898 = vmul.f32 %v2848, 1.442695
        %v2899 = vpow.pop %v2898
        %v2900 = vmul.f32 %v2849, 1.442695
        %v2901 = vpow.pop %v2900
        %v2902 = vmul.f32 %v2850, 1.442695
        %v2903 = vpow.pop %v2902
        %v2904 = vmul.f32 %v2851, 1.442695
        %v2905 = vpow.pop %v2904
        %v2906 = vmul.f32 %v2852, 1.442695
        %v2907 = vpow.pop %v2906
        %v2908 = vmul.f32 %v2853, 1.442695
        %v2909 = vpow.pop %v2908
        %v2910 = vmul.f32 %v2854, 1.442695
        %v2911 = vpow.pop %v2910
        %v2912 = vmul.f32 %v2855, 1.442695
        %v2913 = vpow.pop %v2912
        %v2914 = vmul.f32 %v2856, 1.442695
        %v2915 = vpow.pop %v2914
        %v2916 = vmul.f32 %v2857, 1.442695
        %v2917 = vpow.pop %v2916
        %v2918 = vmul.f32 %v2858, 1.442695
        %v2919 = vpow.pop %v2918
        %v2920 = vmul.f32 %v2859, 1.442695
        %v2921 = vpow.pop %v2920
        %v2922 = vmul.f32 %v2860, 1.442695
        %v2923 = vpow.pop %v2922
        %v2924 = vmul.f32 %v2861, 1.442695
        %v2925 = vpow.pop %v2924
        %v2926 = vmul.f32 %v2863, %v2653
        %v2927 = vmul.f32 %v2865, %v2654
        %v2928 = vmul.f32 %v2867, %v2655
        %v2929 = vmul.f32 %v2869, %v2656
        %v2930 = vmul.f32 %v2871, %v2657
        %v2931 = vmul.f32 %v2873, %v2658
        %v2932 = vmul.f32 %v2875, %v2659
        %v2933 = vmul.f32 %v2877, %v2660
        %v2934 = vmul.f32 %v2879, %v2661
        %v2935 = vmul.f32 %v2881, %v2662
        %v2936 = vmul.f32 %v2883, %v2663
        %v2937 = vmul.f32 %v2885, %v2664
        %v2938 = vmul.f32 %v2887, %v2665
        %v2939 = vmul.f32 %v2889, %v2666
        %v2940 = vmul.f32 %v2891, %v2667
        %v2941 = vmul.f32 %v2893, %v2668
        %v2942 = vmul.f32 %v2895, %v2669
        %v2943 = vmul.f32 %v2897, %v2670
        %v2944 = vmul.f32 %v2899, %v2671
        %v2945 = vmul.f32 %v2901, %v2672
        %v2946 = vmul.f32 %v2903, %v2673
        %v2947 = vmul.f32 %v2905, %v2674
        %v2948 = vmul.f32 %v2907, %v2675
        %v2949 = vmul.f32 %v2909, %v2676
        %v2950 = vmul.f32 %v2911, %v2677
        %v2951 = vmul.f32 %v2913, %v2678
        %v2952 = vmul.f32 %v2915, %v2679
        %v2953 = vmul.f32 %v2917, %v2680
        %v2954 = vmul.f32 %v2919, %v2681
        %v2955 = vmul.f32 %v2921, %v2682
        %v2956 = vmul.f32 %v2923, %v2683
        %v2957 = vmul.f32 %v2925, %v2684
        %v2958 = vsel %vm2685, %v2926, 0.0
        %v2959 = vsel %vm2685, %v2927, 0.0
        %v2960 = vadd.f32 %v2958, %v2959
        %v2961 = vrot.slane %v2960, 4
        %v2962 = vadd.f32 %v2960, %v2961
        %v2963 = vrot.slane %v2962, 2
        %v2964 = vadd.f32 %v2962, %v2963
        %v2965 = vrot.slane %v2964, 1
        %v2966 = vadd.f32 %v2964, %v2965
        %v2967 = vsel %vm2685, %v2928, 0.0
        %v2968 = vsel %vm2685, %v2929, 0.0
        %v2969 = vadd.f32 %v2967, %v2968
        %v2970 = vrot.slane %v2969, 4
        %v2971 = vadd.f32 %v2969, %v2970
        %v2972 = vrot.slane %v2971, 2
        %v2973 = vadd.f32 %v2971, %v2972
        %v2974 = vrot.slane %v2973, 1
        %v2975 = vadd.f32 %v2973, %v2974
        %v2976 = vsel %vm2685, %v2930, 0.0
        %v2977 = vsel %vm2685, %v2931, 0.0
        %v2978 = vadd.f32 %v2976, %v2977
        %v2979 = vrot.slane %v2978, 4
        %v2980 = vadd.f32 %v2978, %v2979
        %v2981 = vrot.slane %v2980, 2
        %v2982 = vadd.f32 %v2980, %v2981
        %v2983 = vrot.slane %v2982, 1
        %v2984 = vadd.f32 %v2982, %v2983
        %v2985 = vsel %vm2685, %v2932, 0.0
        %v2986 = vsel %vm2685, %v2933, 0.0
        %v2987 = vadd.f32 %v2985, %v2986
        %v2988 = vrot.slane %v2987, 4
        %v2989 = vadd.f32 %v2987, %v2988
        %v2990 = vrot.slane %v2989, 2
        %v2991 = vadd.f32 %v2989, %v2990
        %v2992 = vrot.slane %v2991, 1
        %v2993 = vadd.f32 %v2991, %v2992
        %v2994 = vsel %vm2685, %v2934, 0.0
        %v2995 = vsel %vm2685, %v2935, 0.0
        %v2996 = vadd.f32 %v2994, %v2995
        %v2997 = vrot.slane %v2996, 4
        %v2998 = vadd.f32 %v2996, %v2997
        %v2999 = vrot.slane %v2998, 2
        %v3000 = vadd.f32 %v2998, %v2999
        %v3001 = vrot.slane %v3000, 1
        %v3002 = vadd.f32 %v3000, %v3001
        %v3003 = vsel %vm2685, %v2936, 0.0
        %v3004 = vsel %vm2685, %v2937, 0.0
        %v3005 = vadd.f32 %v3003, %v3004
        %v3006 = vrot.slane %v3005, 4
        %v3007 = vadd.f32 %v3005, %v3006
        %v3008 = vrot.slane %v3007, 2
        %v3009 = vadd.f32 %v3007, %v3008
        %v3010 = vrot.slane %v3009, 1
        %v3011 = vadd.f32 %v3009, %v3010
        %v3012 = vsel %vm2685, %v2938, 0.0
        %v3013 = vsel %vm2685, %v2939, 0.0
        %v3014 = vadd.f32 %v3012, %v3013
        %v3015 = vrot.slane %v3014, 4
        %v3016 = vadd.f32 %v3014, %v3015
        %v3017 = vrot.slane %v3016, 2
        %v3018 = vadd.f32 %v3016, %v3017
        %v3019 = vrot.slane %v3018, 1
        %v3020 = vadd.f32 %v3018, %v3019
        %v3021 = vsel %vm2685, %v2940, 0.0
        %v3022 = vsel %vm2685, %v2941, 0.0
        %v3023 = vadd.f32 %v3021, %v3022
        %v3024 = vrot.slane %v3023, 4
        %v3025 = vadd.f32 %v3023, %v3024
        %v3026 = vrot.slane %v3025, 2
        %v3027 = vadd.f32 %v3025, %v3026
        %v3028 = vrot.slane %v3027, 1
        %v3029 = vadd.f32 %v3027, %v3028
        %v3030 = vsel %vm2685, %v2942, 0.0
        %v3031 = vsel %vm2685, %v2943, 0.0
        %v3032 = vadd.f32 %v3030, %v3031
        %v3033 = vrot.slane %v3032, 4
        %v3034 = vadd.f32 %v3032, %v3033
        %v3035 = vrot.slane %v3034, 2
        %v3036 = vadd.f32 %v3034, %v3035
        %v3037 = vrot.slane %v3036, 1
        %v3038 = vadd.f32 %v3036, %v3037
        %v3039 = vsel %vm2685, %v2944, 0.0
        %v3040 = vsel %vm2685, %v2945, 0.0
        %v3041 = vadd.f32 %v3039, %v3040
        %v3042 = vrot.slane %v3041, 4
        %v3043 = vadd.f32 %v3041, %v3042
        %v3044 = vrot.slane %v3043, 2
        %v3045 = vadd.f32 %v3043, %v3044
        %v3046 = vrot.slane %v3045, 1
        %v3047 = vadd.f32 %v3045, %v3046
        %v3048 = vsel %vm2685, %v2946, 0.0
        %v3049 = vsel %vm2685, %v2947, 0.0
        %v3050 = vadd.f32 %v3048, %v3049
        %v3051 = vrot.slane %v3050, 4
        %v3052 = vadd.f32 %v3050, %v3051
        %v3053 = vrot.slane %v3052, 2
        %v3054 = vadd.f32 %v3052, %v3053
        %v3055 = vrot.slane %v3054, 1
        %v3056 = vadd.f32 %v3054, %v3055
        %v3057 = vsel %vm2685, %v2948, 0.0
        %v3058 = vsel %vm2685, %v2949, 0.0
        %v3059 = vadd.f32 %v3057, %v3058
        %v3060 = vrot.slane %v3059, 4
        %v3061 = vadd.f32 %v3059, %v3060
        %v3062 = vrot.slane %v3061, 2
        %v3063 = vadd.f32 %v3061, %v3062
        %v3064 = vrot.slane %v3063, 1
        %v3065 = vadd.f32 %v3063, %v3064
        %v3066 = vsel %vm2685, %v2950, 0.0
        %v3067 = vsel %vm2685, %v2951, 0.0
        %v3068 = vadd.f32 %v3066, %v3067
        %v3069 = vrot.slane %v3068, 4
        %v3070 = vadd.f32 %v3068, %v3069
        %v3071 = vrot.slane %v3070, 2
        %v3072 = vadd.f32 %v3070, %v3071
        %v3073 = vrot.slane %v3072, 1
        %v3074 = vadd.f32 %v3072, %v3073
        %v3075 = vsel %vm2685, %v2952, 0.0
        %v3076 = vsel %vm2685, %v2953, 0.0
        %v3077 = vadd.f32 %v3075, %v3076
        %v3078 = vrot.slane %v3077, 4
        %v3079 = vadd.f32 %v3077, %v3078
        %v3080 = vrot.slane %v3079, 2
        %v3081 = vadd.f32 %v3079, %v3080
        %v3082 = vrot.slane %v3081, 1
        %v3083 = vadd.f32 %v3081, %v3082
        %v3084 = vsel %vm2685, %v2954, 0.0
        %v3085 = vsel %vm2685, %v2955, 0.0
        %v3086 = vadd.f32 %v3084, %v3085
        %v3087 = vrot.slane %v3086, 4
        %v3088 = vadd.f32 %v3086, %v3087
        %v3089 = vrot.slane %v3088, 2
        %v3090 = vadd.f32 %v3088, %v3089
        %v3091 = vrot.slane %v3090, 1
        %v3092 = vadd.f32 %v3090, %v3091
        %v3093 = vsel %vm2685, %v2956, 0.0
        %v3094 = vsel %vm2685, %v2957, 0.0
        %v3095 = vadd.f32 %v3093, %v3094
        %v3096 = vrot.slane %v3095, 4
        %v3097 = vadd.f32 %v3095, %v3096
        %v3098 = vrot.slane %v3097, 2
        %v3099 = vadd.f32 %v3097, %v3098
        %v3100 = vrot.slane %v3099, 1
        %v3101 = vadd.f32 %v3099, %v3100
        %v3102 = vmax.f32 %v2966, 1e-30
        %v3103 = vmax.f32 %v2975, 1e-30
        %v3104 = vmax.f32 %v2984, 1e-30
        %v3105 = vmax.f32 %v2993, 1e-30
        %v3106 = vmax.f32 %v3002, 1e-30
        %v3107 = vmax.f32 %v3011, 1e-30
        %v3108 = vmax.f32 %v3020, 1e-30
        %v3109 = vmax.f32 %v3029, 1e-30
        %v3110 = vmax.f32 %v3038, 1e-30
        %v3111 = vmax.f32 %v3047, 1e-30
        %v3112 = vmax.f32 %v3056, 1e-30
        %v3113 = vmax.f32 %v3065, 1e-30
        %v3114 = vmax.f32 %v3074, 1e-30
        %v3115 = vmax.f32 %v3083, 1e-30
        %v3116 = vmax.f32 %v3092, 1e-30
        %v3117 = vmax.f32 %v3101, 1e-30
        %v3118 = vrcp.pop %v3102
        %v3119 = vrcp.pop %v3103
        %v3120 = vrcp.pop %v3104
        %v3121 = vrcp.pop %v3105
        %v3122 = vrcp.pop %v3106
        %v3123 = vrcp.pop %v3107
        %v3124 = vrcp.pop %v3108
        %v3125 = vrcp.pop %v3109
        %v3126 = vrcp.pop %v3110
        %v3127 = vrcp.pop %v3111
        %v3128 = vrcp.pop %v3112
        %v3129 = vrcp.pop %v3113
        %v3130 = vrcp.pop %v3114
        %v3131 = vrcp.pop %v3115
        %v3132 = vrcp.pop %v3116
        %v3133 = vrcp.pop %v3117
        %v3134 = vmul.f32 %v2926, %v3118
        %v3135 = vmul.f32 %v2927, %v3118
        %v3136 = vmul.f32 %v2928, %v3119
        %v3137 = vmul.f32 %v2929, %v3119
        %v3138 = vmul.f32 %v2930, %v3120
        %v3139 = vmul.f32 %v2931, %v3120
        %v3140 = vmul.f32 %v2932, %v3121
        %v3141 = vmul.f32 %v2933, %v3121
        %v3142 = vmul.f32 %v2934, %v3122
        %v3143 = vmul.f32 %v2935, %v3122
        %v3144 = vmul.f32 %v2936, %v3123
        %v3145 = vmul.f32 %v2937, %v3123
        %v3146 = vmul.f32 %v2938, %v3124
        %v3147 = vmul.f32 %v2939, %v3124
        %v3148 = vmul.f32 %v2940, %v3125
        %v3149 = vmul.f32 %v2941, %v3125
        %v3150 = vmul.f32 %v2942, %v3126
        %v3151 = vmul.f32 %v2943, %v3126
        %v3152 = vmul.f32 %v2944, %v3127
        %v3153 = vmul.f32 %v2945, %v3127
        %v3154 = vmul.f32 %v2946, %v3128
        %v3155 = vmul.f32 %v2947, %v3128
        %v3156 = vmul.f32 %v2948, %v3129
        %v3157 = vmul.f32 %v2949, %v3129
        %v3158 = vmul.f32 %v2950, %v3130
        %v3159 = vmul.f32 %v2951, %v3130
        %v3160 = vmul.f32 %v2952, %v3131
        %v3161 = vmul.f32 %v2953, %v3131
        %v3162 = vmul.f32 %v2954, %v3132
        %v3163 = vmul.f32 %v2955, %v3132
        %v3164 = vmul.f32 %v2956, %v3133
        %v3165 = vmul.f32 %v2957, %v3133
        %3167 = vset.pattern.permute.xlu0 0
        %3168 = vperm.xlu0 %3167, %v3134
        %v3169 = vpop.permute.xlu0 %3168
        %3172 = vset.pattern.permute.xlu0 0
        %3173 = vperm.xlu0 %3172, %v3135
        %v3174 = vpop.permute.xlu0 %3173
        %3177 = vset.pattern.permute.xlu0 0
        %3178 = vperm.xlu0 %3177, %v3136
        %v3179 = vpop.permute.xlu0 %3178
        %3182 = vset.pattern.permute.xlu0 0
        %3183 = vperm.xlu0 %3182, %v3137
        %v3184 = vpop.permute.xlu0 %3183
        %3187 = vset.pattern.permute.xlu0 0
        %3188 = vperm.xlu0 %3187, %v3138
        %v3189 = vpop.permute.xlu0 %3188
        %3192 = vset.pattern.permute.xlu0 0
        %3193 = vperm.xlu0 %3192, %v3139
        %v3194 = vpop.permute.xlu0 %3193
        %3197 = vset.pattern.permute.xlu0 0
        %3198 = vperm.xlu0 %3197, %v3140
        %v3199 = vpop.permute.xlu0 %3198
        %3202 = vset.pattern.permute.xlu0 0
        %3203 = vperm.xlu0 %3202, %v3141
        %v3204 = vpop.permute.xlu0 %3203
        %3207 = vset.pattern.permute.xlu0 0
        %3208 = vperm.xlu0 %3207, %v3142
        %v3209 = vpop.permute.xlu0 %3208
        %3212 = vset.pattern.permute.xlu0 0
        %3213 = vperm.xlu0 %3212, %v3143
        %v3214 = vpop.permute.xlu0 %3213
        %3217 = vset.pattern.permute.xlu0 0
        %3218 = vperm.xlu0 %3217, %v3144
        %v3219 = vpop.permute.xlu0 %3218
        %3222 = vset.pattern.permute.xlu0 0
        %3223 = vperm.xlu0 %3222, %v3145
        %v3224 = vpop.permute.xlu0 %3223
        %3227 = vset.pattern.permute.xlu0 0
        %3228 = vperm.xlu0 %3227, %v3146
        %v3229 = vpop.permute.xlu0 %3228
        %3232 = vset.pattern.permute.xlu0 0
        %3233 = vperm.xlu0 %3232, %v3147
        %v3234 = vpop.permute.xlu0 %3233
        %3237 = vset.pattern.permute.xlu0 0
        %3238 = vperm.xlu0 %3237, %v3148
        %v3239 = vpop.permute.xlu0 %3238
        %3242 = vset.pattern.permute.xlu0 0
        %3243 = vperm.xlu0 %3242, %v3149
        %v3244 = vpop.permute.xlu0 %3243
        %3247 = vset.pattern.permute.xlu0 0
        %3248 = vperm.xlu0 %3247, %v3150
        %v3249 = vpop.permute.xlu0 %3248
        %3252 = vset.pattern.permute.xlu0 0
        %3253 = vperm.xlu0 %3252, %v3151
        %v3254 = vpop.permute.xlu0 %3253
        %3257 = vset.pattern.permute.xlu0 0
        %3258 = vperm.xlu0 %3257, %v3152
        %v3259 = vpop.permute.xlu0 %3258
        %3262 = vset.pattern.permute.xlu0 0
        %3263 = vperm.xlu0 %3262, %v3153
        %v3264 = vpop.permute.xlu0 %3263
        %3267 = vset.pattern.permute.xlu0 0
        %3268 = vperm.xlu0 %3267, %v3154
        %v3269 = vpop.permute.xlu0 %3268
        %3272 = vset.pattern.permute.xlu0 0
        %3273 = vperm.xlu0 %3272, %v3155
        %v3274 = vpop.permute.xlu0 %3273
        %3277 = vset.pattern.permute.xlu0 0
        %3278 = vperm.xlu0 %3277, %v3156
        %v3279 = vpop.permute.xlu0 %3278
        %3282 = vset.pattern.permute.xlu0 0
        %3283 = vperm.xlu0 %3282, %v3157
        %v3284 = vpop.permute.xlu0 %3283
        %3287 = vset.pattern.permute.xlu0 0
        %3288 = vperm.xlu0 %3287, %v3158
        %v3289 = vpop.permute.xlu0 %3288
        %3292 = vset.pattern.permute.xlu0 0
        %3293 = vperm.xlu0 %3292, %v3159
        %v3294 = vpop.permute.xlu0 %3293
        %3297 = vset.pattern.permute.xlu0 0
        %3298 = vperm.xlu0 %3297, %v3160
        %v3299 = vpop.permute.xlu0 %3298
        %3302 = vset.pattern.permute.xlu0 0
        %3303 = vperm.xlu0 %3302, %v3161
        %v3304 = vpop.permute.xlu0 %3303
        %3307 = vset.pattern.permute.xlu0 0
        %3308 = vperm.xlu0 %3307, %v3162
        %v3309 = vpop.permute.xlu0 %3308
        %3312 = vset.pattern.permute.xlu0 0
        %3313 = vperm.xlu0 %3312, %v3163
        %v3314 = vpop.permute.xlu0 %3313
        %3317 = vset.pattern.permute.xlu0 0
        %3318 = vperm.xlu0 %3317, %v3164
        %v3319 = vpop.permute.xlu0 %3318
        %3322 = vset.pattern.permute.xlu0 0
        %3323 = vperm.xlu0 %3322, %v3165
        %v3324 = vpop.permute.xlu0 %3323
        %v3326 = vmul.f32 %v3169, %v2390
        %v3327 = vmul.f32 %v3174, %v2391
        %v3328 = vmul.f32 %v3179, %v2392
        %v3329 = vmul.f32 %v3184, %v2393
        %v3330 = vmul.f32 %v3189, %v2394
        %v3331 = vmul.f32 %v3194, %v2395
        %v3332 = vmul.f32 %v3199, %v2396
        %v3333 = vmul.f32 %v3204, %v2397
        %v3334 = vmul.f32 %v3209, %v2398
        %v3335 = vmul.f32 %v3214, %v2399
        %v3336 = vmul.f32 %v3219, %v2400
        %v3337 = vmul.f32 %v3224, %v2401
        %v3338 = vmul.f32 %v3229, %v2402
        %v3339 = vmul.f32 %v3234, %v2403
        %v3340 = vmul.f32 %v3239, %v2404
        %v3341 = vmul.f32 %v3244, %v2405
        %v3342 = vmul.f32 %v3249, %v2406
        %v3343 = vmul.f32 %v3254, %v2407
        %v3344 = vmul.f32 %v3259, %v2408
        %v3345 = vmul.f32 %v3264, %v2409
        %v3346 = vmul.f32 %v3269, %v2410
        %v3347 = vmul.f32 %v3274, %v2411
        %v3348 = vmul.f32 %v3279, %v2412
        %v3349 = vmul.f32 %v3284, %v2413
        %v3350 = vmul.f32 %v3289, %v2414
        %v3351 = vmul.f32 %v3294, %v2415
        %v3352 = vmul.f32 %v3299, %v2416
        %v3353 = vmul.f32 %v3304, %v2417
        %v3354 = vmul.f32 %v3309, %v2418
        %v3355 = vmul.f32 %v3314, %v2419
        %v3356 = vmul.f32 %v3319, %v2420
        %v3357 = vmul.f32 %v3324, %v2421
        %v3358 = vsel %vm987, %v3326, 0.0
        %v3359 = vsel %vm987, %v3327, 0.0
        %v3360 = vadd.f32 %v3358, %v3359
        %v3361 = vrot.slane %v3360, 4
        %v3362 = vadd.f32 %v3360, %v3361
        %v3363 = vrot.slane %v3362, 2
        %v3364 = vadd.f32 %v3362, %v3363
        %v3365 = vrot.slane %v3364, 1
        %v3366 = vadd.f32 %v3364, %v3365
        %v3367 = vsel %vm987, %v3328, 0.0
        %v3368 = vsel %vm987, %v3329, 0.0
        %v3369 = vadd.f32 %v3367, %v3368
        %v3370 = vrot.slane %v3369, 4
        %v3371 = vadd.f32 %v3369, %v3370
        %v3372 = vrot.slane %v3371, 2
        %v3373 = vadd.f32 %v3371, %v3372
        %v3374 = vrot.slane %v3373, 1
        %v3375 = vadd.f32 %v3373, %v3374
        %v3376 = vsel %vm987, %v3330, 0.0
        %v3377 = vsel %vm987, %v3331, 0.0
        %v3378 = vadd.f32 %v3376, %v3377
        %v3379 = vrot.slane %v3378, 4
        %v3380 = vadd.f32 %v3378, %v3379
        %v3381 = vrot.slane %v3380, 2
        %v3382 = vadd.f32 %v3380, %v3381
        %v3383 = vrot.slane %v3382, 1
        %v3384 = vadd.f32 %v3382, %v3383
        %v3385 = vsel %vm987, %v3332, 0.0
        %v3386 = vsel %vm987, %v3333, 0.0
        %v3387 = vadd.f32 %v3385, %v3386
        %v3388 = vrot.slane %v3387, 4
        %v3389 = vadd.f32 %v3387, %v3388
        %v3390 = vrot.slane %v3389, 2
        %v3391 = vadd.f32 %v3389, %v3390
        %v3392 = vrot.slane %v3391, 1
        %v3393 = vadd.f32 %v3391, %v3392
        %v3394 = vsel %vm987, %v3334, 0.0
        %v3395 = vsel %vm987, %v3335, 0.0
        %v3396 = vadd.f32 %v3394, %v3395
        %v3397 = vrot.slane %v3396, 4
        %v3398 = vadd.f32 %v3396, %v3397
        %v3399 = vrot.slane %v3398, 2
        %v3400 = vadd.f32 %v3398, %v3399
        %v3401 = vrot.slane %v3400, 1
        %v3402 = vadd.f32 %v3400, %v3401
        %v3403 = vsel %vm987, %v3336, 0.0
        %v3404 = vsel %vm987, %v3337, 0.0
        %v3405 = vadd.f32 %v3403, %v3404
        %v3406 = vrot.slane %v3405, 4
        %v3407 = vadd.f32 %v3405, %v3406
        %v3408 = vrot.slane %v3407, 2
        %v3409 = vadd.f32 %v3407, %v3408
        %v3410 = vrot.slane %v3409, 1
        %v3411 = vadd.f32 %v3409, %v3410
        %v3412 = vsel %vm987, %v3338, 0.0
        %v3413 = vsel %vm987, %v3339, 0.0
        %v3414 = vadd.f32 %v3412, %v3413
        %v3415 = vrot.slane %v3414, 4
        %v3416 = vadd.f32 %v3414, %v3415
        %v3417 = vrot.slane %v3416, 2
        %v3418 = vadd.f32 %v3416, %v3417
        %v3419 = vrot.slane %v3418, 1
        %v3420 = vadd.f32 %v3418, %v3419
        %v3421 = vsel %vm987, %v3340, 0.0
        %v3422 = vsel %vm987, %v3341, 0.0
        %v3423 = vadd.f32 %v3421, %v3422
        %v3424 = vrot.slane %v3423, 4
        %v3425 = vadd.f32 %v3423, %v3424
        %v3426 = vrot.slane %v3425, 2
        %v3427 = vadd.f32 %v3425, %v3426
        %v3428 = vrot.slane %v3427, 1
        %v3429 = vadd.f32 %v3427, %v3428
        %v3430 = vsel %vm987, %v3342, 0.0
        %v3431 = vsel %vm987, %v3343, 0.0
        %v3432 = vadd.f32 %v3430, %v3431
        %v3433 = vrot.slane %v3432, 4
        %v3434 = vadd.f32 %v3432, %v3433
        %v3435 = vrot.slane %v3434, 2
        %v3436 = vadd.f32 %v3434, %v3435
        %v3437 = vrot.slane %v3436, 1
        %v3438 = vadd.f32 %v3436, %v3437
        %v3439 = vsel %vm987, %v3344, 0.0
        %v3440 = vsel %vm987, %v3345, 0.0
        %v3441 = vadd.f32 %v3439, %v3440
        %v3442 = vrot.slane %v3441, 4
        %v3443 = vadd.f32 %v3441, %v3442
        %v3444 = vrot.slane %v3443, 2
        %v3445 = vadd.f32 %v3443, %v3444
        %v3446 = vrot.slane %v3445, 1
        %v3447 = vadd.f32 %v3445, %v3446
        %v3448 = vsel %vm987, %v3346, 0.0
        %v3449 = vsel %vm987, %v3347, 0.0
        %v3450 = vadd.f32 %v3448, %v3449
        %v3451 = vrot.slane %v3450, 4
        %v3452 = vadd.f32 %v3450, %v3451
        %v3453 = vrot.slane %v3452, 2
        %v3454 = vadd.f32 %v3452, %v3453
        %v3455 = vrot.slane %v3454, 1
        %v3456 = vadd.f32 %v3454, %v3455
        %v3457 = vsel %vm987, %v3348, 0.0
        %v3458 = vsel %vm987, %v3349, 0.0
        %v3459 = vadd.f32 %v3457, %v3458
        %v3460 = vrot.slane %v3459, 4
        %v3461 = vadd.f32 %v3459, %v3460
        %v3462 = vrot.slane %v3461, 2
        %v3463 = vadd.f32 %v3461, %v3462
        %v3464 = vrot.slane %v3463, 1
        %v3465 = vadd.f32 %v3463, %v3464
        %v3466 = vsel %vm987, %v3350, 0.0
        %v3467 = vsel %vm987, %v3351, 0.0
        %v3468 = vadd.f32 %v3466, %v3467
        %v3469 = vrot.slane %v3468, 4
        %v3470 = vadd.f32 %v3468, %v3469
        %v3471 = vrot.slane %v3470, 2
        %v3472 = vadd.f32 %v3470, %v3471
        %v3473 = vrot.slane %v3472, 1
        %v3474 = vadd.f32 %v3472, %v3473
        %v3475 = vsel %vm987, %v3352, 0.0
        %v3476 = vsel %vm987, %v3353, 0.0
        %v3477 = vadd.f32 %v3475, %v3476
        %v3478 = vrot.slane %v3477, 4
        %v3479 = vadd.f32 %v3477, %v3478
        %v3480 = vrot.slane %v3479, 2
        %v3481 = vadd.f32 %v3479, %v3480
        %v3482 = vrot.slane %v3481, 1
        %v3483 = vadd.f32 %v3481, %v3482
        %v3484 = vsel %vm987, %v3354, 0.0
        %v3485 = vsel %vm987, %v3355, 0.0
        %v3486 = vadd.f32 %v3484, %v3485
        %v3487 = vrot.slane %v3486, 4
        %v3488 = vadd.f32 %v3486, %v3487
        %v3489 = vrot.slane %v3488, 2
        %v3490 = vadd.f32 %v3488, %v3489
        %v3491 = vrot.slane %v3490, 1
        %v3492 = vadd.f32 %v3490, %v3491
        %v3493 = vsel %vm987, %v3356, 0.0
        %v3494 = vsel %vm987, %v3357, 0.0
        %v3495 = vadd.f32 %v3493, %v3494
        %v3496 = vrot.slane %v3495, 4
        %v3497 = vadd.f32 %v3495, %v3496
        %v3498 = vrot.slane %v3497, 2
        %v3499 = vadd.f32 %v3497, %v3498
        %v3500 = vrot.slane %v3499, 1
        %v3501 = vadd.f32 %v3499, %v3500
        %v3502 = vsub.f32 %v3366, %v3438
        %v3503 = vsub.f32 %v3375, %v3447
        %v3504 = vsub.f32 %v3384, %v3456
        %v3505 = vsub.f32 %v3393, %v3465
        %v3506 = vsub.f32 %v3402, %v3474
        %v3507 = vsub.f32 %v3411, %v3483
        %v3508 = vsub.f32 %v3420, %v3492
        %v3509 = vsub.f32 %v3429, %v3501
        %v3510 = vand.u32 2147483647, %v3502
        %v3511 = vand.u32 2147483647, %v3503
        %v3512 = vand.u32 2147483647, %v3504
        %v3513 = vand.u32 2147483647, %v3505
        %v3514 = vand.u32 2147483647, %v3506
        %v3515 = vand.u32 2147483647, %v3507
        %v3516 = vand.u32 2147483647, %v3508
        %v3517 = vand.u32 2147483647, %v3509
        %v3518 = vld [vmem:[#allocation5] sm:$0xff]
        %v3519 = vld [vmem:[#allocation5 + $0x8] sm:$0xff]
        %v3520 = vld [vmem:[#allocation5 + $0x10] sm:$0xff]
        %v3521 = vld [vmem:[#allocation5 + $0x18] sm:$0xff]
        %v3522 = vld [vmem:[%s8] sm:$0x1]
        %v3524 = vlaneseq
        %v3525 = vshrl.u32 %v3524, 7
        %v3526 = vsub.s32 0, %v3525
        %v3527 = vrot.slane %v3522, %v3526
        %vm3537 = vcmask 1041409
        %v3538 = vsel %vm3537, %v3511, %v3510
        %vm3539 = vcmask 1042434
        %v3540 = vsel %vm3539, %v3512, %v3538
        %vm3541 = vcmask 1043459
        %v3542 = vsel %vm3541, %v3513, %v3540
        %vm3543 = vcmask 1044484
        %v3544 = vsel %vm3543, %v3514, %v3542
        %vm3545 = vcmask 1045509
        %v3546 = vsel %vm3545, %v3515, %v3544
        %vm3547 = vcmask 1046534
        %v3548 = vsel %vm3547, %v3516, %v3546
        %vm3549 = vcmask 1047559
        %v3550 = vsel %vm3549, %v3517, %v3548
        %v3551 = vsel %vm987, %v3550, 0
        %3553 = vmatprep.subr.mxu0 0.0
        %3554 = vmatpush1.msra.mxu0 0.0
        %3555 = vmatprep.subr.mxu0 0.0
        %3556 = vmatpush1.msra.mxu0 0.0
        %3557 = vmatprep.subr.mxu0 0.0
        %3558 = vmatpush1.msra.mxu0 0.0
        %3559 = vmatprep.subr.mxu0 0.0
        %3560 = vmatpush1.msra.mxu0 0.0
        %3561 = vmatprep.subr.mxu0 0.0
        %3562 = vmatpush1.msra.mxu0 0.0
        %3563 = vmatprep.subr.mxu0 0.0
        %3564 = vmatpush1.msra.mxu0 0.0
        %3565 = vmatprep.subr.mxu0 0.0
        %3566 = vmatpush1.msra.mxu0 0.0
        %3567 = vmatprep.subr.mxu0 0.0
        %3568 = vmatpush1.msra.mxu0 0.0
        %3569 = vmatprep.subr.mxu0 0.0
        %3570 = vmatpush1.msra.mxu0 0.0
        %3571 = vmatprep.subr.mxu0 0.0
        %3572 = vmatpush1.msra.mxu0 0.0
        %3573 = vmatprep.subr.mxu0 0.0
        %3574 = vmatpush1.msra.mxu0 0.0
        %3575 = vmatprep.subr.mxu0 0.0
        %3576 = vmatpush1.msra.mxu0 0.0
        %3577 = vmatprep.subr.mxu0 0.0
        %3578 = vmatpush1.msra.mxu0 %v3521
        %3579 = vmatprep.subr.mxu0 0.0
        %3580 = vmatpush1.msra.mxu0 %v3520
        %3581 = vmatprep.subr.mxu0 0.0
        %3582 = vmatpush1.msra.mxu0 %v3519
        %3583 = vmatprep.subr.mxu0 0.0
        %3584 = vmatpush1.msra.mxu0 %v3518
        %3585 = vmatprep.subr.mxu0 0.0
        %3586 = vmatpush2.msra.mxu0 0.0
        %3587 = vmatprep.subr.mxu0 0.0
        %3588 = vmatpush2.msra.mxu0 0.0
        %3589 = vmatprep.subr.mxu0 0.0
        %3590 = vmatpush2.msra.mxu0 0.0
        %3591 = vmatprep.subr.mxu0 0.0
        %3592 = vmatpush2.msra.mxu0 0.0
        %3593 = vmatprep.subr.mxu0 0.0
        %3594 = vmatpush2.msra.mxu0 0.0
        %3595 = vmatprep.subr.mxu0 0.0
        %3596 = vmatpush2.msra.mxu0 0.0
        %3597 = vmatprep.subr.mxu0 0.0
        %3598 = vmatpush2.msra.mxu0 0.0
        %3599 = vmatprep.subr.mxu0 0.0
        %3600 = vmatpush2.msra.mxu0 0.0
        %3601 = vmatprep.subr.mxu0 0.0
        %3602 = vmatpush2.msra.mxu0 0.0
        %3603 = vmatprep.subr.mxu0 0.0
        %3604 = vmatpush2.msra.mxu0 0.0
        %3605 = vmatprep.subr.mxu0 0.0
        %3606 = vmatpush2.msra.mxu0 0.0
        %3607 = vmatprep.subr.mxu0 0.0
        %3608 = vmatpush2.msra.mxu0 0.0
        %3609 = vmatprep.subr.mxu0 0.0
        %3610 = vmatpush2.msra.mxu0 0.0
        %3611 = vmatprep.subr.mxu0 0.0
        %3612 = vmatpush2.msra.mxu0 0.0
        %3613 = vmatprep.subr.mxu0 0.0
        %3614 = vmatpush2.msra.mxu0 0.0
        %3615 = vmatprep.subr.mxu0 0.0
        %3616 = vmatpush2.msra.mxu0 0.0
        %3617 = vmatprep.mubr.f32.mxu0 0.0
        %3618 = vmatmul.mubr.f32.gmra.mxu0 %v3551
        %v3619 = vpop.f32.mrf.mxu0
        %v3620 = vadd.f32 %v3527, %v3619
        %v3621 = vpop.f32.mrf.mxu0
        %3622 = vdwg.mxu0
        %3623 = vst [vmem:[%s400] sm:$0xff] %v3620
        %s3624 = sand.u32 %s242, 1
        %s3625 = scalar_lea.sflag [#allocation4], %s3624
        %s3626 = sand.u32 %s242, 1
        %s3627 = smul.addr %s3626, 8
        %s3628 = scalar_lea.vmem [#allocation7], %s3627
        // Predicated region
        $region65: #{tpu_custom_call.1} parent=55 // pred_check
          %p3629 = pneg %p252
        $region66: #{tpu_custom_call.1} parent=55 // pred_check_branch
          %3631 = sbr.rel (%p3629) target = $region68
        $region67: #{tpu_custom_call.1} parent=55 // pred_region
          %s3633 = ssub.s32 128, 128
          %3634 = vsyncadd %s3625, %s3633
          %s3635 = smul.addr %s25, 128
          %s3636 = scalar_lea.hbm %s9, %s3635
          %s3638 = sshll.u32 %s3628, 4
          %s3639 = int_to_ptr.vmem [resolvable:$true] %s3638
          %3641 = dma.vmem_to_hbm [thread:$0]  %s3639, 128, %s3636, %s3625
        $region68: #{tpu_custom_call.1} parent=55 // pred_fallthru
          _
      $region56: #{tpu_custom_call.1} parent=5 // pred_fallthru
        _
      %p3642 = scmp.le.s32.totalorder 2, %s20
      // Predicated region
      $region69: #{tpu_custom_call.1} parent=5 // pred_check
        %p3643 = pneg %p3642
      $region70: #{tpu_custom_call.1} parent=5 // pred_check_branch
        %3645 = sbr.rel (%p3643) target = $region72
      $region71: #{tpu_custom_call.1} parent=5 // pred_region
        %s3646 = ssub.s32 %s20, 2
        // Predicated region
        $region73: #{tpu_custom_call.1} parent=71 // pred_check
          %p3647 = pneg %p258
        $region74: #{tpu_custom_call.1} parent=71 // pred_check_branch
          %3649 = sbr.rel (%p3647) target = $region76
        $region75: #{tpu_custom_call.1} parent=71 // pred_region
          %s3650 = sand.u32 %s243, 1
          %s3651 = scalar_lea.sflag [#allocation4], %s3650
          %s3652 = sand.u32 %s243, 1
          %s3653 = smul.addr %s3652, 8
          %s3654 = scalar_lea.vmem [#allocation7], %s3653
          %3655 = dma.done %s3651, 128
        $region76: #{tpu_custom_call.1} parent=71 // pred_fallthru
          _
      $region72: #{tpu_custom_call.1} parent=5 // pred_fallthru
        _
    $region6: #{tpu_custom_call.1} parent=1 // loop_footer
      %s24 = sadd.s32 1, %s20
    $region7: #{tpu_custom_call.1} parent=1 // loop_footer_branch
      %19 = sbr.rel target = $region3
    $region8: #{tpu_custom_call.1} parent=1 // loop_exit
      _
    %3656 = vsyncpa [#allocation3], 1
    %s3657 = scalar_lea.sflag [#allocation3], 1
    %3658 = vsyncpa %s3657, 1
    %3659 = vsyncpa [#allocation6], 1
    %3660 = vsyncpa [#allocation4], 1
    %s3661 = scalar_lea.sflag [#allocation4], 1
    %3662 = vsyncpa %s3661, 1

</llo_original>
